<compile_context>
chip_gen: v7x
topology: tpu7x:2x2x1
jax: 0.10.0
libtpu: 0.0.40
codegen_flags: <defaults>
</compile_context>

<pallas_src>
import functools
import math

import jax
import jax.numpy as jnp
from jax.experimental import pallas as pl
from jax.experimental.pallas import tpu as pltpu

BN_EPS = 1e-5       # PyTorch BatchNorm2d default eps
_HALO = 16          # one bf16 sublane tile: keeps the conv2 staging store and
                    # the halo-band zero stores tile-aligned


def _decoder_block_kernel(x_ref, w1_ref, b1_ref, w2_ref, b2_ref, o_ref,
                          y1pad_ref, *, ho, wo):
    """Fused (conv3x3 + BN + ReLU) x 2 on one zero-padded NHWC image.

    x_ref:     (1, ho+2, wo+2, cin)        bf16, spatially zero-padded input
    w1_ref:    (3, 3*cin, cout)            bf16, BN1 scale folded in; per-dw row
                                           block ordered (dh, cin)
    b1_ref:    (1, cout)                   f32, folded BN1 shift
    w2_ref:    (3, 3*cout, cout)           bf16, BN2 scale folded in
    b2_ref:    (1, cout)                   f32, folded BN2 shift
    o_ref:     (1, ho, wo, cout)           out_dtype (bf16 by default)
    y1pad_ref: (ho+2, wo+2*_HALO, cout)    bf16 VMEM staging for the intermediate
    """
    cout = o_ref.shape[-1]
    hw = ho * wo

    def conv3x3(slab_fn, w_ref, b_ref):
        # 3x3 'same' conv as 3 accumulating MXU matmuls (one per kernel column
        # dw), K = 3*C each.  slab_fn(dw) returns the width-shifted, height
        # zero-padded (ho+2, wo, C) slab built ONCE per dw; its 3 dh row-slices
        # are outer-axis offsets (free) and are lane-concatenated into the
        # (ho*wo, 3*C) taps operand for that dw.  The (ho*wo, 9*C) im2col
        # operand is never materialized.
        acc = jnp.zeros((hw, cout), jnp.float32)
        for dw in range(3):
            s = slab_fn(dw)                                 # (ho+2, wo, C)
            c = s.shape[-1]
            taps = jnp.concatenate(
                [s[dh:dh + ho].reshape(hw, c) for dh in range(3)], axis=1)
            acc = acc + jnp.dot(taps, w_ref[dw],
                                preferred_element_type=jnp.float32)
        return jnp.maximum(acc + b_ref[...], 0.0)           # BN shift + ReLU, f32

    # ---- conv1 + BN1 + ReLU --------------------------------------------------
    xp = x_ref[0]                                           # (ho+2, wo+2, cin)
    y1 = conv3x3(lambda dw: xp[:, dw:dw + wo, :], w1_ref, b1_ref)

    # ---- stage y1 in VMEM (intermediate never touches HBM) -------------------
    # Zero only the halo conv2 actually reads: two tile-aligned 16-wide column
    # bands and the two interior row strips.  Re-done every grid step (cheap)
    # rather than behind @pl.when(program_id==0), which would break under
    # "parallel" megacore semantics (core 1 never runs step 0).
    zband = jnp.zeros((ho + 2, _HALO, cout), y1pad_ref.dtype)
    y1pad_ref[:, 0:_HALO, :] = zband
    y1pad_ref[:, _HALO + wo:_HALO + wo + _HALO, :] = zband
    zrow = jnp.zeros((1, wo, cout), y1pad_ref.dtype)
    y1pad_ref[0:1, _HALO:_HALO + wo, :] = zrow
    y1pad_ref[ho + 1:ho + 2, _HALO:_HALO + wo, :] = zrow
    # Interior lands at sublane offset _HALO (a full bf16 tile): aligned store.
    y1pad_ref[1:ho + 1, _HALO:_HALO + wo, :] = (
        y1.reshape(ho, wo, cout).astype(y1pad_ref.dtype))

    # ---- conv2 + BN2 + ReLU on the staged activation -------------------------
    yp = y1pad_ref[...]                                     # (ho+2, wo+2*_HALO, cout)
    y2 = conv3x3(lambda dw: yp[:, _HALO - 1 + dw:_HALO - 1 + dw + wo, :],
                 w2_ref, b2_ref)
    o_ref[0] = y2.reshape(ho, wo, cout).astype(o_ref.dtype)


def _vmem_limit_bytes():
    """Generation-aware VMEM budget: 3/4 of physical, capped at 96 MiB
    (v5e/v6e: 128 MiB physical -> 96 MiB; v7x: 64 MiB physical -> 48 MiB)."""
    try:
        cap = int(pltpu.get_tpu_info().vmem_capacity_bytes)
    except Exception:
        cap = 64 * 1024 * 1024          # conservative fallback (v7x-safe)
    return min(96 * 1024 * 1024, (cap * 3) // 4)


def _fused_double_conv3x3(xpad, w1, b1, w2, b2, out_dtype):
    """xpad: (B, ho+2, wo+2, cin) bf16 (zero padded).  w*: (3, 3*C, cout) bf16
    folded/packed weights.  b*: (1, cout) f32 shifts.  Returns (B, ho, wo, cout)
    in out_dtype."""
    B, hp, wp, cin = xpad.shape
    ho, wo = hp - 2, wp - 2
    cout = w1.shape[-1]
    # The in-kernel (ho, wo, C) <-> (ho*wo, C) reshapes are layout-preserving
    # only when wo is a multiple of the bf16 sublane tile (16).
    assert wo % 16 == 0, f"output width {wo} must be a multiple of 16"
    # TODO(synk): lift the wo % 16 restriction (width-pad the spatial slab).

    flops = 2 * B * ho * wo * 9 * (cin + cout) * cout
    out_bytes = B * ho * wo * cout * jnp.dtype(out_dtype).itemsize
    bytes_accessed = (xpad.size * 2 + w1.size * 2 + w2.size * 2
                      + (b1.size + b2.size) * 4 + out_bytes)

    kernel = functools.partial(_decoder_block_kernel, ho=ho, wo=wo)
    return pl.pallas_call(
        kernel,
        out_shape=jax.ShapeDtypeStruct((B, ho, wo, cout), out_dtype),
        grid=(B,),                      # one image per step; the batch axis is
                                        # "parallel" so both v7x cores get work.
        in_specs=[
            pl.BlockSpec((1, hp, wp, cin), lambda b: (b, 0, 0, 0)),
            # Grid-invariant operands (constant index_map => fetched once).
            pl.BlockSpec((3, 3 * cin, cout), lambda b: (0, 0, 0)),
            pl.BlockSpec((1, cout), lambda b: (0, 0)),
            pl.BlockSpec((3, 3 * cout, cout), lambda b: (0, 0, 0)),
            pl.BlockSpec((1, cout), lambda b: (0, 0)),
        ],
        out_specs=pl.BlockSpec((1, ho, wo, cout), lambda b: (b, 0, 0, 0)),
        scratch_shapes=[
            pltpu.VMEM((ho + 2, wo + 2 * _HALO, cout), jnp.bfloat16)],
        compiler_params=pltpu.CompilerParams(
            dimension_semantics=("parallel",),
            vmem_limit_bytes=_vmem_limit_bytes()),
        cost_estimate=pl.CostEstimate(flops=flops, transcendentals=0,
                                      bytes_accessed=int(bytes_accessed)),
    )(xpad, w1, b1, w2, b2)


def _fold_bn(w, gamma, beta, mean, var):
    """Fold inference-mode BatchNorm into the preceding (bias-free) conv.

    Returns (f32 HWIO weight with the BN scale folded in, f32 per-channel shift):
        y = conv(x, w) * scale + shift,  scale = gamma / sqrt(var + eps),
        shift = beta - mean * scale.
    The bf16 cast happens only at packing time (keeps the fold in f32).
    """
    scale = gamma * jax.lax.rsqrt(var + BN_EPS)
    w_folded = w * scale[None, None, None, :]
    shift = (beta - mean * scale).astype(jnp.float32)
    return w_folded, shift


def _pack_conv_weight(w_hwio):
    """(3, 3, cin, cout) HWIO -> (3, 3*cin, cout) bf16 whose per-dw (kernel
    column) row block is ordered (dh, cin), matching the kernel's tap layout."""
    kh, kw, cin, cout = w_hwio.shape
    assert kh == 3 and kw == 3
    return (jnp.transpose(w_hwio, (1, 0, 2, 3))
            .reshape(3, 3 * cin, cout)
            .astype(jnp.bfloat16))


def decoder_block_forward(x_nchw, skip_nchw, params, out_dtype=jnp.bfloat16):
    """DecoderBlock.forward (inference): nearest-2x upsample -> optional skip
    concat -> (conv3x3 + BN + ReLU) x 2.  NCHW in / NCHW out like PyTorch.
    out_dtype defaults to bf16 (downstream decoder blocks consume bf16); pass
    jnp.float32 to match the PyTorch output dtype exactly."""
    x = jnp.transpose(x_nchw, (0, 2, 3, 1)).astype(jnp.bfloat16)     # NHWC bf16
    x = jnp.repeat(jnp.repeat(x, 2, axis=1), 2, axis=2)              # nearest x2
    if skip_nchw is not None:
        skip = jnp.transpose(skip_nchw, (0, 2, 3, 1)).astype(jnp.bfloat16)
        x = jnp.concatenate([x, skip], axis=-1)
    xpad = jnp.pad(x, ((0, 0), (1, 1), (1, 1), (0, 0)))              # 'same' halo
    # TODO(synk): fuse upsample/concat/pad into the kernel (read low-res x and
    # skip directly, split w1 per source) to remove this HBM round-trip.

    w1f, b1 = _fold_bn(params["w1"], **params["bn1"])
    w2f, b2 = _fold_bn(params["w2"], **params["bn2"])
    y = _fused_double_conv3x3(
        xpad,
        _pack_conv_weight(w1f), b1.reshape(1, -1),
        _pack_conv_weight(w2f), b2.reshape(1, -1),
        out_dtype)
    return jnp.transpose(y, (0, 3, 1, 2))                            # back to NCHW


def reference_forward(x_nchw, skip_nchw, params, out_dtype=jnp.bfloat16):
    """Pure-JAX reference (same bf16 operands / f32 accumulation / out_dtype)."""
    x = jnp.transpose(x_nchw, (0, 2, 3, 1)).astype(jnp.bfloat16)
    x = jnp.repeat(jnp.repeat(x, 2, axis=1), 2, axis=2)
    if skip_nchw is not None:
        skip = jnp.transpose(skip_nchw, (0, 2, 3, 1)).astype(jnp.bfloat16)
        x = jnp.concatenate([x, skip], axis=-1)

    def cbr(inp, w, bn):
        wf, sh = _fold_bn(w, **bn)
        y = jax.lax.conv_general_dilated(
            inp, wf.astype(jnp.bfloat16), (1, 1), "SAME",
            dimension_numbers=("NHWC", "HWIO", "NHWC"),
            preferred_element_type=jnp.float32)
        return jnp.maximum(y + sh, 0.0)

    y1 = cbr(x, params["w1"], params["bn1"]).astype(jnp.bfloat16)
    y2 = cbr(y1, params["w2"], params["bn2"]).astype(out_dtype)
    return jnp.transpose(y2, (0, 3, 1, 2))


def init_decoder_block_params(key, in_ch, skip_ch, out_ch):
    """Deterministic DecoderBlock parameters: kaiming-uniform conv weights (HWIO)
    and non-trivial BatchNorm statistics (exercises the general BN fold)."""
    kw1, kw2, kb1, kb2 = jax.random.split(key, 4)

    def conv_w(k, cin, cout):
        bound = math.sqrt(6.0 / (cin * 9))     # kaiming_uniform, fan_in mode
        return jax.random.uniform(k, (3, 3, cin, cout), jnp.float32, -bound, bound)

    def bn(k, c):
        k1, k2, k3, k4 = jax.random.split(k, 4)
        return dict(
            gamma=jax.random.uniform(k1, (c,), jnp.float32, 0.8, 1.2),
            beta=0.1 * jax.random.normal(k2, (c,), jnp.float32),
            mean=0.2 * jax.random.normal(k3, (c,), jnp.float32),
            var=jax.random.uniform(k4, (c,), jnp.float32, 0.5, 1.5),
        )

    return dict(
        w1=conv_w(kw1, in_ch + skip_ch, out_ch), bn1=bn(kb1, out_ch),
        w2=conv_w(kw2, out_ch, out_ch), bn2=bn(kb2, out_ch),
    )


if __name__ == "__main__":
    # NOTE(perf): this config (2 grid steps, ~0.15 GFLOP) is per-step-overhead
    # bound; it validates correctness, not the large-shape tuning regime.
    B, H, W = 2, 8, 8                       # low-res input; block outputs 16x16
    in_ch, skip_ch, out_ch = 64, 64, 128

    key = jax.random.PRNGKey(0)
    ks = jax.random.split(key, 6)
    x = jax.random.normal(ks[0], (B, in_ch, H, W), jnp.float32)
    skip = jax.random.normal(ks[1], (B, skip_ch, 2 * H, 2 * W), jnp.float32)
    params = init_decoder_block_params(ks[2], in_ch, skip_ch, out_ch)

    fwd = jax.jit(decoder_block_forward, static_argnames=("out_dtype",))
    ref_fn = jax.jit(reference_forward, static_argnames=("out_dtype",))

    out = jax.block_until_ready(fwd(x, skip, params))                 # bf16 out
    assert out.shape == (B, out_ch, 2 * H, 2 * W), out.shape
    assert out.dtype == jnp.bfloat16

    ref = jax.block_until_ready(ref_fn(x, skip, params))
    err = jnp.max(jnp.abs(out.astype(jnp.float32) - ref.astype(jnp.float32)))
    assert jnp.allclose(out.astype(jnp.float32), ref.astype(jnp.float32),
                        rtol=2e-2, atol=2e-2), float(err)

    # skip=None path of DecoderBlock.forward, f32 output dtype
    params_ns = init_decoder_block_params(ks[3], 128, 0, out_ch)
    x_ns = jax.random.normal(ks[4], (B, 128, H, W), jnp.float32)
    out_ns = jax.block_until_ready(
        fwd(x_ns, None, params_ns, out_dtype=jnp.float32))
    ref_ns = ref_fn(x_ns, None, params_ns, out_dtype=jnp.float32)
    assert out_ns.dtype == jnp.float32
    assert jnp.allclose(out_ns, ref_ns, rtol=2e-2, atol=2e-2), (
        float(jnp.max(jnp.abs(out_ns - ref_ns))))

    print("KERNEL_OK")
</pallas_src>

<mosaic_0001>
module attributes {stable_mosaic.version = 11 : i64} {
  func.func @_decoder_block_kernel(%arg0: i32, %arg1: memref<1x18x18x128xbf16, #tpu.memory_space<vmem>>, %arg2: memref<3x384x128xbf16, #tpu.memory_space<vmem>>, %arg3: memref<1x128xf32, #tpu.memory_space<vmem>>, %arg4: memref<3x384x128xbf16, #tpu.memory_space<vmem>>, %arg5: memref<1x128xf32, #tpu.memory_space<vmem>>, %arg6: memref<1x16x16x128xbf16, #tpu.memory_space<vmem>>, %arg7: memref<18x48x128xbf16, #tpu.memory_space<vmem>>) attributes {dimension_semantics = [#tpu.dimension_semantics<parallel>], iteration_bounds = array<i64: 2>, scalar_prefetch = 0 : i64, scratch_operands = 1 : i64, tpu.core_type = #tpu.core_type<tc>, window_params = [{transform_indices = @transform_0, window_bounds = array<i64: 1, 18, 18, 128>}, {pipeline_mode = #tpu.pipeline_mode<synchronous>, transform_indices = @transform_1, window_bounds = array<i64: 3, 384, 128>}, {pipeline_mode = #tpu.pipeline_mode<synchronous>, transform_indices = @transform_2, window_bounds = array<i64: 1, 128>}, {pipeline_mode = #tpu.pipeline_mode<synchronous>, transform_indices = @transform_3, window_bounds = array<i64: 3, 384, 128>}, {pipeline_mode = #tpu.pipeline_mode<synchronous>, transform_indices = @transform_4, window_bounds = array<i64: 1, 128>}, {transform_indices = @transform_5, window_bounds = array<i64: 1, 16, 16, 128>}]} {
    %c0 = arith.constant 0 : index
    %c0_0 = arith.constant 0 : index
    %c0_1 = arith.constant 0 : index
    %c0_2 = arith.constant 0 : index
    %0 = vector.load %arg1[%c0, %c0_0, %c0_1, %c0_2] : memref<1x18x18x128xbf16, #tpu.memory_space<vmem>>, vector<1x18x18x128xbf16>
    %1 = vector.shape_cast %0 : vector<1x18x18x128xbf16> to vector<18x18x128xbf16>
    %cst = arith.constant 0.000000e+00 : f32
    %2 = vector.broadcast %cst : f32 to vector<256x128xf32>
    %3 = vector.extract_strided_slice %1 {offsets = [0, 0, 0], sizes = [18, 16, 128], strides = [1, 1, 1]} : vector<18x18x128xbf16> to vector<18x16x128xbf16>
    %4 = vector.extract_strided_slice %3 {offsets = [0, 0, 0], sizes = [16, 16, 128], strides = [1, 1, 1]} : vector<18x16x128xbf16> to vector<16x16x128xbf16>
    %5 = vector.shape_cast %4 : vector<16x16x128xbf16> to vector<256x128xbf16>
    %6 = vector.extract_strided_slice %3 {offsets = [1, 0, 0], sizes = [16, 16, 128], strides = [1, 1, 1]} : vector<18x16x128xbf16> to vector<16x16x128xbf16>
    %7 = vector.shape_cast %6 : vector<16x16x128xbf16> to vector<256x128xbf16>
    %8 = vector.extract_strided_slice %3 {offsets = [2, 0, 0], sizes = [16, 16, 128], strides = [1, 1, 1]} : vector<18x16x128xbf16> to vector<16x16x128xbf16>
    %9 = vector.shape_cast %8 : vector<16x16x128xbf16> to vector<256x128xbf16>
    %10 = tpu.concatenate %5, %7, %9 in 1 : vector<256x128xbf16>, vector<256x128xbf16>, vector<256x128xbf16> -> vector<256x384xbf16>
    %c0_3 = arith.constant 0 : index
    %c0_4 = arith.constant 0 : index
    %c0_5 = arith.constant 0 : index
    %11 = vector.load %arg2[%c0_3, %c0_4, %c0_5] : memref<3x384x128xbf16, #tpu.memory_space<vmem>>, vector<1x384x128xbf16>
    %12 = vector.shape_cast %11 : vector<1x384x128xbf16> to vector<384x128xbf16>
    %cst_6 = arith.constant dense<0.000000e+00> : vector<256x128xf32>
    %13 = tpu.matmul %10, %12, %cst_6 {dimension_numbers = #tpu.dot_dimension_numbers<[1], [0], [0], [1], [0, 0, 1, 1], [], []>} : vector<256x384xbf16>, vector<384x128xbf16>, vector<256x128xf32> -> vector<256x128xf32>
    %14 = arith.addf %2, %13 : vector<256x128xf32>
    %15 = vector.extract_strided_slice %1 {offsets = [0, 1, 0], sizes = [18, 16, 128], strides = [1, 1, 1]} : vector<18x18x128xbf16> to vector<18x16x128xbf16>
    %16 = vector.extract_strided_slice %15 {offsets = [0, 0, 0], sizes = [16, 16, 128], strides = [1, 1, 1]} : vector<18x16x128xbf16> to vector<16x16x128xbf16>
    %17 = vector.shape_cast %16 : vector<16x16x128xbf16> to vector<256x128xbf16>
    %18 = vector.extract_strided_slice %15 {offsets = [1, 0, 0], sizes = [16, 16, 128], strides = [1, 1, 1]} : vector<18x16x128xbf16> to vector<16x16x128xbf16>
    %19 = vector.shape_cast %18 : vector<16x16x128xbf16> to vector<256x128xbf16>
    %20 = vector.extract_strided_slice %15 {offsets = [2, 0, 0], sizes = [16, 16, 128], strides = [1, 1, 1]} : vector<18x16x128xbf16> to vector<16x16x128xbf16>
    %21 = vector.shape_cast %20 : vector<16x16x128xbf16> to vector<256x128xbf16>
    %22 = tpu.concatenate %17, %19, %21 in 1 : vector<256x128xbf16>, vector<256x128xbf16>, vector<256x128xbf16> -> vector<256x384xbf16>
    %c1 = arith.constant 1 : index
    %c0_7 = arith.constant 0 : index
    %c0_8 = arith.constant 0 : index
    %23 = vector.load %arg2[%c1, %c0_7, %c0_8] : memref<3x384x128xbf16, #tpu.memory_space<vmem>>, vector<1x384x128xbf16>
    %24 = vector.shape_cast %23 : vector<1x384x128xbf16> to vector<384x128xbf16>
    %cst_9 = arith.constant dense<0.000000e+00> : vector<256x128xf32>
    %25 = tpu.matmul %22, %24, %cst_9 {dimension_numbers = #tpu.dot_dimension_numbers<[1], [0], [0], [1], [0, 0, 1, 1], [], []>} : vector<256x384xbf16>, vector<384x128xbf16>, vector<256x128xf32> -> vector<256x128xf32>
    %26 = arith.addf %14, %25 : vector<256x128xf32>
    %27 = vector.extract_strided_slice %1 {offsets = [0, 2, 0], sizes = [18, 16, 128], strides = [1, 1, 1]} : vector<18x18x128xbf16> to vector<18x16x128xbf16>
    %28 = vector.extract_strided_slice %27 {offsets = [0, 0, 0], sizes = [16, 16, 128], strides = [1, 1, 1]} : vector<18x16x128xbf16> to vector<16x16x128xbf16>
    %29 = vector.shape_cast %28 : vector<16x16x128xbf16> to vector<256x128xbf16>
    %30 = vector.extract_strided_slice %27 {offsets = [1, 0, 0], sizes = [16, 16, 128], strides = [1, 1, 1]} : vector<18x16x128xbf16> to vector<16x16x128xbf16>
    %31 = vector.shape_cast %30 : vector<16x16x128xbf16> to vector<256x128xbf16>
    %32 = vector.extract_strided_slice %27 {offsets = [2, 0, 0], sizes = [16, 16, 128], strides = [1, 1, 1]} : vector<18x16x128xbf16> to vector<16x16x128xbf16>
    %33 = vector.shape_cast %32 : vector<16x16x128xbf16> to vector<256x128xbf16>
    %34 = tpu.concatenate %29, %31, %33 in 1 : vector<256x128xbf16>, vector<256x128xbf16>, vector<256x128xbf16> -> vector<256x384xbf16>
    %c2 = arith.constant 2 : index
    %c0_10 = arith.constant 0 : index
    %c0_11 = arith.constant 0 : index
    %35 = vector.load %arg2[%c2, %c0_10, %c0_11] : memref<3x384x128xbf16, #tpu.memory_space<vmem>>, vector<1x384x128xbf16>
    %36 = vector.shape_cast %35 : vector<1x384x128xbf16> to vector<384x128xbf16>
    %cst_12 = arith.constant dense<0.000000e+00> : vector<256x128xf32>
    %37 = tpu.matmul %34, %36, %cst_12 {dimension_numbers = #tpu.dot_dimension_numbers<[1], [0], [0], [1], [0, 0, 1, 1], [], []>} : vector<256x384xbf16>, vector<384x128xbf16>, vector<256x128xf32> -> vector<256x128xf32>
    %38 = arith.addf %26, %37 : vector<256x128xf32>
    %c0_13 = arith.constant 0 : index
    %c0_14 = arith.constant 0 : index
    %39 = vector.load %arg3[%c0_13, %c0_14] : memref<1x128xf32, #tpu.memory_space<vmem>>, vector<1x128xf32>
    %40 = vector.broadcast %39 : vector<1x128xf32> to vector<256x128xf32>
    %41 = arith.addf %38, %40 : vector<256x128xf32>
    %cst_15 = arith.constant 0.000000e+00 : f32
    %42 = vector.broadcast %cst_15 : f32 to vector<256x128xf32>
    %43 = arith.maximumf %41, %42 : vector<256x128xf32>
    %cst_16 = arith.constant 0.000000e+00 : bf16
    %44 = vector.broadcast %cst_16 : bf16 to vector<18x16x128xbf16>
    %c0_17 = arith.constant 0 : index
    %c0_18 = arith.constant 0 : index
    %c0_19 = arith.constant 0 : index
    %45 = vector.load %arg7[%c0_17, %c0_18, %c0_19] : memref<18x48x128xbf16, #tpu.memory_space<vmem>>, vector<18x16x128xbf16>
    tpu.vector_store %arg7[%c0_17, %c0_18, %c0_19], %44 {strides = array<i32>} : memref<18x48x128xbf16, #tpu.memory_space<vmem>>, vector<18x16x128xbf16>,
    %c0_20 = arith.constant 0 : index
    %c32 = arith.constant 32 : index
    %c0_21 = arith.constant 0 : index
    %46 = vector.load %arg7[%c0_20, %c32, %c0_21] : memref<18x48x128xbf16, #tpu.memory_space<vmem>>, vector<18x16x128xbf16>
    tpu.vector_store %arg7[%c0_20, %c32, %c0_21], %44 {strides = array<i32>} : memref<18x48x128xbf16, #tpu.memory_space<vmem>>, vector<18x16x128xbf16>,
    %cst_22 = arith.constant 0.000000e+00 : bf16
    %47 = vector.broadcast %cst_22 : bf16 to vector<1x16x128xbf16>
    %c0_23 = arith.constant 0 : index
    %c16 = arith.constant 16 : index
    %c0_24 = arith.constant 0 : index
    %48 = vector.load %arg7[%c0_23, %c16, %c0_24] : memref<18x48x128xbf16, #tpu.memory_space<vmem>>, vector<1x16x128xbf16>
    tpu.vector_store %arg7[%c0_23, %c16, %c0_24], %47 {strides = array<i32>} : memref<18x48x128xbf16, #tpu.memory_space<vmem>>, vector<1x16x128xbf16>,
    %c17 = arith.constant 17 : index
    %c16_25 = arith.constant 16 : index
    %c0_26 = arith.constant 0 : index
    %49 = vector.load %arg7[%c17, %c16_25, %c0_26] : memref<18x48x128xbf16, #tpu.memory_space<vmem>>, vector<1x16x128xbf16>
    tpu.vector_store %arg7[%c17, %c16_25, %c0_26], %47 {strides = array<i32>} : memref<18x48x128xbf16, #tpu.memory_space<vmem>>, vector<1x16x128xbf16>,
    %50 = vector.shape_cast %43 : vector<256x128xf32> to vector<16x16x128xf32>
    %51 = arith.truncf %50 : vector<16x16x128xf32> to vector<16x16x128xbf16>
    %c1_27 = arith.constant 1 : index
    %c16_28 = arith.constant 16 : index
    %c0_29 = arith.constant 0 : index
    %52 = vector.load %arg7[%c1_27, %c16_28, %c0_29] : memref<18x48x128xbf16, #tpu.memory_space<vmem>>, vector<16x16x128xbf16>
    tpu.vector_store %arg7[%c1_27, %c16_28, %c0_29], %51 {strides = array<i32>} : memref<18x48x128xbf16, #tpu.memory_space<vmem>>, vector<16x16x128xbf16>,
    %c0_30 = arith.constant 0 : index
    %c0_31 = arith.constant 0 : index
    %c0_32 = arith.constant 0 : index
    %53 = vector.load %arg7[%c0_30, %c0_31, %c0_32] : memref<18x48x128xbf16, #tpu.memory_space<vmem>>, vector<18x48x128xbf16>
    %cst_33 = arith.constant 0.000000e+00 : f32
    %54 = vector.broadcast %cst_33 : f32 to vector<256x128xf32>
    %55 = vector.extract_strided_slice %53 {offsets = [0, 15, 0], sizes = [18, 16, 128], strides = [1, 1, 1]} : vector<18x48x128xbf16> to vector<18x16x128xbf16>
    %56 = vector.extract_strided_slice %55 {offsets = [0, 0, 0], sizes = [16, 16, 128], strides = [1, 1, 1]} : vector<18x16x128xbf16> to vector<16x16x128xbf16>
    %57 = vector.shape_cast %56 : vector<16x16x128xbf16> to vector<256x128xbf16>
    %58 = vector.extract_strided_slice %55 {offsets = [1, 0, 0], sizes = [16, 16, 128], strides = [1, 1, 1]} : vector<18x16x128xbf16> to vector<16x16x128xbf16>
    %59 = vector.shape_cast %58 : vector<16x16x128xbf16> to vector<256x128xbf16>
    %60 = vector.extract_strided_slice %55 {offsets = [2, 0, 0], sizes = [16, 16, 128], strides = [1, 1, 1]} : vector<18x16x128xbf16> to vector<16x16x128xbf16>
    %61 = vector.shape_cast %60 : vector<16x16x128xbf16> to vector<256x128xbf16>
    %62 = tpu.concatenate %57, %59, %61 in 1 : vector<256x128xbf16>, vector<256x128xbf16>, vector<256x128xbf16> -> vector<256x384xbf16>
    %c0_34 = arith.constant 0 : index
    %c0_35 = arith.constant 0 : index
    %c0_36 = arith.constant 0 : index
    %63 = vector.load %arg4[%c0_34, %c0_35, %c0_36] : memref<3x384x128xbf16, #tpu.memory_space<vmem>>, vector<1x384x128xbf16>
    %64 = vector.shape_cast %63 : vector<1x384x128xbf16> to vector<384x128xbf16>
    %cst_37 = arith.constant dense<0.000000e+00> : vector<256x128xf32>
    %65 = tpu.matmul %62, %64, %cst_37 {dimension_numbers = #tpu.dot_dimension_numbers<[1], [0], [0], [1], [0, 0, 1, 1], [], []>} : vector<256x384xbf16>, vector<384x128xbf16>, vector<256x128xf32> -> vector<256x128xf32>
    %66 = arith.addf %54, %65 : vector<256x128xf32>
    %67 = vector.extract_strided_slice %53 {offsets = [0, 16, 0], sizes = [18, 16, 128], strides = [1, 1, 1]} : vector<18x48x128xbf16> to vector<18x16x128xbf16>
    %68 = vector.extract_strided_slice %67 {offsets = [0, 0, 0], sizes = [16, 16, 128], strides = [1, 1, 1]} : vector<18x16x128xbf16> to vector<16x16x128xbf16>
    %69 = vector.shape_cast %68 : vector<16x16x128xbf16> to vector<256x128xbf16>
    %70 = vector.extract_strided_slice %67 {offsets = [1, 0, 0], sizes = [16, 16, 128], strides = [1, 1, 1]} : vector<18x16x128xbf16> to vector<16x16x128xbf16>
    %71 = vector.shape_cast %70 : vector<16x16x128xbf16> to vector<256x128xbf16>
    %72 = vector.extract_strided_slice %67 {offsets = [2, 0, 0], sizes = [16, 16, 128], strides = [1, 1, 1]} : vector<18x16x128xbf16> to vector<16x16x128xbf16>
    %73 = vector.shape_cast %72 : vector<16x16x128xbf16> to vector<256x128xbf16>
    %74 = tpu.concatenate %69, %71, %73 in 1 : vector<256x128xbf16>, vector<256x128xbf16>, vector<256x128xbf16> -> vector<256x384xbf16>
    %c1_38 = arith.constant 1 : index
    %c0_39 = arith.constant 0 : index
    %c0_40 = arith.constant 0 : index
    %75 = vector.load %arg4[%c1_38, %c0_39, %c0_40] : memref<3x384x128xbf16, #tpu.memory_space<vmem>>, vector<1x384x128xbf16>
    %76 = vector.shape_cast %75 : vector<1x384x128xbf16> to vector<384x128xbf16>
    %cst_41 = arith.constant dense<0.000000e+00> : vector<256x128xf32>
    %77 = tpu.matmul %74, %76, %cst_41 {dimension_numbers = #tpu.dot_dimension_numbers<[1], [0], [0], [1], [0, 0, 1, 1], [], []>} : vector<256x384xbf16>, vector<384x128xbf16>, vector<256x128xf32> -> vector<256x128xf32>
    %78 = arith.addf %66, %77 : vector<256x128xf32>
    %79 = vector.extract_strided_slice %53 {offsets = [0, 17, 0], sizes = [18, 16, 128], strides = [1, 1, 1]} : vector<18x48x128xbf16> to vector<18x16x128xbf16>
    %80 = vector.extract_strided_slice %79 {offsets = [0, 0, 0], sizes = [16, 16, 128], strides = [1, 1, 1]} : vector<18x16x128xbf16> to vector<16x16x128xbf16>
    %81 = vector.shape_cast %80 : vector<16x16x128xbf16> to vector<256x128xbf16>
    %82 = vector.extract_strided_slice %79 {offsets = [1, 0, 0], sizes = [16, 16, 128], strides = [1, 1, 1]} : vector<18x16x128xbf16> to vector<16x16x128xbf16>
    %83 = vector.shape_cast %82 : vector<16x16x128xbf16> to vector<256x128xbf16>
    %84 = vector.extract_strided_slice %79 {offsets = [2, 0, 0], sizes = [16, 16, 128], strides = [1, 1, 1]} : vector<18x16x128xbf16> to vector<16x16x128xbf16>
    %85 = vector.shape_cast %84 : vector<16x16x128xbf16> to vector<256x128xbf16>
    %86 = tpu.concatenate %81, %83, %85 in 1 : vector<256x128xbf16>, vector<256x128xbf16>, vector<256x128xbf16> -> vector<256x384xbf16>
    %c2_42 = arith.constant 2 : index
    %c0_43 = arith.constant 0 : index
    %c0_44 = arith.constant 0 : index
    %87 = vector.load %arg4[%c2_42, %c0_43, %c0_44] : memref<3x384x128xbf16, #tpu.memory_space<vmem>>, vector<1x384x128xbf16>
    %88 = vector.shape_cast %87 : vector<1x384x128xbf16> to vector<384x128xbf16>
    %cst_45 = arith.constant dense<0.000000e+00> : vector<256x128xf32>
    %89 = tpu.matmul %86, %88, %cst_45 {dimension_numbers = #tpu.dot_dimension_numbers<[1], [0], [0], [1], [0, 0, 1, 1], [], []>} : vector<256x384xbf16>, vector<384x128xbf16>, vector<256x128xf32> -> vector<256x128xf32>
    %90 = arith.addf %78, %89 : vector<256x128xf32>
    %c0_46 = arith.constant 0 : index
    %c0_47 = arith.constant 0 : index
    %91 = vector.load %arg5[%c0_46, %c0_47] : memref<1x128xf32, #tpu.memory_space<vmem>>, vector<1x128xf32>
    %92 = vector.broadcast %91 : vector<1x128xf32> to vector<256x128xf32>
    %93 = arith.addf %90, %92 : vector<256x128xf32>
    %cst_48 = arith.constant 0.000000e+00 : f32
    %94 = vector.broadcast %cst_48 : f32 to vector<256x128xf32>
    %95 = arith.maximumf %93, %94 : vector<256x128xf32>
    %96 = vector.shape_cast %95 : vector<256x128xf32> to vector<16x16x128xf32>
    %97 = arith.truncf %96 : vector<16x16x128xf32> to vector<16x16x128xbf16>
    %c0_49 = arith.constant 0 : index
    %c0_50 = arith.constant 0 : index
    %c0_51 = arith.constant 0 : index
    %c0_52 = arith.constant 0 : index
    %98 = vector.load %arg6[%c0_49, %c0_50, %c0_51, %c0_52] : memref<1x16x16x128xbf16, #tpu.memory_space<vmem>>, vector<1x16x16x128xbf16>
    %99 = vector.shape_cast %98 : vector<1x16x16x128xbf16> to vector<16x16x128xbf16>
    %100 = vector.shape_cast %97 : vector<16x16x128xbf16> to vector<1x16x16x128xbf16>
    tpu.vector_store %arg6[%c0_49, %c0_50, %c0_51, %c0_52], %100 {strides = array<i32>} : memref<1x16x16x128xbf16, #tpu.memory_space<vmem>>, vector<1x16x16x128xbf16>,
    return
  }
  func.func @transform_0(%arg0: i32) -> (i32, i32, i32, i32) {
    %c0_i32 = arith.constant 0 : i32
    %c0_i32_0 = arith.constant 0 : i32
    %c0_i32_1 = arith.constant 0 : i32
    %c0_i32_2 = arith.constant 0 : i32
    return %arg0, %c0_i32, %c0_i32_0, %c0_i32_1 : i32, i32, i32, i32
  }
  func.func @transform_1(%arg0: i32) -> (i32, i32, i32) {
    %c0_i32 = arith.constant 0 : i32
    %c0_i32_0 = arith.constant 0 : i32
    %c0_i32_1 = arith.constant 0 : i32
    %c0_i32_2 = arith.constant 0 : i32
    return %c0_i32, %c0_i32_0, %c0_i32_1 : i32, i32, i32
  }
  func.func @transform_2(%arg0: i32) -> (i32, i32) {
    %c0_i32 = arith.constant 0 : i32
    %c0_i32_0 = arith.constant 0 : i32
    %c0_i32_1 = arith.constant 0 : i32
    return %c0_i32, %c0_i32_0 : i32, i32
  }
  func.func @transform_3(%arg0: i32) -> (i32, i32, i32) {
    %c0_i32 = arith.constant 0 : i32
    %c0_i32_0 = arith.constant 0 : i32
    %c0_i32_1 = arith.constant 0 : i32
    %c0_i32_2 = arith.constant 0 : i32
    return %c0_i32, %c0_i32_0, %c0_i32_1 : i32, i32, i32
  }
  func.func @transform_4(%arg0: i32) -> (i32, i32) {
    %c0_i32 = arith.constant 0 : i32
    %c0_i32_0 = arith.constant 0 : i32
    %c0_i32_1 = arith.constant 0 : i32
    return %c0_i32, %c0_i32_0 : i32, i32
  }
  func.func @transform_5(%arg0: i32) -> (i32, i32, i32, i32) {
    %c0_i32 = arith.constant 0 : i32
    %c0_i32_0 = arith.constant 0 : i32
    %c0_i32_1 = arith.constant 0 : i32
    %c0_i32_2 = arith.constant 0 : i32
    return %arg0, %c0_i32, %c0_i32_0, %c0_i32_1 : i32, i32, i32, i32
  }
}

</mosaic_0001>

<llo_original>
// kernel: decoder_block_forward.1
$region0: #{decoder_block_forward.1}
  #allocation0 [shape = 'u32[]', space=smem, size = 0x4, offset = 0x4, fixed_abs, tag = 'smem constant byte address 0x4 - core index']
  #allocation1 [shape = 'u32[144,128]{1,0:T(1,128)}', space=vmem, size = 0x12000, scoped, tag = 'internal scratch']
  #allocation2 [shape = 'bf16[18,48,128]{2,1,0:T(16,128)(2,1)}', space=vmem, size = 0x36000, scoped, tag = 'scratch operand']
  %s0 = inlined_call_operand.vmem [shape: bf16[2,18,18,128], index: 0, kind: input, shape index: {}]
  %s1 = inlined_call_operand.vmem [shape: bf16[3,384,128], index: 1, kind: input, shape index: {}]
  %s2 = inlined_call_operand.vmem [shape: f32[1,128], index: 2, kind: input, shape index: {}]
  %s3 = inlined_call_operand.vmem [shape: bf16[3,384,128], index: 3, kind: input, shape index: {}]
  %s4 = inlined_call_operand.vmem [shape: f32[1,128], index: 4, kind: input, shape index: {}]
  %s5 = inlined_call_operand.hbm [shape: bf16[2,16,16,128], index: 5, kind: output, shape index: {}]
  %s6 = sld [smem:[#allocation0]]
  $region53: #{decoder_block_forward.1} parent=0
    _
  %s8 = ssub.s32 1, %s6
  %s9 = scalar_select 0, %s8, %s6
  $region1: #{decoder_block_forward.1} parent=0
    #allocation3 [shape = 'u8[131072]{0}', space=vmem, size = 0x20000, scoped, tag = 'output window, operand 0']
    #allocation4 [shape = 's32[2]{0}', space=sflag, size = 0x8, scoped, tag = 'scoped memory for decoder_block_forward.1']
    %10 = vsyncpa [#allocation4], 0
    %s11 = scalar_lea.sflag [#allocation4], 1
    %12 = vsyncpa %s11, 0
    loop: start=0, step=1, limit=4
    $region2: #{decoder_block_forward.1} parent=1 // loop_pre_header
      _
    $region3: #{decoder_block_forward.1} parent=1 // loop_header
      %s14 = sphi 0, %s18
      %p15 = scmp.ge.s32.totalorder %s14, 4
      %s24 = sphi 0, %s26
      %s27 = sphi 0, %s24
      %s28 = sphi 0, %s27
      %s44 = sphi 0, %s28
      %s48 = sphi 0, %s48
      %s50 = sphi 0, %s48
      %s51 = sphi 0, %s50
      %s65 = sphi 0, %s51
      %s69 = sphi 0, %s69
      %s71 = sphi 0, %s69
      %s72 = sphi 0, %s71
      %s86 = sphi 0, %s72
      %s90 = sphi 0, %s90
      %s92 = sphi 0, %s90
      %s93 = sphi 0, %s92
      %s107 = sphi 0, %s93
      %s111 = sphi 0, %s111
      %s113 = sphi 0, %s111
      %s114 = sphi 0, %s113
      %s128 = sphi 0, %s114
      %s134 = sphi 0, %s136
      %s137 = sphi 0, %s134
      %s138 = sphi 0, %s137
      %s154 = sphi 0, %s138
    $region4: #{decoder_block_forward.1} parent=1 // loop_header_branch
      %17 = sbr.rel (%p15) target = $region8
    $region5: #{decoder_block_forward.1} parent=1 // loop_body
      %s19 = ssub.s32 %s14, 1
      %s20 = ssub.s32 %s14, 2
      %s21 = sadd.s32 %s14, 1
      %s22 = ssub.s32 %s14, %s21
      %p23 = scmp.eq.s32.totalorder %s22, 0
      %s25 = sadd.s32 %s24, 1
      %s26 = scalar_select %p23, %s24, %s25
      %p29 = pneg %p23
      %p30 = scmp.eq.s32.totalorder %s14, 1
      %p31 = por %p29, %p30
      %p32 = scmp.ne.s32.totalorder %s24, %s27
      %p33 = scmp.eq.s32.totalorder %s14, 0
      %p34 = por %p32, %p33
      %p35 = scmp.ne.s32.totalorder %s24, %s27
      %p36 = scmp.eq.s32.totalorder %s19, 1
      %p37 = por %p35, %p36
      %p38 = scmp.ne.s32.totalorder %s27, %s28
      %p39 = scmp.eq.s32.totalorder %s19, 0
      %p40 = por %p38, %p39
      %p41 = scmp.ne.s32.totalorder %s27, %s28
      %p42 = scmp.eq.s32.totalorder %s20, 1
      %p43 = por %p41, %p42
      %p45 = scmp.ne.s32.totalorder %s28, %s44
      %p46 = scmp.eq.s32.totalorder %s20, 0
      %p47 = por %p45, %p46
      %s49 = sadd.s32 %s48, 1
      %p52 = scmp.eq.s32.totalorder %s14, 1
      %p53 = scmp.ne.s32.totalorder %s48, %s50
      %p54 = scmp.eq.s32.totalorder %s14, 0
      %p55 = por %p53, %p54
      %p56 = scmp.ne.s32.totalorder %s48, %s50
      %p57 = scmp.eq.s32.totalorder %s19, 1
      %p58 = por %p56, %p57
      %p59 = scmp.ne.s32.totalorder %s50, %s51
      %p60 = scmp.eq.s32.totalorder %s19, 0
      %p61 = por %p59, %p60
      %p62 = scmp.ne.s32.totalorder %s50, %s51
      %p63 = scmp.eq.s32.totalorder %s20, 1
      %p64 = por %p62, %p63
      %p66 = scmp.ne.s32.totalorder %s51, %s65
      %p67 = scmp.eq.s32.totalorder %s20, 0
      %p68 = por %p66, %p67
      %s70 = sadd.s32 %s69, 1
      %p73 = scmp.eq.s32.totalorder %s14, 1
      %p74 = scmp.ne.s32.totalorder %s69, %s71
      %p75 = scmp.eq.s32.totalorder %s14, 0
      %p76 = por %p74, %p75
      %p77 = scmp.ne.s32.totalorder %s69, %s71
      %p78 = scmp.eq.s32.totalorder %s19, 1
      %p79 = por %p77, %p78
      %p80 = scmp.ne.s32.totalorder %s71, %s72
      %p81 = scmp.eq.s32.totalorder %s19, 0
      %p82 = por %p80, %p81
      %p83 = scmp.ne.s32.totalorder %s71, %s72
      %p84 = scmp.eq.s32.totalorder %s20, 1
      %p85 = por %p83, %p84
      %p87 = scmp.ne.s32.totalorder %s72, %s86
      %p88 = scmp.eq.s32.totalorder %s20, 0
      %p89 = por %p87, %p88
      %s91 = sadd.s32 %s90, 1
      %p94 = scmp.eq.s32.totalorder %s14, 1
      %p95 = scmp.ne.s32.totalorder %s90, %s92
      %p96 = scmp.eq.s32.totalorder %s14, 0
      %p97 = por %p95, %p96
      %p98 = scmp.ne.s32.totalorder %s90, %s92
      %p99 = scmp.eq.s32.totalorder %s19, 1
      %p100 = por %p98, %p99
      %p101 = scmp.ne.s32.totalorder %s92, %s93
      %p102 = scmp.eq.s32.totalorder %s19, 0
      %p103 = por %p101, %p102
      %p104 = scmp.ne.s32.totalorder %s92, %s93
      %p105 = scmp.eq.s32.totalorder %s20, 1
      %p106 = por %p104, %p105
      %p108 = scmp.ne.s32.totalorder %s93, %s107
      %p109 = scmp.eq.s32.totalorder %s20, 0
      %p110 = por %p108, %p109
      %s112 = sadd.s32 %s111, 1
      %p115 = scmp.eq.s32.totalorder %s14, 1
      %p116 = scmp.ne.s32.totalorder %s111, %s113
      %p117 = scmp.eq.s32.totalorder %s14, 0
      %p118 = por %p116, %p117
      %p119 = scmp.ne.s32.totalorder %s111, %s113
      %p120 = scmp.eq.s32.totalorder %s19, 1
      %p121 = por %p119, %p120
      %p122 = scmp.ne.s32.totalorder %s113, %s114
      %p123 = scmp.eq.s32.totalorder %s19, 0
      %p124 = por %p122, %p123
      %p125 = scmp.ne.s32.totalorder %s113, %s114
      %p126 = scmp.eq.s32.totalorder %s20, 1
      %p127 = por %p125, %p126
      %p129 = scmp.ne.s32.totalorder %s114, %s128
      %p130 = scmp.eq.s32.totalorder %s20, 0
      %p131 = por %p129, %p130
      %s132 = ssub.s32 %s14, %s21
      %p133 = scmp.eq.s32.totalorder %s132, 0
      %s135 = sadd.s32 %s134, 1
      %s136 = scalar_select %p133, %s134, %s135
      %p139 = pneg %p133
      %p140 = scmp.eq.s32.totalorder %s14, 1
      %p141 = por %p139, %p140
      %p142 = scmp.ne.s32.totalorder %s134, %s137
      %p143 = scmp.eq.s32.totalorder %s14, 0
      %p144 = por %p142, %p143
      %p145 = scmp.ne.s32.totalorder %s134, %s137
      %p146 = scmp.eq.s32.totalorder %s19, 1
      %p147 = por %p145, %p146
      %p148 = scmp.ne.s32.totalorder %s137, %s138
      %p149 = scmp.eq.s32.totalorder %s19, 0
      %p150 = por %p148, %p149
      %p151 = scmp.ne.s32.totalorder %s137, %s138
      %p152 = scmp.eq.s32.totalorder %s20, 1
      %p153 = por %p151, %p152
      %p155 = scmp.ne.s32.totalorder %s138, %s154
      %p156 = scmp.eq.s32.totalorder %s20, 0
      %p157 = por %p155, %p156
      %p158 = scmp.le.s32.totalorder 1, %s14
      %p159 = scmp.lt.s32.totalorder %s14, 3
      %p160 = pnand %p158, %p159
      %p161 = pneg %p160
      // Predicated region
      $region9: #{decoder_block_forward.1} parent=5 // pred_check
        _
      $region10: #{decoder_block_forward.1} parent=5 // pred_check_branch
        %163 = sbr.rel (%p160) target = $region12
      $region11: #{decoder_block_forward.1} parent=5 // pred_region
        %s164 = ssub.s32 %s14, 1
        // Predicated region
        $region13: #{decoder_block_forward.1} parent=11 // pred_check
          %p165 = pneg %p61
        $region14: #{decoder_block_forward.1} parent=11 // pred_check_branch
          %167 = sbr.rel (%p165) target = $region16
        $region15: #{decoder_block_forward.1} parent=11 // pred_region
          _
        $region16: #{decoder_block_forward.1} parent=11 // pred_fallthru
          _
        // Predicated region
        $region17: #{decoder_block_forward.1} parent=11 // pred_check
          %p168 = pneg %p82
        $region18: #{decoder_block_forward.1} parent=11 // pred_check_branch
          %170 = sbr.rel (%p168) target = $region20
        $region19: #{decoder_block_forward.1} parent=11 // pred_region
          _
        $region20: #{decoder_block_forward.1} parent=11 // pred_fallthru
          _
        // Predicated region
        $region21: #{decoder_block_forward.1} parent=11 // pred_check
          %p171 = pneg %p103
        $region22: #{decoder_block_forward.1} parent=11 // pred_check_branch
          %173 = sbr.rel (%p171) target = $region24
        $region23: #{decoder_block_forward.1} parent=11 // pred_region
          _
        $region24: #{decoder_block_forward.1} parent=11 // pred_fallthru
          _
        // Predicated region
        $region25: #{decoder_block_forward.1} parent=11 // pred_check
          %p174 = pneg %p124
        $region26: #{decoder_block_forward.1} parent=11 // pred_check_branch
          %176 = sbr.rel (%p174) target = $region28
        $region27: #{decoder_block_forward.1} parent=11 // pred_region
          _
        $region28: #{decoder_block_forward.1} parent=11 // pred_fallthru
          _
      $region12: #{decoder_block_forward.1} parent=5 // pred_fallthru
        _
      %p177 = scmp.lt.s32.totalorder %s14, 2
      // Predicated region
      $region29: #{decoder_block_forward.1} parent=5 // pred_check
        %p178 = pneg %p177
      $region30: #{decoder_block_forward.1} parent=5 // pred_check_branch
        %180 = sbr.rel (%p178) target = $region32
      $region31: #{decoder_block_forward.1} parent=5 // pred_region
        // Predicated region
        $region33: #{decoder_block_forward.1} parent=31 // pred_check
          %p181 = pneg %p34
        $region34: #{decoder_block_forward.1} parent=31 // pred_check_branch
          %183 = sbr.rel (%p181) target = $region36
        $region35: #{decoder_block_forward.1} parent=31 // pred_region
          %p184 = scmp.lt.s32.totalorder %s14, 1
          %s185 = scalar_select %p184, %s14, 1
          %s186 = smul.addr %s185, 54
          %s187 = smul.addr %s186, 4
          %s188 = scalar_lea.vmem %s0, %s187
        $region36: #{decoder_block_forward.1} parent=31 // pred_fallthru
          _
      $region32: #{decoder_block_forward.1} parent=5 // pred_fallthru
        _
      %p189 = scmp.le.s32.totalorder 1, %s14
      %p190 = scmp.lt.s32.totalorder %s14, 3
      %p191 = pnand %p189, %p190
      %p192 = pneg %p191
      // Predicated region
      $region37: #{decoder_block_forward.1} parent=5 // pred_check
        _
      $region38: #{decoder_block_forward.1} parent=5 // pred_check_branch
        %194 = sbr.rel (%p191) target = $region40
      $region39: #{decoder_block_forward.1} parent=5 // pred_region
        %s195 = ssub.s32 %s14, 1
        %p196 = scmp.lt.s32.totalorder %s19, 1
        %s197 = scalar_select %p196, %s19, 1
        %s198 = smul.addr %s197, 54
        %s199 = smul.addr %s198, 4
        %s200 = scalar_lea.vmem %s0, %s199
        %p201 = pneg %p40
        %p202 = pneg %p37
        %p203 = pneg %p61
        %p204 = pneg %p58
        %p205 = pneg %p82
        %p206 = pneg %p79
        %p207 = pneg %p103
        %p208 = pneg %p100
        %p209 = pneg %p124
        %p210 = pneg %p121
        %p211 = pneg %p150
        %p212 = pneg %p147
        %s213 = sand.u32 %s137, 1
        %s214 = scalar_lea.sflag [#allocation4], %s213
        %s215 = sand.u32 %s137, 1
        %s216 = smul.addr %s215, 128
        %s217 = scalar_lea.vmem [#allocation3], %s216
        %p218 = scmp.lt.s32.totalorder %s19, 1
        %s219 = scalar_select %p218, %s19, 1
        %s220 = smul.addr %s219, 54
        %s221 = smul.addr %s220, 4
        %s222 = scalar_lea.vmem %s0, %s221
        %v224 = vld [vmem:[%s222] sm:$0xf]
        %v225 = vld [vmem:[%s222 + $0x4] sm:$0xf]
        %v226 = vld [vmem:[%s222 + $0x8] sm:$0x1]
        %v227 = vld [vmem:[%s222 + $0xc] sm:$0xf]
        %v228 = vld [vmem:[%s222 + $0x10] sm:$0xf]
        %v229 = vld [vmem:[%s222 + $0x14] sm:$0x1]
        %v230 = vld [vmem:[%s222 + $0x18] sm:$0xf]
        %v231 = vld [vmem:[%s222 + $0x1c] sm:$0xf]
        %v232 = vld [vmem:[%s222 + $0x20] sm:$0x1]
        %v233 = vld [vmem:[%s222 + $0x24] sm:$0xf]
        %v234 = vld [vmem:[%s222 + $0x28] sm:$0xf]
        %v235 = vld [vmem:[%s222 + $0x2c] sm:$0x1]
        %v236 = vld [vmem:[%s222 + $0x30] sm:$0xf]
        %v237 = vld [vmem:[%s222 + $0x34] sm:$0xf]
        %v238 = vld [vmem:[%s222 + $0x38] sm:$0x1]
        %v239 = vld [vmem:[%s222 + $0x3c] sm:$0xf]
        %v240 = vld [vmem:[%s222 + $0x40] sm:$0xf]
        %v241 = vld [vmem:[%s222 + $0x44] sm:$0x1]
        %v242 = vld [vmem:[%s222 + $0x48] sm:$0xf]
        %v243 = vld [vmem:[%s222 + $0x4c] sm:$0xf]
        %v244 = vld [vmem:[%s222 + $0x50] sm:$0x1]
        %v245 = vld [vmem:[%s222 + $0x54] sm:$0xf]
        %v246 = vld [vmem:[%s222 + $0x58] sm:$0xf]
        %v247 = vld [vmem:[%s222 + $0x5c] sm:$0x1]
        %v248 = vld [vmem:[%s222 + $0x60] sm:$0xf]
        %v249 = vld [vmem:[%s222 + $0x64] sm:$0xf]
        %v250 = vld [vmem:[%s222 + $0x68] sm:$0x1]
        %v251 = vld [vmem:[%s222 + $0x6c] sm:$0xf]
        %v252 = vld [vmem:[%s222 + $0x70] sm:$0xf]
        %v253 = vld [vmem:[%s222 + $0x74] sm:$0x1]
        %v254 = vld [vmem:[%s222 + $0x78] sm:$0xf]
        %v255 = vld [vmem:[%s222 + $0x7c] sm:$0xf]
        %v256 = vld [vmem:[%s222 + $0x80] sm:$0x1]
        %v257 = vld [vmem:[%s222 + $0x84] sm:$0xf]
        %v258 = vld [vmem:[%s222 + $0x88] sm:$0xf]
        %v259 = vld [vmem:[%s222 + $0x8c] sm:$0x1]
        %v260 = vld [vmem:[%s222 + $0x90] sm:$0xf]
        %v261 = vld [vmem:[%s222 + $0x94] sm:$0xf]
        %v262 = vld [vmem:[%s222 + $0x98] sm:$0x1]
        %v263 = vld [vmem:[%s222 + $0x9c] sm:$0xf]
        %v264 = vld [vmem:[%s222 + $0xa0] sm:$0xf]
        %v265 = vld [vmem:[%s222 + $0xa4] sm:$0x1]
        %v266 = vld [vmem:[%s222 + $0xa8] sm:$0xf]
        %v267 = vld [vmem:[%s222 + $0xac] sm:$0xf]
        %v268 = vld [vmem:[%s222 + $0xb0] sm:$0x1]
        %v269 = vld [vmem:[%s222 + $0xb4] sm:$0xf]
        %v270 = vld [vmem:[%s222 + $0xb8] sm:$0xf]
        %v271 = vld [vmem:[%s222 + $0xbc] sm:$0x1]
        %v272 = vld [vmem:[%s222 + $0xc0] sm:$0xf]
        %v273 = vld [vmem:[%s222 + $0xc4] sm:$0xf]
        %v274 = vld [vmem:[%s222 + $0xc8] sm:$0x1]
        %v275 = vld [vmem:[%s222 + $0xcc] sm:$0xf]
        %v276 = vld [vmem:[%s222 + $0xd0] sm:$0xf]
        %v277 = vld [vmem:[%s222 + $0xd4] sm:$0x1]
        %v310 = vunpack.c.l.b16 %v224
        %v311 = vunpack.c.l.b16 %v225
        %v312 = vunpack.c.l.b16 %v227
        %v313 = vunpack.c.l.b16 %v228
        %v314 = vunpack.c.l.b16 %v230
        %v315 = vunpack.c.l.b16 %v231
        %v316 = vunpack.c.l.b16 %v233
        %v317 = vunpack.c.l.b16 %v234
        %v318 = vunpack.c.l.b16 %v236
        %v319 = vunpack.c.l.b16 %v237
        %v320 = vunpack.c.l.b16 %v239
        %v321 = vunpack.c.l.b16 %v240
        %v322 = vunpack.c.l.b16 %v242
        %v323 = vunpack.c.l.b16 %v243
        %v324 = vunpack.c.l.b16 %v245
        %v325 = vunpack.c.l.b16 %v246
        %v326 = vunpack.c.l.b16 %v248
        %v327 = vunpack.c.l.b16 %v249
        %v328 = vunpack.c.l.b16 %v251
        %v329 = vunpack.c.l.b16 %v252
        %v330 = vunpack.c.l.b16 %v254
        %v331 = vunpack.c.l.b16 %v255
        %v332 = vunpack.c.l.b16 %v257
        %v333 = vunpack.c.l.b16 %v258
        %v334 = vunpack.c.l.b16 %v260
        %v335 = vunpack.c.l.b16 %v261
        %v336 = vunpack.c.l.b16 %v263
        %v337 = vunpack.c.l.b16 %v264
        %v338 = vunpack.c.l.b16 %v266
        %v339 = vunpack.c.l.b16 %v267
        %v340 = vunpack.c.l.b16 %v269
        %v341 = vunpack.c.l.b16 %v270
        %v342 = vpack.c.b16 %v311, %v310
        %v343 = vpack.c.b16 %v313, %v312
        %v344 = vpack.c.b16 %v315, %v314
        %v345 = vpack.c.b16 %v317, %v316
        %v346 = vpack.c.b16 %v319, %v318
        %v347 = vpack.c.b16 %v321, %v320
        %v348 = vpack.c.b16 %v323, %v322
        %v349 = vpack.c.b16 %v325, %v324
        %v350 = vpack.c.b16 %v327, %v326
        %v351 = vpack.c.b16 %v329, %v328
        %v352 = vpack.c.b16 %v331, %v330
        %v353 = vpack.c.b16 %v333, %v332
        %v354 = vpack.c.b16 %v335, %v334
        %v355 = vpack.c.b16 %v337, %v336
        %v356 = vpack.c.b16 %v339, %v338
        %v357 = vpack.c.b16 %v341, %v340
        %v376 = vunpack.c.l.b16 %v272
        %v377 = vunpack.c.l.b16 %v273
        %v378 = vpack.c.b16 %v377, %v376
        %v382 = vunpack.c.l.b16 %v275
        %v383 = vunpack.c.l.b16 %v276
        %v384 = vpack.c.b16 %v383, %v382
        %v386 = vld [vmem:[%s1] sm:$0xf]
        %v387 = vld [vmem:[%s1 + $0x4] sm:$0xf]
        %v388 = vld [vmem:[%s1 + $0x8] sm:$0xf]
        %v389 = vld [vmem:[%s1 + $0xc] sm:$0xf]
        %v390 = vld [vmem:[%s1 + $0x10] sm:$0xf]
        %v391 = vld [vmem:[%s1 + $0x14] sm:$0xf]
        %v392 = vld [vmem:[%s1 + $0x18] sm:$0xf]
        %v393 = vld [vmem:[%s1 + $0x1c] sm:$0xf]
        %v394 = vld [vmem:[%s1 + $0x20] sm:$0xf]
        %v395 = vld [vmem:[%s1 + $0x24] sm:$0xf]
        %v396 = vld [vmem:[%s1 + $0x28] sm:$0xf]
        %v397 = vld [vmem:[%s1 + $0x2c] sm:$0xf]
        %v398 = vld [vmem:[%s1 + $0x30] sm:$0xf]
        %v399 = vld [vmem:[%s1 + $0x34] sm:$0xf]
        %v400 = vld [vmem:[%s1 + $0x38] sm:$0xf]
        %v401 = vld [vmem:[%s1 + $0x3c] sm:$0xf]
        %v402 = vld [vmem:[%s1 + $0x40] sm:$0xf]
        %v403 = vld [vmem:[%s1 + $0x44] sm:$0xf]
        %v404 = vld [vmem:[%s1 + $0x48] sm:$0xf]
        %v405 = vld [vmem:[%s1 + $0x4c] sm:$0xf]
        %v406 = vld [vmem:[%s1 + $0x50] sm:$0xf]
        %v407 = vld [vmem:[%s1 + $0x54] sm:$0xf]
        %v408 = vld [vmem:[%s1 + $0x58] sm:$0xf]
        %v409 = vld [vmem:[%s1 + $0x5c] sm:$0xf]
        %v410 = vld [vmem:[%s1 + $0x60] sm:$0xf]
        %v411 = vld [vmem:[%s1 + $0x64] sm:$0xf]
        %v412 = vld [vmem:[%s1 + $0x68] sm:$0xf]
        %v413 = vld [vmem:[%s1 + $0x6c] sm:$0xf]
        %v414 = vld [vmem:[%s1 + $0x70] sm:$0xf]
        %v415 = vld [vmem:[%s1 + $0x74] sm:$0xf]
        %v416 = vld [vmem:[%s1 + $0x78] sm:$0xf]
        %v417 = vld [vmem:[%s1 + $0x7c] sm:$0xf]
        %v418 = vld [vmem:[%s1 + $0x80] sm:$0xf]
        %v419 = vld [vmem:[%s1 + $0x84] sm:$0xf]
        %v420 = vld [vmem:[%s1 + $0x88] sm:$0xf]
        %v421 = vld [vmem:[%s1 + $0x8c] sm:$0xf]
        %v422 = vld [vmem:[%s1 + $0x90] sm:$0xf]
        %v423 = vld [vmem:[%s1 + $0x94] sm:$0xf]
        %v424 = vld [vmem:[%s1 + $0x98] sm:$0xf]
        %v425 = vld [vmem:[%s1 + $0x9c] sm:$0xf]
        %v426 = vld [vmem:[%s1 + $0xa0] sm:$0xf]
        %v427 = vld [vmem:[%s1 + $0xa4] sm:$0xf]
        %v428 = vld [vmem:[%s1 + $0xa8] sm:$0xf]
        %v429 = vld [vmem:[%s1 + $0xac] sm:$0xf]
        %v430 = vld [vmem:[%s1 + $0xb0] sm:$0xf]
        %v431 = vld [vmem:[%s1 + $0xb4] sm:$0xf]
        %v432 = vld [vmem:[%s1 + $0xb8] sm:$0xf]
        %v433 = vld [vmem:[%s1 + $0xbc] sm:$0xf]
        %vm434 = vsmask.f32 3328
        %vm435 = vsmask.f32 7440
        %vm436 = vmor %vm434, %vm435
        %v438 = vshrl.u32 %v224, 16
        %v440 = vrot.slane %v438, 4
        %v441 = vshll.u32 %v224, 16
        %v443 = vrot.slane %v441, 5
        %v444 = vor.u32 %v440, %v443
        %v445 = vrot.slane %v444, 4
        %v447 = vshll.u32 %v225, 16
        %v449 = vrot.slane %v447, 5
        %v450 = vsel %vm436, %v445, %v449
        %v451 = vshrl.u32 %v225, 16
        %v453 = vrot.slane %v451, 4
        %v454 = vor.u32 %v453, %v449
        %v455 = vrot.slane %v454, 4
        %v457 = vshll.u32 %v226, 16
        %v459 = vrot.slane %v457, 5
        %v460 = vsel %vm436, %v455, %v459
        %v462 = vshrl.u32 %v227, 16
        %v464 = vrot.slane %v462, 4
        %v465 = vshll.u32 %v227, 16
        %v467 = vrot.slane %v465, 5
        %v468 = vor.u32 %v464, %v467
        %v469 = vrot.slane %v468, 4
        %v471 = vshll.u32 %v228, 16
        %v473 = vrot.slane %v471, 5
        %v474 = vsel %vm436, %v469, %v473
        %v475 = vshrl.u32 %v228, 16
        %v477 = vrot.slane %v475, 4
        %v478 = vor.u32 %v477, %v473
        %v479 = vrot.slane %v478, 4
        %v481 = vshll.u32 %v229, 16
        %v483 = vrot.slane %v481, 5
        %v484 = vsel %vm436, %v479, %v483
        %v486 = vshrl.u32 %v230, 16
        %v488 = vrot.slane %v486, 4
        %v489 = vshll.u32 %v230, 16
        %v491 = vrot.slane %v489, 5
        %v492 = vor.u32 %v488, %v491
        %v493 = vrot.slane %v492, 4
        %v495 = vshll.u32 %v231, 16
        %v497 = vrot.slane %v495, 5
        %v498 = vsel %vm436, %v493, %v497
        %v499 = vshrl.u32 %v231, 16
        %v501 = vrot.slane %v499, 4
        %v502 = vor.u32 %v501, %v497
        %v503 = vrot.slane %v502, 4
        %v505 = vshll.u32 %v232, 16
        %v507 = vrot.slane %v505, 5
        %v508 = vsel %vm436, %v503, %v507
        %v510 = vshrl.u32 %v233, 16
        %v512 = vrot.slane %v510, 4
        %v513 = vshll.u32 %v233, 16
        %v515 = vrot.slane %v513, 5
        %v516 = vor.u32 %v512, %v515
        %v517 = vrot.slane %v516, 4
        %v519 = vshll.u32 %v234, 16
        %v521 = vrot.slane %v519, 5
        %v522 = vsel %vm436, %v517, %v521
        %v523 = vshrl.u32 %v234, 16
        %v525 = vrot.slane %v523, 4
        %v526 = vor.u32 %v525, %v521
        %v527 = vrot.slane %v526, 4
        %v529 = vshll.u32 %v235, 16
        %v531 = vrot.slane %v529, 5
        %v532 = vsel %vm436, %v527, %v531
        %v534 = vshrl.u32 %v236, 16
        %v536 = vrot.slane %v534, 4
        %v537 = vshll.u32 %v236, 16
        %v539 = vrot.slane %v537, 5
        %v540 = vor.u32 %v536, %v539
        %v541 = vrot.slane %v540, 4
        %v543 = vshll.u32 %v237, 16
        %v545 = vrot.slane %v543, 5
        %v546 = vsel %vm436, %v541, %v545
        %v547 = vshrl.u32 %v237, 16
        %v549 = vrot.slane %v547, 4
        %v550 = vor.u32 %v549, %v545
        %v551 = vrot.slane %v550, 4
        %v553 = vshll.u32 %v238, 16
        %v555 = vrot.slane %v553, 5
        %v556 = vsel %vm436, %v551, %v555
        %v558 = vshrl.u32 %v239, 16
        %v560 = vrot.slane %v558, 4
        %v561 = vshll.u32 %v239, 16
        %v563 = vrot.slane %v561, 5
        %v564 = vor.u32 %v560, %v563
        %v565 = vrot.slane %v564, 4
        %v567 = vshll.u32 %v240, 16
        %v569 = vrot.slane %v567, 5
        %v570 = vsel %vm436, %v565, %v569
        %v571 = vshrl.u32 %v240, 16
        %v573 = vrot.slane %v571, 4
        %v574 = vor.u32 %v573, %v569
        %v575 = vrot.slane %v574, 4
        %v577 = vshll.u32 %v241, 16
        %v579 = vrot.slane %v577, 5
        %v580 = vsel %vm436, %v575, %v579
        %v582 = vshrl.u32 %v242, 16
        %v584 = vrot.slane %v582, 4
        %v585 = vshll.u32 %v242, 16
        %v587 = vrot.slane %v585, 5
        %v588 = vor.u32 %v584, %v587
        %v589 = vrot.slane %v588, 4
        %v591 = vshll.u32 %v243, 16
        %v593 = vrot.slane %v591, 5
        %v594 = vsel %vm436, %v589, %v593
        %v595 = vshrl.u32 %v243, 16
        %v597 = vrot.slane %v595, 4
        %v598 = vor.u32 %v597, %v593
        %v599 = vrot.slane %v598, 4
        %v601 = vshll.u32 %v244, 16
        %v603 = vrot.slane %v601, 5
        %v604 = vsel %vm436, %v599, %v603
        %v606 = vshrl.u32 %v245, 16
        %v608 = vrot.slane %v606, 4
        %v609 = vshll.u32 %v245, 16
        %v611 = vrot.slane %v609, 5
        %v612 = vor.u32 %v608, %v611
        %v613 = vrot.slane %v612, 4
        %v615 = vshll.u32 %v246, 16
        %v617 = vrot.slane %v615, 5
        %v618 = vsel %vm436, %v613, %v617
        %v619 = vshrl.u32 %v246, 16
        %v621 = vrot.slane %v619, 4
        %v622 = vor.u32 %v621, %v617
        %v623 = vrot.slane %v622, 4
        %v625 = vshll.u32 %v247, 16
        %v627 = vrot.slane %v625, 5
        %v628 = vsel %vm436, %v623, %v627
        %v630 = vshrl.u32 %v248, 16
        %v632 = vrot.slane %v630, 4
        %v633 = vshll.u32 %v248, 16
        %v635 = vrot.slane %v633, 5
        %v636 = vor.u32 %v632, %v635
        %v637 = vrot.slane %v636, 4
        %v639 = vshll.u32 %v249, 16
        %v641 = vrot.slane %v639, 5
        %v642 = vsel %vm436, %v637, %v641
        %v643 = vshrl.u32 %v249, 16
        %v645 = vrot.slane %v643, 4
        %v646 = vor.u32 %v645, %v641
        %v647 = vrot.slane %v646, 4
        %v649 = vshll.u32 %v250, 16
        %v651 = vrot.slane %v649, 5
        %v652 = vsel %vm436, %v647, %v651
        %v654 = vshrl.u32 %v251, 16
        %v656 = vrot.slane %v654, 4
        %v657 = vshll.u32 %v251, 16
        %v659 = vrot.slane %v657, 5
        %v660 = vor.u32 %v656, %v659
        %v661 = vrot.slane %v660, 4
        %v663 = vshll.u32 %v252, 16
        %v665 = vrot.slane %v663, 5
        %v666 = vsel %vm436, %v661, %v665
        %v667 = vshrl.u32 %v252, 16
        %v669 = vrot.slane %v667, 4
        %v670 = vor.u32 %v669, %v665
        %v671 = vrot.slane %v670, 4
        %v673 = vshll.u32 %v253, 16
        %v675 = vrot.slane %v673, 5
        %v676 = vsel %vm436, %v671, %v675
        %v678 = vshrl.u32 %v254, 16
        %v680 = vrot.slane %v678, 4
        %v681 = vshll.u32 %v254, 16
        %v683 = vrot.slane %v681, 5
        %v684 = vor.u32 %v680, %v683
        %v685 = vrot.slane %v684, 4
        %v687 = vshll.u32 %v255, 16
        %v689 = vrot.slane %v687, 5
        %v690 = vsel %vm436, %v685, %v689
        %v691 = vshrl.u32 %v255, 16
        %v693 = vrot.slane %v691, 4
        %v694 = vor.u32 %v693, %v689
        %v695 = vrot.slane %v694, 4
        %v697 = vshll.u32 %v256, 16
        %v699 = vrot.slane %v697, 5
        %v700 = vsel %vm436, %v695, %v699
        %v702 = vshrl.u32 %v257, 16
        %v704 = vrot.slane %v702, 4
        %v705 = vshll.u32 %v257, 16
        %v707 = vrot.slane %v705, 5
        %v708 = vor.u32 %v704, %v707
        %v709 = vrot.slane %v708, 4
        %v711 = vshll.u32 %v258, 16
        %v713 = vrot.slane %v711, 5
        %v714 = vsel %vm436, %v709, %v713
        %v715 = vshrl.u32 %v258, 16
        %v717 = vrot.slane %v715, 4
        %v718 = vor.u32 %v717, %v713
        %v719 = vrot.slane %v718, 4
        %v721 = vshll.u32 %v259, 16
        %v723 = vrot.slane %v721, 5
        %v724 = vsel %vm436, %v719, %v723
        %v726 = vshrl.u32 %v260, 16
        %v728 = vrot.slane %v726, 4
        %v729 = vshll.u32 %v260, 16
        %v731 = vrot.slane %v729, 5
        %v732 = vor.u32 %v728, %v731
        %v733 = vrot.slane %v732, 4
        %v735 = vshll.u32 %v261, 16
        %v737 = vrot.slane %v735, 5
        %v738 = vsel %vm436, %v733, %v737
        %v739 = vshrl.u32 %v261, 16
        %v741 = vrot.slane %v739, 4
        %v742 = vor.u32 %v741, %v737
        %v743 = vrot.slane %v742, 4
        %v745 = vshll.u32 %v262, 16
        %v747 = vrot.slane %v745, 5
        %v748 = vsel %vm436, %v743, %v747
        %v750 = vshrl.u32 %v263, 16
        %v752 = vrot.slane %v750, 4
        %v753 = vshll.u32 %v263, 16
        %v755 = vrot.slane %v753, 5
        %v756 = vor.u32 %v752, %v755
        %v757 = vrot.slane %v756, 4
        %v759 = vshll.u32 %v264, 16
        %v761 = vrot.slane %v759, 5
        %v762 = vsel %vm436, %v757, %v761
        %v763 = vshrl.u32 %v264, 16
        %v765 = vrot.slane %v763, 4
        %v766 = vor.u32 %v765, %v761
        %v767 = vrot.slane %v766, 4
        %v769 = vshll.u32 %v265, 16
        %v771 = vrot.slane %v769, 5
        %v772 = vsel %vm436, %v767, %v771
        %v774 = vshrl.u32 %v266, 16
        %v776 = vrot.slane %v774, 4
        %v777 = vshll.u32 %v266, 16
        %v779 = vrot.slane %v777, 5
        %v780 = vor.u32 %v776, %v779
        %v781 = vrot.slane %v780, 4
        %v783 = vshll.u32 %v267, 16
        %v785 = vrot.slane %v783, 5
        %v786 = vsel %vm436, %v781, %v785
        %v787 = vshrl.u32 %v267, 16
        %v789 = vrot.slane %v787, 4
        %v790 = vor.u32 %v789, %v785
        %v791 = vrot.slane %v790, 4
        %v793 = vshll.u32 %v268, 16
        %v795 = vrot.slane %v793, 5
        %v796 = vsel %vm436, %v791, %v795
        %v798 = vshrl.u32 %v269, 16
        %v800 = vrot.slane %v798, 4
        %v801 = vshll.u32 %v269, 16
        %v803 = vrot.slane %v801, 5
        %v804 = vor.u32 %v800, %v803
        %v805 = vrot.slane %v804, 4
        %v807 = vshll.u32 %v270, 16
        %v809 = vrot.slane %v807, 5
        %v810 = vsel %vm436, %v805, %v809
        %v811 = vshrl.u32 %v270, 16
        %v813 = vrot.slane %v811, 4
        %v814 = vor.u32 %v813, %v809
        %v815 = vrot.slane %v814, 4
        %v817 = vshll.u32 %v271, 16
        %v819 = vrot.slane %v817, 5
        %v820 = vsel %vm436, %v815, %v819
        %v822 = vshrl.u32 %v272, 16
        %v824 = vrot.slane %v822, 4
        %v825 = vshll.u32 %v272, 16
        %v827 = vrot.slane %v825, 5
        %v828 = vor.u32 %v824, %v827
        %v829 = vrot.slane %v828, 4
        %v831 = vshll.u32 %v273, 16
        %v833 = vrot.slane %v831, 5
        %v834 = vsel %vm436, %v829, %v833
        %v835 = vshrl.u32 %v273, 16
        %v837 = vrot.slane %v835, 4
        %v838 = vor.u32 %v837, %v833
        %v839 = vrot.slane %v838, 4
        %v841 = vshll.u32 %v274, 16
        %v843 = vrot.slane %v841, 5
        %v844 = vsel %vm436, %v839, %v843
        %v846 = vshrl.u32 %v275, 16
        %v848 = vrot.slane %v846, 4
        %v849 = vshll.u32 %v275, 16
        %v851 = vrot.slane %v849, 5
        %v852 = vor.u32 %v848, %v851
        %v853 = vrot.slane %v852, 4
        %v855 = vshll.u32 %v276, 16
        %v857 = vrot.slane %v855, 5
        %v858 = vsel %vm436, %v853, %v857
        %v859 = vshrl.u32 %v276, 16
        %v861 = vrot.slane %v859, 4
        %v862 = vor.u32 %v861, %v857
        %v863 = vrot.slane %v862, 4
        %v865 = vshll.u32 %v277, 16
        %v867 = vrot.slane %v865, 5
        %v868 = vsel %vm436, %v863, %v867
        %v869 = vunpack.c.l.b16 %v450
        %v870 = vunpack.c.l.b16 %v460
        %v871 = vunpack.c.l.b16 %v474
        %v872 = vunpack.c.l.b16 %v484
        %v873 = vunpack.c.l.b16 %v498
        %v874 = vunpack.c.l.b16 %v508
        %v875 = vunpack.c.l.b16 %v522
        %v876 = vunpack.c.l.b16 %v532
        %v877 = vunpack.c.l.b16 %v546
        %v878 = vunpack.c.l.b16 %v556
        %v879 = vunpack.c.l.b16 %v570
        %v880 = vunpack.c.l.b16 %v580
        %v881 = vunpack.c.l.b16 %v594
        %v882 = vunpack.c.l.b16 %v604
        %v883 = vunpack.c.l.b16 %v618
        %v884 = vunpack.c.l.b16 %v628
        %v885 = vunpack.c.l.b16 %v642
        %v886 = vunpack.c.l.b16 %v652
        %v887 = vunpack.c.l.b16 %v666
        %v888 = vunpack.c.l.b16 %v676
        %v889 = vunpack.c.l.b16 %v690
        %v890 = vunpack.c.l.b16 %v700
        %v891 = vunpack.c.l.b16 %v714
        %v892 = vunpack.c.l.b16 %v724
        %v893 = vunpack.c.l.b16 %v738
        %v894 = vunpack.c.l.b16 %v748
        %v895 = vunpack.c.l.b16 %v762
        %v896 = vunpack.c.l.b16 %v772
        %v897 = vunpack.c.l.b16 %v786
        %v898 = vunpack.c.l.b16 %v796
        %v899 = vunpack.c.l.b16 %v810
        %v900 = vunpack.c.l.b16 %v820
        %v901 = vpack.c.b16 %v870, %v869
        %v902 = vpack.c.b16 %v872, %v871
        %v903 = vpack.c.b16 %v874, %v873
        %v904 = vpack.c.b16 %v876, %v875
        %v905 = vpack.c.b16 %v878, %v877
        %v906 = vpack.c.b16 %v880, %v879
        %v907 = vpack.c.b16 %v882, %v881
        %v908 = vpack.c.b16 %v884, %v883
        %v909 = vpack.c.b16 %v886, %v885
        %v910 = vpack.c.b16 %v888, %v887
        %v911 = vpack.c.b16 %v890, %v889
        %v912 = vpack.c.b16 %v892, %v891
        %v913 = vpack.c.b16 %v894, %v893
        %v914 = vpack.c.b16 %v896, %v895
        %v915 = vpack.c.b16 %v898, %v897
        %v916 = vpack.c.b16 %v900, %v899
        %v933 = vunpack.c.l.b16 %v834
        %v934 = vunpack.c.l.b16 %v844
        %v935 = vpack.c.b16 %v934, %v933
        %v937 = vunpack.c.l.b16 %v858
        %v938 = vunpack.c.l.b16 %v868
        %v939 = vpack.c.b16 %v938, %v937
        %s941 = scalar_lea.vmem %s1, 192
        %v942 = vld [vmem:[%s941] sm:$0xf]
        %v943 = vld [vmem:[%s941 + $0x4] sm:$0xf]
        %v944 = vld [vmem:[%s941 + $0x8] sm:$0xf]
        %v945 = vld [vmem:[%s941 + $0xc] sm:$0xf]
        %v946 = vld [vmem:[%s941 + $0x10] sm:$0xf]
        %v947 = vld [vmem:[%s941 + $0x14] sm:$0xf]
        %v948 = vld [vmem:[%s941 + $0x18] sm:$0xf]
        %v949 = vld [vmem:[%s941 + $0x1c] sm:$0xf]
        %v950 = vld [vmem:[%s941 + $0x20] sm:$0xf]
        %v951 = vld [vmem:[%s941 + $0x24] sm:$0xf]
        %v952 = vld [vmem:[%s941 + $0x28] sm:$0xf]
        %v953 = vld [vmem:[%s941 + $0x2c] sm:$0xf]
        %v954 = vld [vmem:[%s941 + $0x30] sm:$0xf]
        %v955 = vld [vmem:[%s941 + $0x34] sm:$0xf]
        %v956 = vld [vmem:[%s941 + $0x38] sm:$0xf]
        %v957 = vld [vmem:[%s941 + $0x3c] sm:$0xf]
        %v958 = vld [vmem:[%s941 + $0x40] sm:$0xf]
        %v959 = vld [vmem:[%s941 + $0x44] sm:$0xf]
        %v960 = vld [vmem:[%s941 + $0x48] sm:$0xf]
        %v961 = vld [vmem:[%s941 + $0x4c] sm:$0xf]
        %v962 = vld [vmem:[%s941 + $0x50] sm:$0xf]
        %v963 = vld [vmem:[%s941 + $0x54] sm:$0xf]
        %v964 = vld [vmem:[%s941 + $0x58] sm:$0xf]
        %v965 = vld [vmem:[%s941 + $0x5c] sm:$0xf]
        %v966 = vld [vmem:[%s941 + $0x60] sm:$0xf]
        %v967 = vld [vmem:[%s941 + $0x64] sm:$0xf]
        %v968 = vld [vmem:[%s941 + $0x68] sm:$0xf]
        %v969 = vld [vmem:[%s941 + $0x6c] sm:$0xf]
        %v970 = vld [vmem:[%s941 + $0x70] sm:$0xf]
        %v971 = vld [vmem:[%s941 + $0x74] sm:$0xf]
        %v972 = vld [vmem:[%s941 + $0x78] sm:$0xf]
        %v973 = vld [vmem:[%s941 + $0x7c] sm:$0xf]
        %v974 = vld [vmem:[%s941 + $0x80] sm:$0xf]
        %v975 = vld [vmem:[%s941 + $0x84] sm:$0xf]
        %v976 = vld [vmem:[%s941 + $0x88] sm:$0xf]
        %v977 = vld [vmem:[%s941 + $0x8c] sm:$0xf]
        %v978 = vld [vmem:[%s941 + $0x90] sm:$0xf]
        %v979 = vld [vmem:[%s941 + $0x94] sm:$0xf]
        %v980 = vld [vmem:[%s941 + $0x98] sm:$0xf]
        %v981 = vld [vmem:[%s941 + $0x9c] sm:$0xf]
        %v982 = vld [vmem:[%s941 + $0xa0] sm:$0xf]
        %v983 = vld [vmem:[%s941 + $0xa4] sm:$0xf]
        %v984 = vld [vmem:[%s941 + $0xa8] sm:$0xf]
        %v985 = vld [vmem:[%s941 + $0xac] sm:$0xf]
        %v986 = vld [vmem:[%s941 + $0xb0] sm:$0xf]
        %v987 = vld [vmem:[%s941 + $0xb4] sm:$0xf]
        %v988 = vld [vmem:[%s941 + $0xb8] sm:$0xf]
        %v989 = vld [vmem:[%s941 + $0xbc] sm:$0xf]
        %v1038 = vunpack.c.l.b16 %v942
        %v1039 = vunpack.c.l.b16 %v943
        %v1040 = vunpack.c.l.b16 %v944
        %v1041 = vunpack.c.l.b16 %v945
        %v1042 = vunpack.c.l.b16 %v946
        %v1043 = vunpack.c.l.b16 %v947
        %v1044 = vunpack.c.l.b16 %v948
        %v1045 = vunpack.c.l.b16 %v949
        %v1046 = vunpack.c.l.b16 %v950
        %v1047 = vunpack.c.l.b16 %v951
        %v1048 = vunpack.c.l.b16 %v952
        %v1049 = vunpack.c.l.b16 %v953
        %v1050 = vunpack.c.l.b16 %v954
        %v1051 = vunpack.c.l.b16 %v955
        %v1052 = vunpack.c.l.b16 %v956
        %v1053 = vunpack.c.l.b16 %v957
        %v1054 = vunpack.c.l.b16 %v958
        %v1055 = vunpack.c.l.b16 %v959
        %v1056 = vunpack.c.l.b16 %v960
        %v1057 = vunpack.c.l.b16 %v961
        %v1058 = vunpack.c.l.b16 %v962
        %v1059 = vunpack.c.l.b16 %v963
        %v1060 = vunpack.c.l.b16 %v964
        %v1061 = vunpack.c.l.b16 %v965
        %v1062 = vunpack.c.l.b16 %v966
        %v1063 = vunpack.c.l.b16 %v967
        %v1064 = vunpack.c.l.b16 %v968
        %v1065 = vunpack.c.l.b16 %v969
        %v1066 = vunpack.c.l.b16 %v970
        %v1067 = vunpack.c.l.b16 %v971
        %v1068 = vunpack.c.l.b16 %v972
        %v1069 = vunpack.c.l.b16 %v973
        %v1070 = vunpack.c.l.b16 %v974
        %v1071 = vunpack.c.l.b16 %v975
        %v1072 = vunpack.c.l.b16 %v976
        %v1073 = vunpack.c.l.b16 %v977
        %v1074 = vunpack.c.l.b16 %v978
        %v1075 = vunpack.c.l.b16 %v979
        %v1076 = vunpack.c.l.b16 %v980
        %v1077 = vunpack.c.l.b16 %v981
        %v1078 = vunpack.c.l.b16 %v982
        %v1079 = vunpack.c.l.b16 %v983
        %v1080 = vunpack.c.l.b16 %v984
        %v1081 = vunpack.c.l.b16 %v985
        %v1082 = vunpack.c.l.b16 %v986
        %v1083 = vunpack.c.l.b16 %v987
        %v1084 = vunpack.c.l.b16 %v988
        %v1085 = vunpack.c.l.b16 %v989
        %v1086 = vpack.c.b16 %v1039, %v1038
        %v1087 = vpack.c.b16 %v1041, %v1040
        %v1088 = vpack.c.b16 %v1043, %v1042
        %v1089 = vpack.c.b16 %v1045, %v1044
        %v1090 = vpack.c.b16 %v1047, %v1046
        %v1091 = vpack.c.b16 %v1049, %v1048
        %v1092 = vpack.c.b16 %v1051, %v1050
        %v1093 = vpack.c.b16 %v1053, %v1052
        %v1094 = vpack.c.b16 %v1055, %v1054
        %v1095 = vpack.c.b16 %v1057, %v1056
        %v1096 = vpack.c.b16 %v1059, %v1058
        %v1097 = vpack.c.b16 %v1061, %v1060
        %v1098 = vpack.c.b16 %v1063, %v1062
        %v1099 = vpack.c.b16 %v1065, %v1064
        %v1100 = vpack.c.b16 %v1067, %v1066
        %v1101 = vpack.c.b16 %v1069, %v1068
        %v1102 = vpack.c.b16 %v1071, %v1070
        %v1103 = vpack.c.b16 %v1073, %v1072
        %v1104 = vpack.c.b16 %v1075, %v1074
        %v1105 = vpack.c.b16 %v1077, %v1076
        %v1106 = vpack.c.b16 %v1079, %v1078
        %v1107 = vpack.c.b16 %v1081, %v1080
        %v1108 = vpack.c.b16 %v1083, %v1082
        %v1109 = vpack.c.b16 %v1085, %v1084
        %1134 = vmatprep.subr.bf16.mxu0 0
        %1135 = vmatpush1.bf16.msra.mxu0 %v1086
        %1136 = vmatprep.subr.bf16.mxu0 0
        %1137 = vmatpush1.bf16.msra.mxu0 %v1087
        %1138 = vmatprep.subr.bf16.mxu0 0
        %1139 = vmatpush1.bf16.msra.mxu0 %v1088
        %1140 = vmatprep.subr.bf16.mxu0 0
        %1141 = vmatpush1.bf16.msra.mxu0 %v1089
        %1142 = vmatprep.subr.bf16.mxu0 0
        %1143 = vmatpush1.bf16.msra.mxu0 %v1090
        %1144 = vmatprep.subr.bf16.mxu0 0
        %1145 = vmatpush1.bf16.msra.mxu0 %v1091
        %1146 = vmatprep.subr.bf16.mxu0 0
        %1147 = vmatpush1.bf16.msra.mxu0 %v1092
        %1148 = vmatprep.subr.bf16.mxu0 0
        %1149 = vmatpush1.bf16.msra.mxu0 %v1093
        %1150 = vmatprep.subr.bf16.mxu0 0
        %1151 = vmatpush1.bf16.msra.mxu0 %v1094
        %1152 = vmatprep.subr.bf16.mxu0 0
        %1153 = vmatpush1.bf16.msra.mxu0 %v1095
        %1154 = vmatprep.subr.bf16.mxu0 0
        %1155 = vmatpush1.bf16.msra.mxu0 %v1096
        %1156 = vmatprep.subr.bf16.mxu0 0
        %1157 = vmatpush1.bf16.msra.mxu0 %v1097
        %1158 = vmatprep.subr.bf16.mxu0 0
        %1159 = vmatpush1.bf16.msra.mxu0 %v1098
        %1160 = vmatprep.subr.bf16.mxu0 0
        %1161 = vmatpush1.bf16.msra.mxu0 %v1099
        %1162 = vmatprep.subr.bf16.mxu0 0
        %1163 = vmatpush1.bf16.msra.mxu0 %v1100
        %1164 = vmatprep.subr.bf16.mxu0 0
        %1165 = vmatpush1.bf16.msra.mxu0 %v1101
        %1166 = vmatprep.mubr.bf16.mxu0 %v902
        %1167 = vmatmul.mubr.bf16.gmra.mrb[0].mxu0 %v901
        %v1168 = vpop.f32.mrb[0].mxu0
        %v1169 = vadd.f32 0.0, %v1168
        %v1170 = vpop.f32.mrb[0].mxu0
        %v1171 = vpop.f32.mrb[0].mxu0
        %v1172 = vadd.f32 0.0, %v1171
        %v1173 = vpop.f32.mrb[0].mxu0
        %1174 = vmatprep.mubr.bf16.mxu0 %v903
        %1175 = vmatmul.mubr.bf16.gmra.mrb[0].mxu0 %v902
        %v1176 = vpop.f32.mrb[0].mxu0
        %v1177 = vadd.f32 0.0, %v1176
        %v1178 = vpop.f32.mrb[0].mxu0
        %v1179 = vpop.f32.mrb[0].mxu0
        %v1180 = vadd.f32 0.0, %v1179
        %v1181 = vpop.f32.mrb[0].mxu0
        %1182 = vmatprep.mubr.bf16.mxu0 %v904
        %1183 = vmatmul.mubr.bf16.gmra.mrb[0].mxu0 %v903
        %v1184 = vpop.f32.mrb[0].mxu0
        %v1185 = vadd.f32 0.0, %v1184
        %v1186 = vpop.f32.mrb[0].mxu0
        %v1187 = vpop.f32.mrb[0].mxu0
        %v1188 = vadd.f32 0.0, %v1187
        %v1189 = vpop.f32.mrb[0].mxu0
        %1190 = vmatprep.mubr.bf16.mxu0 %v905
        %1191 = vmatmul.mubr.bf16.gmra.mrb[0].mxu0 %v904
        %v1192 = vpop.f32.mrb[0].mxu0
        %v1193 = vadd.f32 0.0, %v1192
        %v1194 = vpop.f32.mrb[0].mxu0
        %v1195 = vpop.f32.mrb[0].mxu0
        %v1196 = vadd.f32 0.0, %v1195
        %v1197 = vpop.f32.mrb[0].mxu0
        %1198 = vmatprep.mubr.bf16.mxu0 %v906
        %1199 = vmatmul.mubr.bf16.gmra.mrb[0].mxu0 %v905
        %v1200 = vpop.f32.mrb[0].mxu0
        %v1201 = vadd.f32 0.0, %v1200
        %v1202 = vpop.f32.mrb[0].mxu0
        %v1203 = vpop.f32.mrb[0].mxu0
        %v1204 = vadd.f32 0.0, %v1203
        %v1205 = vpop.f32.mrb[0].mxu0
        %1206 = vmatprep.mubr.bf16.mxu0 %v907
        %1207 = vmatmul.mubr.bf16.gmra.mrb[0].mxu0 %v906
        %v1208 = vpop.f32.mrb[0].mxu0
        %v1209 = vadd.f32 0.0, %v1208
        %v1210 = vpop.f32.mrb[0].mxu0
        %v1211 = vpop.f32.mrb[0].mxu0
        %v1212 = vadd.f32 0.0, %v1211
        %v1213 = vpop.f32.mrb[0].mxu0
        %1214 = vmatprep.mubr.bf16.mxu0 %v908
        %1215 = vmatmul.mubr.bf16.gmra.mrb[0].mxu0 %v907
        %v1216 = vpop.f32.mrb[0].mxu0
        %v1217 = vadd.f32 0.0, %v1216
        %v1218 = vpop.f32.mrb[0].mxu0
        %v1219 = vpop.f32.mrb[0].mxu0
        %v1220 = vadd.f32 0.0, %v1219
        %v1221 = vpop.f32.mrb[0].mxu0
        %1222 = vmatprep.mubr.bf16.mxu0 %v909
        %1223 = vmatmul.mubr.bf16.gmra.mrb[0].mxu0 %v908
        %v1224 = vpop.f32.mrb[0].mxu0
        %v1225 = vadd.f32 0.0, %v1224
        %v1226 = vpop.f32.mrb[0].mxu0
        %v1227 = vpop.f32.mrb[0].mxu0
        %v1228 = vadd.f32 0.0, %v1227
        %v1229 = vpop.f32.mrb[0].mxu0
        %1230 = vmatprep.mubr.bf16.mxu0 %v910
        %1231 = vmatmul.mubr.bf16.gmra.mrb[0].mxu0 %v909
        %v1232 = vpop.f32.mrb[0].mxu0
        %v1233 = vadd.f32 0.0, %v1232
        %v1234 = vpop.f32.mrb[0].mxu0
        %v1235 = vpop.f32.mrb[0].mxu0
        %v1236 = vadd.f32 0.0, %v1235
        %v1237 = vpop.f32.mrb[0].mxu0
        %1238 = vmatprep.mubr.bf16.mxu0 %v911
        %1239 = vmatmul.mubr.bf16.gmra.mrb[0].mxu0 %v910
        %v1240 = vpop.f32.mrb[0].mxu0
        %v1241 = vadd.f32 0.0, %v1240
        %v1242 = vpop.f32.mrb[0].mxu0
        %v1243 = vpop.f32.mrb[0].mxu0
        %v1244 = vadd.f32 0.0, %v1243
        %v1245 = vpop.f32.mrb[0].mxu0
        %1246 = vmatprep.mubr.bf16.mxu0 %v912
        %1247 = vmatmul.mubr.bf16.gmra.mrb[0].mxu0 %v911
        %v1248 = vpop.f32.mrb[0].mxu0
        %v1249 = vadd.f32 0.0, %v1248
        %v1250 = vpop.f32.mrb[0].mxu0
        %v1251 = vpop.f32.mrb[0].mxu0
        %v1252 = vadd.f32 0.0, %v1251
        %v1253 = vpop.f32.mrb[0].mxu0
        %1254 = vmatprep.mubr.bf16.mxu0 %v913
        %1255 = vmatmul.mubr.bf16.gmra.mrb[0].mxu0 %v912
        %v1256 = vpop.f32.mrb[0].mxu0
        %v1257 = vadd.f32 0.0, %v1256
        %v1258 = vpop.f32.mrb[0].mxu0
        %v1259 = vpop.f32.mrb[0].mxu0
        %v1260 = vadd.f32 0.0, %v1259
        %v1261 = vpop.f32.mrb[0].mxu0
        %1262 = vmatprep.mubr.bf16.mxu0 %v914
        %1263 = vmatmul.mubr.bf16.gmra.mrb[0].mxu0 %v913
        %v1264 = vpop.f32.mrb[0].mxu0
        %v1265 = vadd.f32 0.0, %v1264
        %v1266 = vpop.f32.mrb[0].mxu0
        %v1267 = vpop.f32.mrb[0].mxu0
        %v1268 = vadd.f32 0.0, %v1267
        %v1269 = vpop.f32.mrb[0].mxu0
        %1270 = vmatprep.mubr.bf16.mxu0 %v915
        %1271 = vmatmul.mubr.bf16.gmra.mrb[0].mxu0 %v914
        %v1272 = vpop.f32.mrb[0].mxu0
        %v1273 = vadd.f32 0.0, %v1272
        %v1274 = vpop.f32.mrb[0].mxu0
        %v1275 = vpop.f32.mrb[0].mxu0
        %v1276 = vadd.f32 0.0, %v1275
        %v1277 = vpop.f32.mrb[0].mxu0
        %1278 = vmatprep.mubr.bf16.mxu0 %v916
        %1279 = vmatmul.mubr.bf16.gmra.mrb[0].mxu0 %v915
        %v1280 = vpop.f32.mrb[0].mxu0
        %v1281 = vadd.f32 0.0, %v1280
        %v1282 = vpop.f32.mrb[0].mxu0
        %v1283 = vpop.f32.mrb[0].mxu0
        %v1284 = vadd.f32 0.0, %v1283
        %v1285 = vpop.f32.mrb[0].mxu0
        %1286 = vmatprep.mubr.bf16.mxu0 %v935
        %1287 = vmatmul.mubr.bf16.gmra.mrb[0].mxu0 %v916
        %v1288 = vpop.f32.mrb[0].mxu0
        %v1289 = vadd.f32 0.0, %v1288
        %v1290 = vpop.f32.mrb[0].mxu0
        %v1291 = vpop.f32.mrb[0].mxu0
        %v1292 = vadd.f32 0.0, %v1291
        %v1293 = vpop.f32.mrb[0].mxu0
        %1294 = vdwg.mxu0
        %1295 = vmatprep.subr.bf16.mxu0 0
        %1296 = vmatpush1.bf16.msra.mxu0 %v1102
        %1297 = vmatprep.subr.bf16.mxu0 0
        %1298 = vmatpush1.bf16.msra.mxu0 %v1103
        %1299 = vmatprep.subr.bf16.mxu0 0
        %1300 = vmatpush1.bf16.msra.mxu0 %v1104
        %1301 = vmatprep.subr.bf16.mxu0 0
        %1302 = vmatpush1.bf16.msra.mxu0 %v1105
        %1303 = vmatprep.subr.bf16.mxu0 0
        %1304 = vmatpush1.bf16.msra.mxu0 %v1106
        %1305 = vmatprep.subr.bf16.mxu0 0
        %1306 = vmatpush1.bf16.msra.mxu0 %v1107
        %1307 = vmatprep.subr.bf16.mxu0 0
        %1308 = vmatpush1.bf16.msra.mxu0 %v1108
        %1309 = vmatprep.subr.bf16.mxu0 0
        %1310 = vmatpush1.bf16.msra.mxu0 %v1109
        %1311 = vmatprep.subr.bf16.mxu0 0
        %1312 = vmatpush1.bf16.msra.mxu0 0
        %1313 = vmatprep.subr.bf16.mxu0 0
        %1314 = vmatpush1.bf16.msra.mxu0 0
        %1315 = vmatprep.subr.bf16.mxu0 0
        %1316 = vmatpush1.bf16.msra.mxu0 0
        %1317 = vmatprep.subr.bf16.mxu0 0
        %1318 = vmatpush1.bf16.msra.mxu0 0
        %1319 = vmatprep.subr.bf16.mxu0 0
        %1320 = vmatpush1.bf16.msra.mxu0 0
        %1321 = vmatprep.subr.bf16.mxu0 0
        %1322 = vmatpush1.bf16.msra.mxu0 0
        %1323 = vmatprep.subr.bf16.mxu0 0
        %1324 = vmatpush1.bf16.msra.mxu0 0
        %1325 = vmatprep.subr.bf16.mxu0 0
        %1326 = vmatpush1.bf16.msra.mxu0 0
        %1327 = vmatprep.mubr.bf16.mxu0 0
        %1328 = vmatmul.mubr.bf16.gmra.mrb[0].mxu0 %v903
        %v1329 = vpop.f32.mrb[0].mxu0
        %v1330 = vadd.f32 %v1169, %v1329
        %v1331 = vpop.f32.mrb[0].mxu0
        %v1332 = vpop.f32.mrb[0].mxu0
        %v1333 = vadd.f32 %v1172, %v1332
        %v1334 = vpop.f32.mrb[0].mxu0
        %1335 = vmatprep.mubr.bf16.mxu0 0
        %1336 = vmatmul.mubr.bf16.gmra.mrb[0].mxu0 %v904
        %v1337 = vpop.f32.mrb[0].mxu0
        %v1338 = vadd.f32 %v1177, %v1337
        %v1339 = vpop.f32.mrb[0].mxu0
        %v1340 = vpop.f32.mrb[0].mxu0
        %v1341 = vadd.f32 %v1180, %v1340
        %v1342 = vpop.f32.mrb[0].mxu0
        %1343 = vmatprep.mubr.bf16.mxu0 0
        %1344 = vmatmul.mubr.bf16.gmra.mrb[0].mxu0 %v905
        %v1345 = vpop.f32.mrb[0].mxu0
        %v1346 = vadd.f32 %v1185, %v1345
        %v1347 = vpop.f32.mrb[0].mxu0
        %v1348 = vpop.f32.mrb[0].mxu0
        %v1349 = vadd.f32 %v1188, %v1348
        %v1350 = vpop.f32.mrb[0].mxu0
        %1351 = vmatprep.mubr.bf16.mxu0 0
        %1352 = vmatmul.mubr.bf16.gmra.mrb[0].mxu0 %v906
        %v1353 = vpop.f32.mrb[0].mxu0
        %v1354 = vadd.f32 %v1193, %v1353
        %v1355 = vpop.f32.mrb[0].mxu0
        %v1356 = vpop.f32.mrb[0].mxu0
        %v1357 = vadd.f32 %v1196, %v1356
        %v1358 = vpop.f32.mrb[0].mxu0
        %1359 = vmatprep.mubr.bf16.mxu0 0
        %1360 = vmatmul.mubr.bf16.gmra.mrb[0].mxu0 %v907
        %v1361 = vpop.f32.mrb[0].mxu0
        %v1362 = vadd.f32 %v1201, %v1361
        %v1363 = vpop.f32.mrb[0].mxu0
        %v1364 = vpop.f32.mrb[0].mxu0
        %v1365 = vadd.f32 %v1204, %v1364
        %v1366 = vpop.f32.mrb[0].mxu0
        %1367 = vmatprep.mubr.bf16.mxu0 0
        %1368 = vmatmul.mubr.bf16.gmra.mrb[0].mxu0 %v908
        %v1369 = vpop.f32.mrb[0].mxu0
        %v1370 = vadd.f32 %v1209, %v1369
        %v1371 = vpop.f32.mrb[0].mxu0
        %v1372 = vpop.f32.mrb[0].mxu0
        %v1373 = vadd.f32 %v1212, %v1372
        %v1374 = vpop.f32.mrb[0].mxu0
        %1375 = vmatprep.mubr.bf16.mxu0 0
        %1376 = vmatmul.mubr.bf16.gmra.mrb[0].mxu0 %v909
        %v1377 = vpop.f32.mrb[0].mxu0
        %v1378 = vadd.f32 %v1217, %v1377
        %v1379 = vpop.f32.mrb[0].mxu0
        %v1380 = vpop.f32.mrb[0].mxu0
        %v1381 = vadd.f32 %v1220, %v1380
        %v1382 = vpop.f32.mrb[0].mxu0
        %1383 = vmatprep.mubr.bf16.mxu0 0
        %1384 = vmatmul.mubr.bf16.gmra.mrb[0].mxu0 %v910
        %v1385 = vpop.f32.mrb[0].mxu0
        %v1386 = vadd.f32 %v1225, %v1385
        %v1387 = vpop.f32.mrb[0].mxu0
        %v1388 = vpop.f32.mrb[0].mxu0
        %v1389 = vadd.f32 %v1228, %v1388
        %v1390 = vpop.f32.mrb[0].mxu0
        %1391 = vmatprep.mubr.bf16.mxu0 0
        %1392 = vmatmul.mubr.bf16.gmra.mrb[0].mxu0 %v911
        %v1393 = vpop.f32.mrb[0].mxu0
        %v1394 = vadd.f32 %v1233, %v1393
        %v1395 = vpop.f32.mrb[0].mxu0
        %v1396 = vpop.f32.mrb[0].mxu0
        %v1397 = vadd.f32 %v1236, %v1396
        %v1398 = vpop.f32.mrb[0].mxu0
        %1399 = vmatprep.mubr.bf16.mxu0 0
        %1400 = vmatmul.mubr.bf16.gmra.mrb[0].mxu0 %v912
        %v1401 = vpop.f32.mrb[0].mxu0
        %v1402 = vadd.f32 %v1241, %v1401
        %v1403 = vpop.f32.mrb[0].mxu0
        %v1404 = vpop.f32.mrb[0].mxu0
        %v1405 = vadd.f32 %v1244, %v1404
        %v1406 = vpop.f32.mrb[0].mxu0
        %1407 = vmatprep.mubr.bf16.mxu0 0
        %1408 = vmatmul.mubr.bf16.gmra.mrb[0].mxu0 %v913
        %v1409 = vpop.f32.mrb[0].mxu0
        %v1410 = vadd.f32 %v1249, %v1409
        %v1411 = vpop.f32.mrb[0].mxu0
        %v1412 = vpop.f32.mrb[0].mxu0
        %v1413 = vadd.f32 %v1252, %v1412
        %v1414 = vpop.f32.mrb[0].mxu0
        %1415 = vmatprep.mubr.bf16.mxu0 0
        %1416 = vmatmul.mubr.bf16.gmra.mrb[0].mxu0 %v914
        %v1417 = vpop.f32.mrb[0].mxu0
        %v1418 = vadd.f32 %v1257, %v1417
        %v1419 = vpop.f32.mrb[0].mxu0
        %v1420 = vpop.f32.mrb[0].mxu0
        %v1421 = vadd.f32 %v1260, %v1420
        %v1422 = vpop.f32.mrb[0].mxu0
        %1423 = vmatprep.mubr.bf16.mxu0 0
        %1424 = vmatmul.mubr.bf16.gmra.mrb[0].mxu0 %v915
        %v1425 = vpop.f32.mrb[0].mxu0
        %v1426 = vadd.f32 %v1265, %v1425
        %v1427 = vpop.f32.mrb[0].mxu0
        %v1428 = vpop.f32.mrb[0].mxu0
        %v1429 = vadd.f32 %v1268, %v1428
        %v1430 = vpop.f32.mrb[0].mxu0
        %1431 = vmatprep.mubr.bf16.mxu0 0
        %1432 = vmatmul.mubr.bf16.gmra.mrb[0].mxu0 %v916
        %v1433 = vpop.f32.mrb[0].mxu0
        %v1434 = vadd.f32 %v1273, %v1433
        %v1435 = vpop.f32.mrb[0].mxu0
        %v1436 = vpop.f32.mrb[0].mxu0
        %v1437 = vadd.f32 %v1276, %v1436
        %v1438 = vpop.f32.mrb[0].mxu0
        %1439 = vmatprep.mubr.bf16.mxu0 0
        %1440 = vmatmul.mubr.bf16.gmra.mrb[0].mxu0 %v935
        %v1441 = vpop.f32.mrb[0].mxu0
        %v1442 = vadd.f32 %v1281, %v1441
        %v1443 = vpop.f32.mrb[0].mxu0
        %v1444 = vpop.f32.mrb[0].mxu0
        %v1445 = vadd.f32 %v1284, %v1444
        %v1446 = vpop.f32.mrb[0].mxu0
        %1447 = vmatprep.mubr.bf16.mxu0 0
        %1448 = vmatmul.mubr.bf16.gmra.mrb[0].mxu0 %v939
        %v1449 = vpop.f32.mrb[0].mxu0
        %v1450 = vadd.f32 %v1289, %v1449
        %v1451 = vpop.f32.mrb[0].mxu0
        %v1452 = vpop.f32.mrb[0].mxu0
        %v1453 = vadd.f32 %v1292, %v1452
        %v1454 = vpop.f32.mrb[0].mxu0
        %1455 = vdwg.mxu0
        %v1504 = vunpack.c.l.b16 %v386
        %v1505 = vunpack.c.l.b16 %v387
        %v1506 = vunpack.c.l.b16 %v388
        %v1507 = vunpack.c.l.b16 %v389
        %v1508 = vunpack.c.l.b16 %v390
        %v1509 = vunpack.c.l.b16 %v391
        %v1510 = vunpack.c.l.b16 %v392
        %v1511 = vunpack.c.l.b16 %v393
        %v1512 = vunpack.c.l.b16 %v394
        %v1513 = vunpack.c.l.b16 %v395
        %v1514 = vunpack.c.l.b16 %v396
        %v1515 = vunpack.c.l.b16 %v397
        %v1516 = vunpack.c.l.b16 %v398
        %v1517 = vunpack.c.l.b16 %v399
        %v1518 = vunpack.c.l.b16 %v400
        %v1519 = vunpack.c.l.b16 %v401
        %v1520 = vunpack.c.l.b16 %v402
        %v1521 = vunpack.c.l.b16 %v403
        %v1522 = vunpack.c.l.b16 %v404
        %v1523 = vunpack.c.l.b16 %v405
        %v1524 = vunpack.c.l.b16 %v406
        %v1525 = vunpack.c.l.b16 %v407
        %v1526 = vunpack.c.l.b16 %v408
        %v1527 = vunpack.c.l.b16 %v409
        %v1528 = vunpack.c.l.b16 %v410
        %v1529 = vunpack.c.l.b16 %v411
        %v1530 = vunpack.c.l.b16 %v412
        %v1531 = vunpack.c.l.b16 %v413
        %v1532 = vunpack.c.l.b16 %v414
        %v1533 = vunpack.c.l.b16 %v415
        %v1534 = vunpack.c.l.b16 %v416
        %v1535 = vunpack.c.l.b16 %v417
        %v1536 = vunpack.c.l.b16 %v418
        %v1537 = vunpack.c.l.b16 %v419
        %v1538 = vunpack.c.l.b16 %v420
        %v1539 = vunpack.c.l.b16 %v421
        %v1540 = vunpack.c.l.b16 %v422
        %v1541 = vunpack.c.l.b16 %v423
        %v1542 = vunpack.c.l.b16 %v424
        %v1543 = vunpack.c.l.b16 %v425
        %v1544 = vunpack.c.l.b16 %v426
        %v1545 = vunpack.c.l.b16 %v427
        %v1546 = vunpack.c.l.b16 %v428
        %v1547 = vunpack.c.l.b16 %v429
        %v1548 = vunpack.c.l.b16 %v430
        %v1549 = vunpack.c.l.b16 %v431
        %v1550 = vunpack.c.l.b16 %v432
        %v1551 = vunpack.c.l.b16 %v433
        %v1552 = vpack.c.b16 %v1505, %v1504
        %v1553 = vpack.c.b16 %v1507, %v1506
        %v1554 = vpack.c.b16 %v1509, %v1508
        %v1555 = vpack.c.b16 %v1511, %v1510
        %v1556 = vpack.c.b16 %v1513, %v1512
        %v1557 = vpack.c.b16 %v1515, %v1514
        %v1558 = vpack.c.b16 %v1517, %v1516
        %v1559 = vpack.c.b16 %v1519, %v1518
        %v1560 = vpack.c.b16 %v1521, %v1520
        %v1561 = vpack.c.b16 %v1523, %v1522
        %v1562 = vpack.c.b16 %v1525, %v1524
        %v1563 = vpack.c.b16 %v1527, %v1526
        %v1564 = vpack.c.b16 %v1529, %v1528
        %v1565 = vpack.c.b16 %v1531, %v1530
        %v1566 = vpack.c.b16 %v1533, %v1532
        %v1567 = vpack.c.b16 %v1535, %v1534
        %v1568 = vpack.c.b16 %v1537, %v1536
        %v1569 = vpack.c.b16 %v1539, %v1538
        %v1570 = vpack.c.b16 %v1541, %v1540
        %v1571 = vpack.c.b16 %v1543, %v1542
        %v1572 = vpack.c.b16 %v1545, %v1544
        %v1573 = vpack.c.b16 %v1547, %v1546
        %v1574 = vpack.c.b16 %v1549, %v1548
        %v1575 = vpack.c.b16 %v1551, %v1550
        %1600 = vmatprep.subr.bf16.mxu0 0
        %1601 = vmatpush1.bf16.msra.mxu0 %v1552
        %1602 = vmatprep.subr.bf16.mxu0 0
        %1603 = vmatpush1.bf16.msra.mxu0 %v1553
        %1604 = vmatprep.subr.bf16.mxu0 0
        %1605 = vmatpush1.bf16.msra.mxu0 %v1554
        %1606 = vmatprep.subr.bf16.mxu0 0
        %1607 = vmatpush1.bf16.msra.mxu0 %v1555
        %1608 = vmatprep.subr.bf16.mxu0 0
        %1609 = vmatpush1.bf16.msra.mxu0 %v1556
        %1610 = vmatprep.subr.bf16.mxu0 0
        %1611 = vmatpush1.bf16.msra.mxu0 %v1557
        %1612 = vmatprep.subr.bf16.mxu0 0
        %1613 = vmatpush1.bf16.msra.mxu0 %v1558
        %1614 = vmatprep.subr.bf16.mxu0 0
        %1615 = vmatpush1.bf16.msra.mxu0 %v1559
        %1616 = vmatprep.subr.bf16.mxu0 0
        %1617 = vmatpush1.bf16.msra.mxu0 %v1560
        %1618 = vmatprep.subr.bf16.mxu0 0
        %1619 = vmatpush1.bf16.msra.mxu0 %v1561
        %1620 = vmatprep.subr.bf16.mxu0 0
        %1621 = vmatpush1.bf16.msra.mxu0 %v1562
        %1622 = vmatprep.subr.bf16.mxu0 0
        %1623 = vmatpush1.bf16.msra.mxu0 %v1563
        %1624 = vmatprep.subr.bf16.mxu0 0
        %1625 = vmatpush1.bf16.msra.mxu0 %v1564
        %1626 = vmatprep.subr.bf16.mxu0 0
        %1627 = vmatpush1.bf16.msra.mxu0 %v1565
        %1628 = vmatprep.subr.bf16.mxu0 0
        %1629 = vmatpush1.bf16.msra.mxu0 %v1566
        %1630 = vmatprep.subr.bf16.mxu0 0
        %1631 = vmatpush1.bf16.msra.mxu0 %v1567
        %1632 = vmatprep.mubr.bf16.mxu0 %v343
        %1633 = vmatmul.mubr.bf16.gmra.mrb[0].mxu0 %v342
        %v1634 = vpop.f32.mrb[0].mxu0
        %v1635 = vadd.f32 %v1330, %v1634
        %v1636 = vpop.f32.mrb[0].mxu0
        %v1637 = vpop.f32.mrb[0].mxu0
        %v1638 = vadd.f32 %v1333, %v1637
        %v1639 = vpop.f32.mrb[0].mxu0
        %1640 = vmatprep.mubr.bf16.mxu0 %v344
        %1641 = vmatmul.mubr.bf16.gmra.mrb[0].mxu0 %v343
        %v1642 = vpop.f32.mrb[0].mxu0
        %v1643 = vadd.f32 %v1338, %v1642
        %v1644 = vpop.f32.mrb[0].mxu0
        %v1645 = vpop.f32.mrb[0].mxu0
        %v1646 = vadd.f32 %v1341, %v1645
        %v1647 = vpop.f32.mrb[0].mxu0
        %1648 = vmatprep.mubr.bf16.mxu0 %v345
        %1649 = vmatmul.mubr.bf16.gmra.mrb[0].mxu0 %v344
        %v1650 = vpop.f32.mrb[0].mxu0
        %v1651 = vadd.f32 %v1346, %v1650
        %v1652 = vpop.f32.mrb[0].mxu0
        %v1653 = vpop.f32.mrb[0].mxu0
        %v1654 = vadd.f32 %v1349, %v1653
        %v1655 = vpop.f32.mrb[0].mxu0
        %1656 = vmatprep.mubr.bf16.mxu0 %v346
        %1657 = vmatmul.mubr.bf16.gmra.mrb[0].mxu0 %v345
        %v1658 = vpop.f32.mrb[0].mxu0
        %v1659 = vadd.f32 %v1354, %v1658
        %v1660 = vpop.f32.mrb[0].mxu0
        %v1661 = vpop.f32.mrb[0].mxu0
        %v1662 = vadd.f32 %v1357, %v1661
        %v1663 = vpop.f32.mrb[0].mxu0
        %1664 = vmatprep.mubr.bf16.mxu0 %v347
        %1665 = vmatmul.mubr.bf16.gmra.mrb[0].mxu0 %v346
        %v1666 = vpop.f32.mrb[0].mxu0
        %v1667 = vadd.f32 %v1362, %v1666
        %v1668 = vpop.f32.mrb[0].mxu0
        %v1669 = vpop.f32.mrb[0].mxu0
        %v1670 = vadd.f32 %v1365, %v1669
        %v1671 = vpop.f32.mrb[0].mxu0
        %1672 = vmatprep.mubr.bf16.mxu0 %v348
        %1673 = vmatmul.mubr.bf16.gmra.mrb[0].mxu0 %v347
        %v1674 = vpop.f32.mrb[0].mxu0
        %v1675 = vadd.f32 %v1370, %v1674
        %v1676 = vpop.f32.mrb[0].mxu0
        %v1677 = vpop.f32.mrb[0].mxu0
        %v1678 = vadd.f32 %v1373, %v1677
        %v1679 = vpop.f32.mrb[0].mxu0
        %1680 = vmatprep.mubr.bf16.mxu0 %v349
        %1681 = vmatmul.mubr.bf16.gmra.mrb[0].mxu0 %v348
        %v1682 = vpop.f32.mrb[0].mxu0
        %v1683 = vadd.f32 %v1378, %v1682
        %v1684 = vpop.f32.mrb[0].mxu0
        %v1685 = vpop.f32.mrb[0].mxu0
        %v1686 = vadd.f32 %v1381, %v1685
        %v1687 = vpop.f32.mrb[0].mxu0
        %1688 = vmatprep.mubr.bf16.mxu0 %v350
        %1689 = vmatmul.mubr.bf16.gmra.mrb[0].mxu0 %v349
        %v1690 = vpop.f32.mrb[0].mxu0
        %v1691 = vadd.f32 %v1386, %v1690
        %v1692 = vpop.f32.mrb[0].mxu0
        %v1693 = vpop.f32.mrb[0].mxu0
        %v1694 = vadd.f32 %v1389, %v1693
        %v1695 = vpop.f32.mrb[0].mxu0
        %1696 = vmatprep.mubr.bf16.mxu0 %v351
        %1697 = vmatmul.mubr.bf16.gmra.mrb[0].mxu0 %v350
        %v1698 = vpop.f32.mrb[0].mxu0
        %v1699 = vadd.f32 %v1394, %v1698
        %v1700 = vpop.f32.mrb[0].mxu0
        %v1701 = vpop.f32.mrb[0].mxu0
        %v1702 = vadd.f32 %v1397, %v1701
        %v1703 = vpop.f32.mrb[0].mxu0
        %1704 = vmatprep.mubr.bf16.mxu0 %v352
        %1705 = vmatmul.mubr.bf16.gmra.mrb[0].mxu0 %v351
        %v1706 = vpop.f32.mrb[0].mxu0
        %v1707 = vadd.f32 %v1402, %v1706
        %v1708 = vpop.f32.mrb[0].mxu0
        %v1709 = vpop.f32.mrb[0].mxu0
        %v1710 = vadd.f32 %v1405, %v1709
        %v1711 = vpop.f32.mrb[0].mxu0
        %1712 = vmatprep.mubr.bf16.mxu0 %v353
        %1713 = vmatmul.mubr.bf16.gmra.mrb[0].mxu0 %v352
        %v1714 = vpop.f32.mrb[0].mxu0
        %v1715 = vadd.f32 %v1410, %v1714
        %v1716 = vpop.f32.mrb[0].mxu0
        %v1717 = vpop.f32.mrb[0].mxu0
        %v1718 = vadd.f32 %v1413, %v1717
        %v1719 = vpop.f32.mrb[0].mxu0
        %1720 = vmatprep.mubr.bf16.mxu0 %v354
        %1721 = vmatmul.mubr.bf16.gmra.mrb[0].mxu0 %v353
        %v1722 = vpop.f32.mrb[0].mxu0
        %v1723 = vadd.f32 %v1418, %v1722
        %v1724 = vpop.f32.mrb[0].mxu0
        %v1725 = vpop.f32.mrb[0].mxu0
        %v1726 = vadd.f32 %v1421, %v1725
        %v1727 = vpop.f32.mrb[0].mxu0
        %1728 = vmatprep.mubr.bf16.mxu0 %v355
        %1729 = vmatmul.mubr.bf16.gmra.mrb[0].mxu0 %v354
        %v1730 = vpop.f32.mrb[0].mxu0
        %v1731 = vadd.f32 %v1426, %v1730
        %v1732 = vpop.f32.mrb[0].mxu0
        %v1733 = vpop.f32.mrb[0].mxu0
        %v1734 = vadd.f32 %v1429, %v1733
        %v1735 = vpop.f32.mrb[0].mxu0
        %1736 = vmatprep.mubr.bf16.mxu0 %v356
        %1737 = vmatmul.mubr.bf16.gmra.mrb[0].mxu0 %v355
        %v1738 = vpop.f32.mrb[0].mxu0
        %v1739 = vadd.f32 %v1434, %v1738
        %v1740 = vpop.f32.mrb[0].mxu0
        %v1741 = vpop.f32.mrb[0].mxu0
        %v1742 = vadd.f32 %v1437, %v1741
        %v1743 = vpop.f32.mrb[0].mxu0
        %1744 = vmatprep.mubr.bf16.mxu0 %v357
        %1745 = vmatmul.mubr.bf16.gmra.mrb[0].mxu0 %v356
        %v1746 = vpop.f32.mrb[0].mxu0
        %v1747 = vadd.f32 %v1442, %v1746
        %v1748 = vpop.f32.mrb[0].mxu0
        %v1749 = vpop.f32.mrb[0].mxu0
        %v1750 = vadd.f32 %v1445, %v1749
        %v1751 = vpop.f32.mrb[0].mxu0
        %1752 = vmatprep.mubr.bf16.mxu0 %v378
        %1753 = vmatmul.mubr.bf16.gmra.mrb[0].mxu0 %v357
        %v1754 = vpop.f32.mrb[0].mxu0
        %v1755 = vadd.f32 %v1450, %v1754
        %v1756 = vpop.f32.mrb[0].mxu0
        %v1757 = vpop.f32.mrb[0].mxu0
        %v1758 = vadd.f32 %v1453, %v1757
        %v1759 = vpop.f32.mrb[0].mxu0
        %1760 = vdwg.mxu0
        %1761 = vmatprep.subr.bf16.mxu0 0
        %1762 = vmatpush1.bf16.msra.mxu0 %v1568
        %1763 = vmatprep.subr.bf16.mxu0 0
        %1764 = vmatpush1.bf16.msra.mxu0 %v1569
        %1765 = vmatprep.subr.bf16.mxu0 0
        %1766 = vmatpush1.bf16.msra.mxu0 %v1570
        %1767 = vmatprep.subr.bf16.mxu0 0
        %1768 = vmatpush1.bf16.msra.mxu0 %v1571
        %1769 = vmatprep.subr.bf16.mxu0 0
        %1770 = vmatpush1.bf16.msra.mxu0 %v1572
        %1771 = vmatprep.subr.bf16.mxu0 0
        %1772 = vmatpush1.bf16.msra.mxu0 %v1573
        %1773 = vmatprep.subr.bf16.mxu0 0
        %1774 = vmatpush1.bf16.msra.mxu0 %v1574
        %1775 = vmatprep.subr.bf16.mxu0 0
        %1776 = vmatpush1.bf16.msra.mxu0 %v1575
        %1777 = vmatprep.subr.bf16.mxu0 0
        %1778 = vmatpush1.bf16.msra.mxu0 0
        %1779 = vmatprep.subr.bf16.mxu0 0
        %1780 = vmatpush1.bf16.msra.mxu0 0
        %1781 = vmatprep.subr.bf16.mxu0 0
        %1782 = vmatpush1.bf16.msra.mxu0 0
        %1783 = vmatprep.subr.bf16.mxu0 0
        %1784 = vmatpush1.bf16.msra.mxu0 0
        %1785 = vmatprep.subr.bf16.mxu0 0
        %1786 = vmatpush1.bf16.msra.mxu0 0
        %1787 = vmatprep.subr.bf16.mxu0 0
        %1788 = vmatpush1.bf16.msra.mxu0 0
        %1789 = vmatprep.subr.bf16.mxu0 0
        %1790 = vmatpush1.bf16.msra.mxu0 0
        %1791 = vmatprep.subr.bf16.mxu0 0
        %1792 = vmatpush1.bf16.msra.mxu0 0
        %1793 = vmatprep.mubr.bf16.mxu0 0
        %1794 = vmatmul.mubr.bf16.gmra.mrb[0].mxu0 %v344
        %v1795 = vpop.f32.mrb[0].mxu0
        %v1796 = vadd.f32 %v1635, %v1795
        %v1797 = vpop.f32.mrb[0].mxu0
        %v1798 = vpop.f32.mrb[0].mxu0
        %v1799 = vadd.f32 %v1638, %v1798
        %v1800 = vpop.f32.mrb[0].mxu0
        %1801 = vmatprep.mubr.bf16.mxu0 0
        %1802 = vmatmul.mubr.bf16.gmra.mrb[0].mxu0 %v345
        %v1803 = vpop.f32.mrb[0].mxu0
        %v1804 = vadd.f32 %v1643, %v1803
        %v1805 = vpop.f32.mrb[0].mxu0
        %v1806 = vpop.f32.mrb[0].mxu0
        %v1807 = vadd.f32 %v1646, %v1806
        %v1808 = vpop.f32.mrb[0].mxu0
        %1809 = vmatprep.mubr.bf16.mxu0 0
        %1810 = vmatmul.mubr.bf16.gmra.mrb[0].mxu0 %v346
        %v1811 = vpop.f32.mrb[0].mxu0
        %v1812 = vadd.f32 %v1651, %v1811
        %v1813 = vpop.f32.mrb[0].mxu0
        %v1814 = vpop.f32.mrb[0].mxu0
        %v1815 = vadd.f32 %v1654, %v1814
        %v1816 = vpop.f32.mrb[0].mxu0
        %1817 = vmatprep.mubr.bf16.mxu0 0
        %1818 = vmatmul.mubr.bf16.gmra.mrb[0].mxu0 %v347
        %v1819 = vpop.f32.mrb[0].mxu0
        %v1820 = vadd.f32 %v1659, %v1819
        %v1821 = vpop.f32.mrb[0].mxu0
        %v1822 = vpop.f32.mrb[0].mxu0
        %v1823 = vadd.f32 %v1662, %v1822
        %v1824 = vpop.f32.mrb[0].mxu0
        %1825 = vmatprep.mubr.bf16.mxu0 0
        %1826 = vmatmul.mubr.bf16.gmra.mrb[0].mxu0 %v348
        %v1827 = vpop.f32.mrb[0].mxu0
        %v1828 = vadd.f32 %v1667, %v1827
        %v1829 = vpop.f32.mrb[0].mxu0
        %v1830 = vpop.f32.mrb[0].mxu0
        %v1831 = vadd.f32 %v1670, %v1830
        %v1832 = vpop.f32.mrb[0].mxu0
        %1833 = vmatprep.mubr.bf16.mxu0 0
        %1834 = vmatmul.mubr.bf16.gmra.mrb[0].mxu0 %v349
        %v1835 = vpop.f32.mrb[0].mxu0
        %v1836 = vadd.f32 %v1675, %v1835
        %v1837 = vpop.f32.mrb[0].mxu0
        %v1838 = vpop.f32.mrb[0].mxu0
        %v1839 = vadd.f32 %v1678, %v1838
        %v1840 = vpop.f32.mrb[0].mxu0
        %1841 = vmatprep.mubr.bf16.mxu0 0
        %1842 = vmatmul.mubr.bf16.gmra.mrb[0].mxu0 %v350
        %v1843 = vpop.f32.mrb[0].mxu0
        %v1844 = vadd.f32 %v1683, %v1843
        %v1845 = vpop.f32.mrb[0].mxu0
        %v1846 = vpop.f32.mrb[0].mxu0
        %v1847 = vadd.f32 %v1686, %v1846
        %v1848 = vpop.f32.mrb[0].mxu0
        %1849 = vmatprep.mubr.bf16.mxu0 0
        %1850 = vmatmul.mubr.bf16.gmra.mrb[0].mxu0 %v351
        %v1851 = vpop.f32.mrb[0].mxu0
        %v1852 = vadd.f32 %v1691, %v1851
        %v1853 = vpop.f32.mrb[0].mxu0
        %v1854 = vpop.f32.mrb[0].mxu0
        %v1855 = vadd.f32 %v1694, %v1854
        %v1856 = vpop.f32.mrb[0].mxu0
        %1857 = vmatprep.mubr.bf16.mxu0 0
        %1858 = vmatmul.mubr.bf16.gmra.mrb[0].mxu0 %v352
        %v1859 = vpop.f32.mrb[0].mxu0
        %v1860 = vadd.f32 %v1699, %v1859
        %v1861 = vpop.f32.mrb[0].mxu0
        %v1862 = vpop.f32.mrb[0].mxu0
        %v1863 = vadd.f32 %v1702, %v1862
        %v1864 = vpop.f32.mrb[0].mxu0
        %1865 = vmatprep.mubr.bf16.mxu0 0
        %1866 = vmatmul.mubr.bf16.gmra.mrb[0].mxu0 %v353
        %v1867 = vpop.f32.mrb[0].mxu0
        %v1868 = vadd.f32 %v1707, %v1867
        %v1869 = vpop.f32.mrb[0].mxu0
        %v1870 = vpop.f32.mrb[0].mxu0
        %v1871 = vadd.f32 %v1710, %v1870
        %v1872 = vpop.f32.mrb[0].mxu0
        %1873 = vmatprep.mubr.bf16.mxu0 0
        %1874 = vmatmul.mubr.bf16.gmra.mrb[0].mxu0 %v354
        %v1875 = vpop.f32.mrb[0].mxu0
        %v1876 = vadd.f32 %v1715, %v1875
        %v1877 = vpop.f32.mrb[0].mxu0
        %v1878 = vpop.f32.mrb[0].mxu0
        %v1879 = vadd.f32 %v1718, %v1878
        %v1880 = vpop.f32.mrb[0].mxu0
        %1881 = vmatprep.mubr.bf16.mxu0 0
        %1882 = vmatmul.mubr.bf16.gmra.mrb[0].mxu0 %v355
        %v1883 = vpop.f32.mrb[0].mxu0
        %v1884 = vadd.f32 %v1723, %v1883
        %v1885 = vpop.f32.mrb[0].mxu0
        %v1886 = vpop.f32.mrb[0].mxu0
        %v1887 = vadd.f32 %v1726, %v1886
        %v1888 = vpop.f32.mrb[0].mxu0
        %1889 = vmatprep.mubr.bf16.mxu0 0
        %1890 = vmatmul.mubr.bf16.gmra.mrb[0].mxu0 %v356
        %v1891 = vpop.f32.mrb[0].mxu0
        %v1892 = vadd.f32 %v1731, %v1891
        %v1893 = vpop.f32.mrb[0].mxu0
        %v1894 = vpop.f32.mrb[0].mxu0
        %v1895 = vadd.f32 %v1734, %v1894
        %v1896 = vpop.f32.mrb[0].mxu0
        %1897 = vmatprep.mubr.bf16.mxu0 0
        %1898 = vmatmul.mubr.bf16.gmra.mrb[0].mxu0 %v357
        %v1899 = vpop.f32.mrb[0].mxu0
        %v1900 = vadd.f32 %v1739, %v1899
        %v1901 = vpop.f32.mrb[0].mxu0
        %v1902 = vpop.f32.mrb[0].mxu0
        %v1903 = vadd.f32 %v1742, %v1902
        %v1904 = vpop.f32.mrb[0].mxu0
        %1905 = vmatprep.mubr.bf16.mxu0 0
        %1906 = vmatmul.mubr.bf16.gmra.mrb[0].mxu0 %v378
        %v1907 = vpop.f32.mrb[0].mxu0
        %v1908 = vadd.f32 %v1747, %v1907
        %v1909 = vpop.f32.mrb[0].mxu0
        %v1910 = vpop.f32.mrb[0].mxu0
        %v1911 = vadd.f32 %v1750, %v1910
        %v1912 = vpop.f32.mrb[0].mxu0
        %1913 = vmatprep.mubr.bf16.mxu0 0
        %1914 = vmatmul.mubr.bf16.gmra.mrb[0].mxu0 %v384
        %v1915 = vpop.f32.mrb[0].mxu0
        %v1916 = vadd.f32 %v1755, %v1915
        %v1917 = vpop.f32.mrb[0].mxu0
        %v1918 = vpop.f32.mrb[0].mxu0
        %v1919 = vadd.f32 %v1758, %v1918
        %v1920 = vpop.f32.mrb[0].mxu0
        %1921 = vdwg.mxu0
        %vm1938 = vcmask 1042432
        %vm1939 = vcmask 1046532
        %vm1940 = vmor %vm1938, %vm1939
        %v1941 = vrot.slane %v224, 5
        %v1942 = vrot.slane %v1941, 4
        %v1943 = vrot.slane %v225, 5
        %v1944 = vsel %vm1940, %v1942, %v1943
        %v1945 = vrot.slane %v1943, 4
        %v1946 = vrot.slane %v226, 5
        %v1947 = vsel %vm1940, %v1945, %v1946
        %v1948 = vrot.slane %v227, 5
        %v1949 = vrot.slane %v1948, 4
        %v1950 = vrot.slane %v228, 5
        %v1951 = vsel %vm1940, %v1949, %v1950
        %v1952 = vrot.slane %v1950, 4
        %v1953 = vrot.slane %v229, 5
        %v1954 = vsel %vm1940, %v1952, %v1953
        %v1955 = vrot.slane %v230, 5
        %v1956 = vrot.slane %v1955, 4
        %v1957 = vrot.slane %v231, 5
        %v1958 = vsel %vm1940, %v1956, %v1957
        %v1959 = vrot.slane %v1957, 4
        %v1960 = vrot.slane %v232, 5
        %v1961 = vsel %vm1940, %v1959, %v1960
        %v1962 = vrot.slane %v233, 5
        %v1963 = vrot.slane %v1962, 4
        %v1964 = vrot.slane %v234, 5
        %v1965 = vsel %vm1940, %v1963, %v1964
        %v1966 = vrot.slane %v1964, 4
        %v1967 = vrot.slane %v235, 5
        %v1968 = vsel %vm1940, %v1966, %v1967
        %v1969 = vrot.slane %v236, 5
        %v1970 = vrot.slane %v1969, 4
        %v1971 = vrot.slane %v237, 5
        %v1972 = vsel %vm1940, %v1970, %v1971
        %v1973 = vrot.slane %v1971, 4
        %v1974 = vrot.slane %v238, 5
        %v1975 = vsel %vm1940, %v1973, %v1974
        %v1976 = vrot.slane %v239, 5
        %v1977 = vrot.slane %v1976, 4
        %v1978 = vrot.slane %v240, 5
        %v1979 = vsel %vm1940, %v1977, %v1978
        %v1980 = vrot.slane %v1978, 4
        %v1981 = vrot.slane %v241, 5
        %v1982 = vsel %vm1940, %v1980, %v1981
        %v1983 = vrot.slane %v242, 5
        %v1984 = vrot.slane %v1983, 4
        %v1985 = vrot.slane %v243, 5
        %v1986 = vsel %vm1940, %v1984, %v1985
        %v1987 = vrot.slane %v1985, 4
        %v1988 = vrot.slane %v244, 5
        %v1989 = vsel %vm1940, %v1987, %v1988
        %v1990 = vrot.slane %v245, 5
        %v1991 = vrot.slane %v1990, 4
        %v1992 = vrot.slane %v246, 5
        %v1993 = vsel %vm1940, %v1991, %v1992
        %v1994 = vrot.slane %v1992, 4
        %v1995 = vrot.slane %v247, 5
        %v1996 = vsel %vm1940, %v1994, %v1995
        %v1997 = vrot.slane %v248, 5
        %v1998 = vrot.slane %v1997, 4
        %v1999 = vrot.slane %v249, 5
        %v2000 = vsel %vm1940, %v1998, %v1999
        %v2001 = vrot.slane %v1999, 4
        %v2002 = vrot.slane %v250, 5
        %v2003 = vsel %vm1940, %v2001, %v2002
        %v2004 = vrot.slane %v251, 5
        %v2005 = vrot.slane %v2004, 4
        %v2006 = vrot.slane %v252, 5
        %v2007 = vsel %vm1940, %v2005, %v2006
        %v2008 = vrot.slane %v2006, 4
        %v2009 = vrot.slane %v253, 5
        %v2010 = vsel %vm1940, %v2008, %v2009
        %v2011 = vrot.slane %v254, 5
        %v2012 = vrot.slane %v2011, 4
        %v2013 = vrot.slane %v255, 5
        %v2014 = vsel %vm1940, %v2012, %v2013
        %v2015 = vrot.slane %v2013, 4
        %v2016 = vrot.slane %v256, 5
        %v2017 = vsel %vm1940, %v2015, %v2016
        %v2018 = vrot.slane %v257, 5
        %v2019 = vrot.slane %v2018, 4
        %v2020 = vrot.slane %v258, 5
        %v2021 = vsel %vm1940, %v2019, %v2020
        %v2022 = vrot.slane %v2020, 4
        %v2023 = vrot.slane %v259, 5
        %v2024 = vsel %vm1940, %v2022, %v2023
        %v2025 = vrot.slane %v260, 5
        %v2026 = vrot.slane %v2025, 4
        %v2027 = vrot.slane %v261, 5
        %v2028 = vsel %vm1940, %v2026, %v2027
        %v2029 = vrot.slane %v2027, 4
        %v2030 = vrot.slane %v262, 5
        %v2031 = vsel %vm1940, %v2029, %v2030
        %v2032 = vrot.slane %v263, 5
        %v2033 = vrot.slane %v2032, 4
        %v2034 = vrot.slane %v264, 5
        %v2035 = vsel %vm1940, %v2033, %v2034
        %v2036 = vrot.slane %v2034, 4
        %v2037 = vrot.slane %v265, 5
        %v2038 = vsel %vm1940, %v2036, %v2037
        %v2039 = vrot.slane %v266, 5
        %v2040 = vrot.slane %v2039, 4
        %v2041 = vrot.slane %v267, 5
        %v2042 = vsel %vm1940, %v2040, %v2041
        %v2043 = vrot.slane %v2041, 4
        %v2044 = vrot.slane %v268, 5
        %v2045 = vsel %vm1940, %v2043, %v2044
        %v2046 = vrot.slane %v269, 5
        %v2047 = vrot.slane %v2046, 4
        %v2048 = vrot.slane %v270, 5
        %v2049 = vsel %vm1940, %v2047, %v2048
        %v2050 = vrot.slane %v2048, 4
        %v2051 = vrot.slane %v271, 5
        %v2052 = vsel %vm1940, %v2050, %v2051
        %v2054 = vrot.slane %v272, 5
        %v2055 = vrot.slane %v2054, 4
        %v2056 = vrot.slane %v273, 5
        %v2057 = vsel %vm1940, %v2055, %v2056
        %v2058 = vrot.slane %v2056, 4
        %v2059 = vrot.slane %v274, 5
        %v2060 = vsel %vm1940, %v2058, %v2059
        %v2062 = vrot.slane %v275, 5
        %v2063 = vrot.slane %v2062, 4
        %v2064 = vrot.slane %v276, 5
        %v2065 = vsel %vm1940, %v2063, %v2064
        %v2066 = vrot.slane %v2064, 4
        %v2067 = vrot.slane %v277, 5
        %v2068 = vsel %vm1940, %v2066, %v2067
        %v2069 = vunpack.c.l.b16 %v1944
        %v2070 = vunpack.c.l.b16 %v1947
        %v2071 = vunpack.c.l.b16 %v1951
        %v2072 = vunpack.c.l.b16 %v1954
        %v2073 = vunpack.c.l.b16 %v1958
        %v2074 = vunpack.c.l.b16 %v1961
        %v2075 = vunpack.c.l.b16 %v1965
        %v2076 = vunpack.c.l.b16 %v1968
        %v2077 = vunpack.c.l.b16 %v1972
        %v2078 = vunpack.c.l.b16 %v1975
        %v2079 = vunpack.c.l.b16 %v1979
        %v2080 = vunpack.c.l.b16 %v1982
        %v2081 = vunpack.c.l.b16 %v1986
        %v2082 = vunpack.c.l.b16 %v1989
        %v2083 = vunpack.c.l.b16 %v1993
        %v2084 = vunpack.c.l.b16 %v1996
        %v2085 = vunpack.c.l.b16 %v2000
        %v2086 = vunpack.c.l.b16 %v2003
        %v2087 = vunpack.c.l.b16 %v2007
        %v2088 = vunpack.c.l.b16 %v2010
        %v2089 = vunpack.c.l.b16 %v2014
        %v2090 = vunpack.c.l.b16 %v2017
        %v2091 = vunpack.c.l.b16 %v2021
        %v2092 = vunpack.c.l.b16 %v2024
        %v2093 = vunpack.c.l.b16 %v2028
        %v2094 = vunpack.c.l.b16 %v2031
        %v2095 = vunpack.c.l.b16 %v2035
        %v2096 = vunpack.c.l.b16 %v2038
        %v2097 = vunpack.c.l.b16 %v2042
        %v2098 = vunpack.c.l.b16 %v2045
        %v2099 = vunpack.c.l.b16 %v2049
        %v2100 = vunpack.c.l.b16 %v2052
        %v2101 = vpack.c.b16 %v2070, %v2069
        %v2102 = vpack.c.b16 %v2072, %v2071
        %v2103 = vpack.c.b16 %v2074, %v2073
        %v2104 = vpack.c.b16 %v2076, %v2075
        %v2105 = vpack.c.b16 %v2078, %v2077
        %v2106 = vpack.c.b16 %v2080, %v2079
        %v2107 = vpack.c.b16 %v2082, %v2081
        %v2108 = vpack.c.b16 %v2084, %v2083
        %v2109 = vpack.c.b16 %v2086, %v2085
        %v2110 = vpack.c.b16 %v2088, %v2087
        %v2111 = vpack.c.b16 %v2090, %v2089
        %v2112 = vpack.c.b16 %v2092, %v2091
        %v2113 = vpack.c.b16 %v2094, %v2093
        %v2114 = vpack.c.b16 %v2096, %v2095
        %v2115 = vpack.c.b16 %v2098, %v2097
        %v2116 = vpack.c.b16 %v2100, %v2099
        %v2133 = vunpack.c.l.b16 %v2057
        %v2134 = vunpack.c.l.b16 %v2060
        %v2135 = vpack.c.b16 %v2134, %v2133
        %v2137 = vunpack.c.l.b16 %v2065
        %v2138 = vunpack.c.l.b16 %v2068
        %v2139 = vpack.c.b16 %v2138, %v2137
        %s2141 = scalar_lea.vmem %s1, 384
        %v2142 = vld [vmem:[%s2141] sm:$0xf]
        %v2143 = vld [vmem:[%s2141 + $0x4] sm:$0xf]
        %v2144 = vld [vmem:[%s2141 + $0x8] sm:$0xf]
        %v2145 = vld [vmem:[%s2141 + $0xc] sm:$0xf]
        %v2146 = vld [vmem:[%s2141 + $0x10] sm:$0xf]
        %v2147 = vld [vmem:[%s2141 + $0x14] sm:$0xf]
        %v2148 = vld [vmem:[%s2141 + $0x18] sm:$0xf]
        %v2149 = vld [vmem:[%s2141 + $0x1c] sm:$0xf]
        %v2150 = vld [vmem:[%s2141 + $0x20] sm:$0xf]
        %v2151 = vld [vmem:[%s2141 + $0x24] sm:$0xf]
        %v2152 = vld [vmem:[%s2141 + $0x28] sm:$0xf]
        %v2153 = vld [vmem:[%s2141 + $0x2c] sm:$0xf]
        %v2154 = vld [vmem:[%s2141 + $0x30] sm:$0xf]
        %v2155 = vld [vmem:[%s2141 + $0x34] sm:$0xf]
        %v2156 = vld [vmem:[%s2141 + $0x38] sm:$0xf]
        %v2157 = vld [vmem:[%s2141 + $0x3c] sm:$0xf]
        %v2158 = vld [vmem:[%s2141 + $0x40] sm:$0xf]
        %v2159 = vld [vmem:[%s2141 + $0x44] sm:$0xf]
        %v2160 = vld [vmem:[%s2141 + $0x48] sm:$0xf]
        %v2161 = vld [vmem:[%s2141 + $0x4c] sm:$0xf]
        %v2162 = vld [vmem:[%s2141 + $0x50] sm:$0xf]
        %v2163 = vld [vmem:[%s2141 + $0x54] sm:$0xf]
        %v2164 = vld [vmem:[%s2141 + $0x58] sm:$0xf]
        %v2165 = vld [vmem:[%s2141 + $0x5c] sm:$0xf]
        %v2166 = vld [vmem:[%s2141 + $0x60] sm:$0xf]
        %v2167 = vld [vmem:[%s2141 + $0x64] sm:$0xf]
        %v2168 = vld [vmem:[%s2141 + $0x68] sm:$0xf]
        %v2169 = vld [vmem:[%s2141 + $0x6c] sm:$0xf]
        %v2170 = vld [vmem:[%s2141 + $0x70] sm:$0xf]
        %v2171 = vld [vmem:[%s2141 + $0x74] sm:$0xf]
        %v2172 = vld [vmem:[%s2141 + $0x78] sm:$0xf]
        %v2173 = vld [vmem:[%s2141 + $0x7c] sm:$0xf]
        %v2174 = vld [vmem:[%s2141 + $0x80] sm:$0xf]
        %v2175 = vld [vmem:[%s2141 + $0x84] sm:$0xf]
        %v2176 = vld [vmem:[%s2141 + $0x88] sm:$0xf]
        %v2177 = vld [vmem:[%s2141 + $0x8c] sm:$0xf]
        %v2178 = vld [vmem:[%s2141 + $0x90] sm:$0xf]
        %v2179 = vld [vmem:[%s2141 + $0x94] sm:$0xf]
        %v2180 = vld [vmem:[%s2141 + $0x98] sm:$0xf]
        %v2181 = vld [vmem:[%s2141 + $0x9c] sm:$0xf]
        %v2182 = vld [vmem:[%s2141 + $0xa0] sm:$0xf]
        %v2183 = vld [vmem:[%s2141 + $0xa4] sm:$0xf]
        %v2184 = vld [vmem:[%s2141 + $0xa8] sm:$0xf]
        %v2185 = vld [vmem:[%s2141 + $0xac] sm:$0xf]
        %v2186 = vld [vmem:[%s2141 + $0xb0] sm:$0xf]
        %v2187 = vld [vmem:[%s2141 + $0xb4] sm:$0xf]
        %v2188 = vld [vmem:[%s2141 + $0xb8] sm:$0xf]
        %v2189 = vld [vmem:[%s2141 + $0xbc] sm:$0xf]
        %v2238 = vunpack.c.l.b16 %v2142
        %v2239 = vunpack.c.l.b16 %v2143
        %v2240 = vunpack.c.l.b16 %v2144
        %v2241 = vunpack.c.l.b16 %v2145
        %v2242 = vunpack.c.l.b16 %v2146
        %v2243 = vunpack.c.l.b16 %v2147
        %v2244 = vunpack.c.l.b16 %v2148
        %v2245 = vunpack.c.l.b16 %v2149
        %v2246 = vunpack.c.l.b16 %v2150
        %v2247 = vunpack.c.l.b16 %v2151
        %v2248 = vunpack.c.l.b16 %v2152
        %v2249 = vunpack.c.l.b16 %v2153
        %v2250 = vunpack.c.l.b16 %v2154
        %v2251 = vunpack.c.l.b16 %v2155
        %v2252 = vunpack.c.l.b16 %v2156
        %v2253 = vunpack.c.l.b16 %v2157
        %v2254 = vunpack.c.l.b16 %v2158
        %v2255 = vunpack.c.l.b16 %v2159
        %v2256 = vunpack.c.l.b16 %v2160
        %v2257 = vunpack.c.l.b16 %v2161
        %v2258 = vunpack.c.l.b16 %v2162
        %v2259 = vunpack.c.l.b16 %v2163
        %v2260 = vunpack.c.l.b16 %v2164
        %v2261 = vunpack.c.l.b16 %v2165
        %v2262 = vunpack.c.l.b16 %v2166
        %v2263 = vunpack.c.l.b16 %v2167
        %v2264 = vunpack.c.l.b16 %v2168
        %v2265 = vunpack.c.l.b16 %v2169
        %v2266 = vunpack.c.l.b16 %v2170
        %v2267 = vunpack.c.l.b16 %v2171
        %v2268 = vunpack.c.l.b16 %v2172
        %v2269 = vunpack.c.l.b16 %v2173
        %v2270 = vunpack.c.l.b16 %v2174
        %v2271 = vunpack.c.l.b16 %v2175
        %v2272 = vunpack.c.l.b16 %v2176
        %v2273 = vunpack.c.l.b16 %v2177
        %v2274 = vunpack.c.l.b16 %v2178
        %v2275 = vunpack.c.l.b16 %v2179
        %v2276 = vunpack.c.l.b16 %v2180
        %v2277 = vunpack.c.l.b16 %v2181
        %v2278 = vunpack.c.l.b16 %v2182
        %v2279 = vunpack.c.l.b16 %v2183
        %v2280 = vunpack.c.l.b16 %v2184
        %v2281 = vunpack.c.l.b16 %v2185
        %v2282 = vunpack.c.l.b16 %v2186
        %v2283 = vunpack.c.l.b16 %v2187
        %v2284 = vunpack.c.l.b16 %v2188
        %v2285 = vunpack.c.l.b16 %v2189
        %v2286 = vpack.c.b16 %v2239, %v2238
        %v2287 = vpack.c.b16 %v2241, %v2240
        %v2288 = vpack.c.b16 %v2243, %v2242
        %v2289 = vpack.c.b16 %v2245, %v2244
        %v2290 = vpack.c.b16 %v2247, %v2246
        %v2291 = vpack.c.b16 %v2249, %v2248
        %v2292 = vpack.c.b16 %v2251, %v2250
        %v2293 = vpack.c.b16 %v2253, %v2252
        %v2294 = vpack.c.b16 %v2255, %v2254
        %v2295 = vpack.c.b16 %v2257, %v2256
        %v2296 = vpack.c.b16 %v2259, %v2258
        %v2297 = vpack.c.b16 %v2261, %v2260
        %v2298 = vpack.c.b16 %v2263, %v2262
        %v2299 = vpack.c.b16 %v2265, %v2264
        %v2300 = vpack.c.b16 %v2267, %v2266
        %v2301 = vpack.c.b16 %v2269, %v2268
        %v2302 = vpack.c.b16 %v2271, %v2270
        %v2303 = vpack.c.b16 %v2273, %v2272
        %v2304 = vpack.c.b16 %v2275, %v2274
        %v2305 = vpack.c.b16 %v2277, %v2276
        %v2306 = vpack.c.b16 %v2279, %v2278
        %v2307 = vpack.c.b16 %v2281, %v2280
        %v2308 = vpack.c.b16 %v2283, %v2282
        %v2309 = vpack.c.b16 %v2285, %v2284
        %2334 = vmatprep.subr.bf16.mxu0 0
        %2335 = vmatpush1.bf16.msra.mxu0 %v2286
        %2336 = vmatprep.subr.bf16.mxu0 0
        %2337 = vmatpush1.bf16.msra.mxu0 %v2287
        %2338 = vmatprep.subr.bf16.mxu0 0
        %2339 = vmatpush1.bf16.msra.mxu0 %v2288
        %2340 = vmatprep.subr.bf16.mxu0 0
        %2341 = vmatpush1.bf16.msra.mxu0 %v2289
        %2342 = vmatprep.subr.bf16.mxu0 0
        %2343 = vmatpush1.bf16.msra.mxu0 %v2290
        %2344 = vmatprep.subr.bf16.mxu0 0
        %2345 = vmatpush1.bf16.msra.mxu0 %v2291
        %2346 = vmatprep.subr.bf16.mxu0 0
        %2347 = vmatpush1.bf16.msra.mxu0 %v2292
        %2348 = vmatprep.subr.bf16.mxu0 0
        %2349 = vmatpush1.bf16.msra.mxu0 %v2293
        %2350 = vmatprep.subr.bf16.mxu0 0
        %2351 = vmatpush1.bf16.msra.mxu0 %v2294
        %2352 = vmatprep.subr.bf16.mxu0 0
        %2353 = vmatpush1.bf16.msra.mxu0 %v2295
        %2354 = vmatprep.subr.bf16.mxu0 0
        %2355 = vmatpush1.bf16.msra.mxu0 %v2296
        %2356 = vmatprep.subr.bf16.mxu0 0
        %2357 = vmatpush1.bf16.msra.mxu0 %v2297
        %2358 = vmatprep.subr.bf16.mxu0 0
        %2359 = vmatpush1.bf16.msra.mxu0 %v2298
        %2360 = vmatprep.subr.bf16.mxu0 0
        %2361 = vmatpush1.bf16.msra.mxu0 %v2299
        %2362 = vmatprep.subr.bf16.mxu0 0
        %2363 = vmatpush1.bf16.msra.mxu0 %v2300
        %2364 = vmatprep.subr.bf16.mxu0 0
        %2365 = vmatpush1.bf16.msra.mxu0 %v2301
        %2366 = vmatprep.mubr.bf16.mxu0 %v2102
        %2367 = vmatmul.mubr.bf16.gmra.mrb[0].mxu0 %v2101
        %v2368 = vpop.f32.mrb[0].mxu0
        %v2369 = vadd.f32 0.0, %v2368
        %v2370 = vpop.f32.mrb[0].mxu0
        %v2371 = vpop.f32.mrb[0].mxu0
        %v2372 = vadd.f32 0.0, %v2371
        %v2373 = vpop.f32.mrb[0].mxu0
        %2374 = vmatprep.mubr.bf16.mxu0 %v2103
        %2375 = vmatmul.mubr.bf16.gmra.mrb[0].mxu0 %v2102
        %v2376 = vpop.f32.mrb[0].mxu0
        %v2377 = vadd.f32 0.0, %v2376
        %v2378 = vpop.f32.mrb[0].mxu0
        %v2379 = vpop.f32.mrb[0].mxu0
        %v2380 = vadd.f32 0.0, %v2379
        %v2381 = vpop.f32.mrb[0].mxu0
        %2382 = vmatprep.mubr.bf16.mxu0 %v2104
        %2383 = vmatmul.mubr.bf16.gmra.mrb[0].mxu0 %v2103
        %v2384 = vpop.f32.mrb[0].mxu0
        %v2385 = vadd.f32 0.0, %v2384
        %v2386 = vpop.f32.mrb[0].mxu0
        %v2387 = vpop.f32.mrb[0].mxu0
        %v2388 = vadd.f32 0.0, %v2387
        %v2389 = vpop.f32.mrb[0].mxu0
        %2390 = vmatprep.mubr.bf16.mxu0 %v2105
        %2391 = vmatmul.mubr.bf16.gmra.mrb[0].mxu0 %v2104
        %v2392 = vpop.f32.mrb[0].mxu0
        %v2393 = vadd.f32 0.0, %v2392
        %v2394 = vpop.f32.mrb[0].mxu0
        %v2395 = vpop.f32.mrb[0].mxu0
        %v2396 = vadd.f32 0.0, %v2395
        %v2397 = vpop.f32.mrb[0].mxu0
        %2398 = vmatprep.mubr.bf16.mxu0 %v2106
        %2399 = vmatmul.mubr.bf16.gmra.mrb[0].mxu0 %v2105
        %v2400 = vpop.f32.mrb[0].mxu0
        %v2401 = vadd.f32 0.0, %v2400
        %v2402 = vpop.f32.mrb[0].mxu0
        %v2403 = vpop.f32.mrb[0].mxu0
        %v2404 = vadd.f32 0.0, %v2403
        %v2405 = vpop.f32.mrb[0].mxu0
        %2406 = vmatprep.mubr.bf16.mxu0 %v2107
        %2407 = vmatmul.mubr.bf16.gmra.mrb[0].mxu0 %v2106
        %v2408 = vpop.f32.mrb[0].mxu0
        %v2409 = vadd.f32 0.0, %v2408
        %v2410 = vpop.f32.mrb[0].mxu0
        %v2411 = vpop.f32.mrb[0].mxu0
        %v2412 = vadd.f32 0.0, %v2411
        %v2413 = vpop.f32.mrb[0].mxu0
        %2414 = vmatprep.mubr.bf16.mxu0 %v2108
        %2415 = vmatmul.mubr.bf16.gmra.mrb[0].mxu0 %v2107
        %v2416 = vpop.f32.mrb[0].mxu0
        %v2417 = vadd.f32 0.0, %v2416
        %v2418 = vpop.f32.mrb[0].mxu0
        %v2419 = vpop.f32.mrb[0].mxu0
        %v2420 = vadd.f32 0.0, %v2419
        %v2421 = vpop.f32.mrb[0].mxu0
        %2422 = vmatprep.mubr.bf16.mxu0 %v2109
        %2423 = vmatmul.mubr.bf16.gmra.mrb[0].mxu0 %v2108
        %v2424 = vpop.f32.mrb[0].mxu0
        %v2425 = vadd.f32 0.0, %v2424
        %v2426 = vpop.f32.mrb[0].mxu0
        %v2427 = vpop.f32.mrb[0].mxu0
        %v2428 = vadd.f32 0.0, %v2427
        %v2429 = vpop.f32.mrb[0].mxu0
        %2430 = vmatprep.mubr.bf16.mxu0 %v2110
        %2431 = vmatmul.mubr.bf16.gmra.mrb[0].mxu0 %v2109
        %v2432 = vpop.f32.mrb[0].mxu0
        %v2433 = vadd.f32 0.0, %v2432
        %v2434 = vpop.f32.mrb[0].mxu0
        %v2435 = vpop.f32.mrb[0].mxu0
        %v2436 = vadd.f32 0.0, %v2435
        %v2437 = vpop.f32.mrb[0].mxu0
        %2438 = vmatprep.mubr.bf16.mxu0 %v2111
        %2439 = vmatmul.mubr.bf16.gmra.mrb[0].mxu0 %v2110
        %v2440 = vpop.f32.mrb[0].mxu0
        %v2441 = vadd.f32 0.0, %v2440
        %v2442 = vpop.f32.mrb[0].mxu0
        %v2443 = vpop.f32.mrb[0].mxu0
        %v2444 = vadd.f32 0.0, %v2443
        %v2445 = vpop.f32.mrb[0].mxu0
        %2446 = vmatprep.mubr.bf16.mxu0 %v2112
        %2447 = vmatmul.mubr.bf16.gmra.mrb[0].mxu0 %v2111
        %v2448 = vpop.f32.mrb[0].mxu0
        %v2449 = vadd.f32 0.0, %v2448
        %v2450 = vpop.f32.mrb[0].mxu0
        %v2451 = vpop.f32.mrb[0].mxu0
        %v2452 = vadd.f32 0.0, %v2451
        %v2453 = vpop.f32.mrb[0].mxu0
        %2454 = vmatprep.mubr.bf16.mxu0 %v2113
        %2455 = vmatmul.mubr.bf16.gmra.mrb[0].mxu0 %v2112
        %v2456 = vpop.f32.mrb[0].mxu0
        %v2457 = vadd.f32 0.0, %v2456
        %v2458 = vpop.f32.mrb[0].mxu0
        %v2459 = vpop.f32.mrb[0].mxu0
        %v2460 = vadd.f32 0.0, %v2459
        %v2461 = vpop.f32.mrb[0].mxu0
        %2462 = vmatprep.mubr.bf16.mxu0 %v2114
        %2463 = vmatmul.mubr.bf16.gmra.mrb[0].mxu0 %v2113
        %v2464 = vpop.f32.mrb[0].mxu0
        %v2465 = vadd.f32 0.0, %v2464
        %v2466 = vpop.f32.mrb[0].mxu0
        %v2467 = vpop.f32.mrb[0].mxu0
        %v2468 = vadd.f32 0.0, %v2467
        %v2469 = vpop.f32.mrb[0].mxu0
        %2470 = vmatprep.mubr.bf16.mxu0 %v2115
        %2471 = vmatmul.mubr.bf16.gmra.mrb[0].mxu0 %v2114
        %v2472 = vpop.f32.mrb[0].mxu0
        %v2473 = vadd.f32 0.0, %v2472
        %v2474 = vpop.f32.mrb[0].mxu0
        %v2475 = vpop.f32.mrb[0].mxu0
        %v2476 = vadd.f32 0.0, %v2475
        %v2477 = vpop.f32.mrb[0].mxu0
        %2478 = vmatprep.mubr.bf16.mxu0 %v2116
        %2479 = vmatmul.mubr.bf16.gmra.mrb[0].mxu0 %v2115
        %v2480 = vpop.f32.mrb[0].mxu0
        %v2481 = vadd.f32 0.0, %v2480
        %v2482 = vpop.f32.mrb[0].mxu0
        %v2483 = vpop.f32.mrb[0].mxu0
        %v2484 = vadd.f32 0.0, %v2483
        %v2485 = vpop.f32.mrb[0].mxu0
        %2486 = vmatprep.mubr.bf16.mxu0 %v2135
        %2487 = vmatmul.mubr.bf16.gmra.mrb[0].mxu0 %v2116
        %v2488 = vpop.f32.mrb[0].mxu0
        %v2489 = vadd.f32 0.0, %v2488
        %v2490 = vpop.f32.mrb[0].mxu0
        %v2491 = vpop.f32.mrb[0].mxu0
        %v2492 = vadd.f32 0.0, %v2491
        %v2493 = vpop.f32.mrb[0].mxu0
        %2494 = vdwg.mxu0
        %2495 = vmatprep.subr.bf16.mxu0 0
        %2496 = vmatpush1.bf16.msra.mxu0 %v2302
        %2497 = vmatprep.subr.bf16.mxu0 0
        %2498 = vmatpush1.bf16.msra.mxu0 %v2303
        %2499 = vmatprep.subr.bf16.mxu0 0
        %2500 = vmatpush1.bf16.msra.mxu0 %v2304
        %2501 = vmatprep.subr.bf16.mxu0 0
        %2502 = vmatpush1.bf16.msra.mxu0 %v2305
        %2503 = vmatprep.subr.bf16.mxu0 0
        %2504 = vmatpush1.bf16.msra.mxu0 %v2306
        %2505 = vmatprep.subr.bf16.mxu0 0
        %2506 = vmatpush1.bf16.msra.mxu0 %v2307
        %2507 = vmatprep.subr.bf16.mxu0 0
        %2508 = vmatpush1.bf16.msra.mxu0 %v2308
        %2509 = vmatprep.subr.bf16.mxu0 0
        %2510 = vmatpush1.bf16.msra.mxu0 %v2309
        %2511 = vmatprep.subr.bf16.mxu0 0
        %2512 = vmatpush1.bf16.msra.mxu0 0
        %2513 = vmatprep.subr.bf16.mxu0 0
        %2514 = vmatpush1.bf16.msra.mxu0 0
        %2515 = vmatprep.subr.bf16.mxu0 0
        %2516 = vmatpush1.bf16.msra.mxu0 0
        %2517 = vmatprep.subr.bf16.mxu0 0
        %2518 = vmatpush1.bf16.msra.mxu0 0
        %2519 = vmatprep.subr.bf16.mxu0 0
        %2520 = vmatpush1.bf16.msra.mxu0 0
        %2521 = vmatprep.subr.bf16.mxu0 0
        %2522 = vmatpush1.bf16.msra.mxu0 0
        %2523 = vmatprep.subr.bf16.mxu0 0
        %2524 = vmatpush1.bf16.msra.mxu0 0
        %2525 = vmatprep.subr.bf16.mxu0 0
        %2526 = vmatpush1.bf16.msra.mxu0 0
        %2527 = vmatprep.mubr.bf16.mxu0 0
        %2528 = vmatmul.mubr.bf16.gmra.mrb[0].mxu0 %v2103
        %v2529 = vpop.f32.mrb[0].mxu0
        %v2530 = vadd.f32 %v2369, %v2529
        %v2531 = vpop.f32.mrb[0].mxu0
        %v2532 = vpop.f32.mrb[0].mxu0
        %v2533 = vadd.f32 %v2372, %v2532
        %v2534 = vpop.f32.mrb[0].mxu0
        %2535 = vmatprep.mubr.bf16.mxu0 0
        %2536 = vmatmul.mubr.bf16.gmra.mrb[0].mxu0 %v2104
        %v2537 = vpop.f32.mrb[0].mxu0
        %v2538 = vadd.f32 %v2377, %v2537
        %v2539 = vpop.f32.mrb[0].mxu0
        %v2540 = vpop.f32.mrb[0].mxu0
        %v2541 = vadd.f32 %v2380, %v2540
        %v2542 = vpop.f32.mrb[0].mxu0
        %2543 = vmatprep.mubr.bf16.mxu0 0
        %2544 = vmatmul.mubr.bf16.gmra.mrb[0].mxu0 %v2105
        %v2545 = vpop.f32.mrb[0].mxu0
        %v2546 = vadd.f32 %v2385, %v2545
        %v2547 = vpop.f32.mrb[0].mxu0
        %v2548 = vpop.f32.mrb[0].mxu0
        %v2549 = vadd.f32 %v2388, %v2548
        %v2550 = vpop.f32.mrb[0].mxu0
        %2551 = vmatprep.mubr.bf16.mxu0 0
        %2552 = vmatmul.mubr.bf16.gmra.mrb[0].mxu0 %v2106
        %v2553 = vpop.f32.mrb[0].mxu0
        %v2554 = vadd.f32 %v2393, %v2553
        %v2555 = vpop.f32.mrb[0].mxu0
        %v2556 = vpop.f32.mrb[0].mxu0
        %v2557 = vadd.f32 %v2396, %v2556
        %v2558 = vpop.f32.mrb[0].mxu0
        %2559 = vmatprep.mubr.bf16.mxu0 0
        %2560 = vmatmul.mubr.bf16.gmra.mrb[0].mxu0 %v2107
        %v2561 = vpop.f32.mrb[0].mxu0
        %v2562 = vadd.f32 %v2401, %v2561
        %v2563 = vpop.f32.mrb[0].mxu0
        %v2564 = vpop.f32.mrb[0].mxu0
        %v2565 = vadd.f32 %v2404, %v2564
        %v2566 = vpop.f32.mrb[0].mxu0
        %2567 = vmatprep.mubr.bf16.mxu0 0
        %2568 = vmatmul.mubr.bf16.gmra.mrb[0].mxu0 %v2108
        %v2569 = vpop.f32.mrb[0].mxu0
        %v2570 = vadd.f32 %v2409, %v2569
        %v2571 = vpop.f32.mrb[0].mxu0
        %v2572 = vpop.f32.mrb[0].mxu0
        %v2573 = vadd.f32 %v2412, %v2572
        %v2574 = vpop.f32.mrb[0].mxu0
        %2575 = vmatprep.mubr.bf16.mxu0 0
        %2576 = vmatmul.mubr.bf16.gmra.mrb[0].mxu0 %v2109
        %v2577 = vpop.f32.mrb[0].mxu0
        %v2578 = vadd.f32 %v2417, %v2577
        %v2579 = vpop.f32.mrb[0].mxu0
        %v2580 = vpop.f32.mrb[0].mxu0
        %v2581 = vadd.f32 %v2420, %v2580
        %v2582 = vpop.f32.mrb[0].mxu0
        %2583 = vmatprep.mubr.bf16.mxu0 0
        %2584 = vmatmul.mubr.bf16.gmra.mrb[0].mxu0 %v2110
        %v2585 = vpop.f32.mrb[0].mxu0
        %v2586 = vadd.f32 %v2425, %v2585
        %v2587 = vpop.f32.mrb[0].mxu0
        %v2588 = vpop.f32.mrb[0].mxu0
        %v2589 = vadd.f32 %v2428, %v2588
        %v2590 = vpop.f32.mrb[0].mxu0
        %2591 = vmatprep.mubr.bf16.mxu0 0
        %2592 = vmatmul.mubr.bf16.gmra.mrb[0].mxu0 %v2111
        %v2593 = vpop.f32.mrb[0].mxu0
        %v2594 = vadd.f32 %v2433, %v2593
        %v2595 = vpop.f32.mrb[0].mxu0
        %v2596 = vpop.f32.mrb[0].mxu0
        %v2597 = vadd.f32 %v2436, %v2596
        %v2598 = vpop.f32.mrb[0].mxu0
        %2599 = vmatprep.mubr.bf16.mxu0 0
        %2600 = vmatmul.mubr.bf16.gmra.mrb[0].mxu0 %v2112
        %v2601 = vpop.f32.mrb[0].mxu0
        %v2602 = vadd.f32 %v2441, %v2601
        %v2603 = vpop.f32.mrb[0].mxu0
        %v2604 = vpop.f32.mrb[0].mxu0
        %v2605 = vadd.f32 %v2444, %v2604
        %v2606 = vpop.f32.mrb[0].mxu0
        %2607 = vmatprep.mubr.bf16.mxu0 0
        %2608 = vmatmul.mubr.bf16.gmra.mrb[0].mxu0 %v2113
        %v2609 = vpop.f32.mrb[0].mxu0
        %v2610 = vadd.f32 %v2449, %v2609
        %v2611 = vpop.f32.mrb[0].mxu0
        %v2612 = vpop.f32.mrb[0].mxu0
        %v2613 = vadd.f32 %v2452, %v2612
        %v2614 = vpop.f32.mrb[0].mxu0
        %2615 = vmatprep.mubr.bf16.mxu0 0
        %2616 = vmatmul.mubr.bf16.gmra.mrb[0].mxu0 %v2114
        %v2617 = vpop.f32.mrb[0].mxu0
        %v2618 = vadd.f32 %v2457, %v2617
        %v2619 = vpop.f32.mrb[0].mxu0
        %v2620 = vpop.f32.mrb[0].mxu0
        %v2621 = vadd.f32 %v2460, %v2620
        %v2622 = vpop.f32.mrb[0].mxu0
        %2623 = vmatprep.mubr.bf16.mxu0 0
        %2624 = vmatmul.mubr.bf16.gmra.mrb[0].mxu0 %v2115
        %v2625 = vpop.f32.mrb[0].mxu0
        %v2626 = vadd.f32 %v2465, %v2625
        %v2627 = vpop.f32.mrb[0].mxu0
        %v2628 = vpop.f32.mrb[0].mxu0
        %v2629 = vadd.f32 %v2468, %v2628
        %v2630 = vpop.f32.mrb[0].mxu0
        %2631 = vmatprep.mubr.bf16.mxu0 0
        %2632 = vmatmul.mubr.bf16.gmra.mrb[0].mxu0 %v2116
        %v2633 = vpop.f32.mrb[0].mxu0
        %v2634 = vadd.f32 %v2473, %v2633
        %v2635 = vpop.f32.mrb[0].mxu0
        %v2636 = vpop.f32.mrb[0].mxu0
        %v2637 = vadd.f32 %v2476, %v2636
        %v2638 = vpop.f32.mrb[0].mxu0
        %2639 = vmatprep.mubr.bf16.mxu0 0
        %2640 = vmatmul.mubr.bf16.gmra.mrb[0].mxu0 %v2135
        %v2641 = vpop.f32.mrb[0].mxu0
        %v2642 = vadd.f32 %v2481, %v2641
        %v2643 = vpop.f32.mrb[0].mxu0
        %v2644 = vpop.f32.mrb[0].mxu0
        %v2645 = vadd.f32 %v2484, %v2644
        %v2646 = vpop.f32.mrb[0].mxu0
        %2647 = vmatprep.mubr.bf16.mxu0 0
        %2648 = vmatmul.mubr.bf16.gmra.mrb[0].mxu0 %v2139
        %v2649 = vpop.f32.mrb[0].mxu0
        %v2650 = vadd.f32 %v2489, %v2649
        %v2651 = vpop.f32.mrb[0].mxu0
        %v2652 = vpop.f32.mrb[0].mxu0
        %v2653 = vadd.f32 %v2492, %v2652
        %v2654 = vpop.f32.mrb[0].mxu0
        %2655 = vdwg.mxu0
        %v2656 = vadd.f32 %v1796, %v2530
        %v2657 = vadd.f32 %v1799, %v2533
        %v2658 = vadd.f32 %v1804, %v2538
        %v2659 = vadd.f32 %v1807, %v2541
        %v2660 = vadd.f32 %v1812, %v2546
        %v2661 = vadd.f32 %v1815, %v2549
        %v2662 = vadd.f32 %v1820, %v2554
        %v2663 = vadd.f32 %v1823, %v2557
        %v2664 = vadd.f32 %v1828, %v2562
        %v2665 = vadd.f32 %v1831, %v2565
        %v2666 = vadd.f32 %v1836, %v2570
        %v2667 = vadd.f32 %v1839, %v2573
        %v2668 = vadd.f32 %v1844, %v2578
        %v2669 = vadd.f32 %v1847, %v2581
        %v2670 = vadd.f32 %v1852, %v2586
        %v2671 = vadd.f32 %v1855, %v2589
        %v2672 = vadd.f32 %v1860, %v2594
        %v2673 = vadd.f32 %v1863, %v2597
        %v2674 = vadd.f32 %v1868, %v2602
        %v2675 = vadd.f32 %v1871, %v2605
        %v2676 = vadd.f32 %v1876, %v2610
        %v2677 = vadd.f32 %v1879, %v2613
        %v2678 = vadd.f32 %v1884, %v2618
        %v2679 = vadd.f32 %v1887, %v2621
        %v2680 = vadd.f32 %v1892, %v2626
        %v2681 = vadd.f32 %v1895, %v2629
        %v2682 = vadd.f32 %v1900, %v2634
        %v2683 = vadd.f32 %v1903, %v2637
        %v2684 = vadd.f32 %v1908, %v2642
        %v2685 = vadd.f32 %v1911, %v2645
        %v2686 = vadd.f32 %v1916, %v2650
        %v2687 = vadd.f32 %v1919, %v2653
        %v2688 = vld [vmem:[%s2] sm:$0x1]
        %v2690 = vlaneseq
        %v2691 = vshrl.u32 %v2690, 7
        %v2692 = vsub.s32 0, %v2691
        %v2693 = vrot.slane %v2688, %v2692
        %v2695 = vadd.f32 %v2656, %v2693
        %v2696 = vadd.f32 %v2657, %v2693
        %v2697 = vadd.f32 %v2658, %v2693
        %v2698 = vadd.f32 %v2659, %v2693
        %v2699 = vadd.f32 %v2660, %v2693
        %v2700 = vadd.f32 %v2661, %v2693
        %v2701 = vadd.f32 %v2662, %v2693
        %v2702 = vadd.f32 %v2663, %v2693
        %v2703 = vadd.f32 %v2664, %v2693
        %v2704 = vadd.f32 %v2665, %v2693
        %v2705 = vadd.f32 %v2666, %v2693
        %v2706 = vadd.f32 %v2667, %v2693
        %v2707 = vadd.f32 %v2668, %v2693
        %v2708 = vadd.f32 %v2669, %v2693
        %v2709 = vadd.f32 %v2670, %v2693
        %v2710 = vadd.f32 %v2671, %v2693
        %v2711 = vadd.f32 %v2672, %v2693
        %v2712 = vadd.f32 %v2673, %v2693
        %v2713 = vadd.f32 %v2674, %v2693
        %v2714 = vadd.f32 %v2675, %v2693
        %v2715 = vadd.f32 %v2676, %v2693
        %v2716 = vadd.f32 %v2677, %v2693
        %v2717 = vadd.f32 %v2678, %v2693
        %v2718 = vadd.f32 %v2679, %v2693
        %v2719 = vadd.f32 %v2680, %v2693
        %v2720 = vadd.f32 %v2681, %v2693
        %v2721 = vadd.f32 %v2682, %v2693
        %v2722 = vadd.f32 %v2683, %v2693
        %v2723 = vadd.f32 %v2684, %v2693
        %v2724 = vadd.f32 %v2685, %v2693
        %v2725 = vadd.f32 %v2686, %v2693
        %v2726 = vadd.f32 %v2687, %v2693
        %v2727 = vmax.f32 %v2695, 0.0
        %v2728 = vmax.f32 %v2696, 0.0
        %v2729 = vmax.f32 %v2697, 0.0
        %v2730 = vmax.f32 %v2698, 0.0
        %v2731 = vmax.f32 %v2699, 0.0
        %v2732 = vmax.f32 %v2700, 0.0
        %v2733 = vmax.f32 %v2701, 0.0
        %v2734 = vmax.f32 %v2702, 0.0
        %v2735 = vmax.f32 %v2703, 0.0
        %v2736 = vmax.f32 %v2704, 0.0
        %v2737 = vmax.f32 %v2705, 0.0
        %v2738 = vmax.f32 %v2706, 0.0
        %v2739 = vmax.f32 %v2707, 0.0
        %v2740 = vmax.f32 %v2708, 0.0
        %v2741 = vmax.f32 %v2709, 0.0
        %v2742 = vmax.f32 %v2710, 0.0
        %v2743 = vmax.f32 %v2711, 0.0
        %v2744 = vmax.f32 %v2712, 0.0
        %v2745 = vmax.f32 %v2713, 0.0
        %v2746 = vmax.f32 %v2714, 0.0
        %v2747 = vmax.f32 %v2715, 0.0
        %v2748 = vmax.f32 %v2716, 0.0
        %v2749 = vmax.f32 %v2717, 0.0
        %v2750 = vmax.f32 %v2718, 0.0
        %v2751 = vmax.f32 %v2719, 0.0
        %v2752 = vmax.f32 %v2720, 0.0
        %v2753 = vmax.f32 %v2721, 0.0
        %v2754 = vmax.f32 %v2722, 0.0
        %v2755 = vmax.f32 %v2723, 0.0
        %v2756 = vmax.f32 %v2724, 0.0
        %v2757 = vmax.f32 %v2725, 0.0
        %v2758 = vmax.f32 %v2726, 0.0
        %2759 = vst [vmem:[#allocation2] sm:$0xff] 0
        %2760 = vst [vmem:[#allocation2 + $0x18] sm:$0xff] 0
        %2761 = vst [vmem:[#allocation2 + $0x30] sm:$0xff] 0
        %2762 = vst [vmem:[#allocation2 + $0x48] sm:$0xff] 0
        %2763 = vst [vmem:[#allocation2 + $0x60] sm:$0xff] 0
        %2764 = vst [vmem:[#allocation2 + $0x78] sm:$0xff] 0
        %2765 = vst [vmem:[#allocation2 + $0x90] sm:$0xff] 0
        %2766 = vst [vmem:[#allocation2 + $0xa8] sm:$0xff] 0
        %2767 = vst [vmem:[#allocation2 + $0xc0] sm:$0xff] 0
        %2768 = vst [vmem:[#allocation2 + $0xd8] sm:$0xff] 0
        %2769 = vst [vmem:[#allocation2 + $0xf0] sm:$0xff] 0
        %2770 = vst [vmem:[#allocation2 + $0x108] sm:$0xff] 0
        %2771 = vst [vmem:[#allocation2 + $0x120] sm:$0xff] 0
        %2772 = vst [vmem:[#allocation2 + $0x138] sm:$0xff] 0
        %2773 = vst [vmem:[#allocation2 + $0x150] sm:$0xff] 0
        %2774 = vst [vmem:[#allocation2 + $0x168] sm:$0xff] 0
        %2775 = vst [vmem:[#allocation2 + $0x180] sm:$0xff] 0
        %2776 = vst [vmem:[#allocation2 + $0x198] sm:$0xff] 0
        %2777 = vst [vmem:[#allocation2 + $0x10] sm:$0xff] 0
        %2778 = vst [vmem:[#allocation2 + $0x28] sm:$0xff] 0
        %2779 = vst [vmem:[#allocation2 + $0x40] sm:$0xff] 0
        %2780 = vst [vmem:[#allocation2 + $0x58] sm:$0xff] 0
        %2781 = vst [vmem:[#allocation2 + $0x70] sm:$0xff] 0
        %2782 = vst [vmem:[#allocation2 + $0x88] sm:$0xff] 0
        %2783 = vst [vmem:[#allocation2 + $0xa0] sm:$0xff] 0
        %2784 = vst [vmem:[#allocation2 + $0xb8] sm:$0xff] 0
        %2785 = vst [vmem:[#allocation2 + $0xd0] sm:$0xff] 0
        %2786 = vst [vmem:[#allocation2 + $0xe8] sm:$0xff] 0
        %2787 = vst [vmem:[#allocation2 + $0x100] sm:$0xff] 0
        %2788 = vst [vmem:[#allocation2 + $0x118] sm:$0xff] 0
        %2789 = vst [vmem:[#allocation2 + $0x130] sm:$0xff] 0
        %2790 = vst [vmem:[#allocation2 + $0x148] sm:$0xff] 0
        %2791 = vst [vmem:[#allocation2 + $0x160] sm:$0xff] 0
        %2792 = vst [vmem:[#allocation2 + $0x178] sm:$0xff] 0
        %2793 = vst [vmem:[#allocation2 + $0x190] sm:$0xff] 0
        %2794 = vst [vmem:[#allocation2 + $0x1a8] sm:$0xff] 0
        %2795 = vst [vmem:[#allocation2 + $0x8] sm:$0xff] 0
        %s2796 = scalar_lea.vmem [#allocation2], 408
        %2797 = vst [vmem:[%s2796 + $0x8] sm:$0xff] 0
        %v2798 = vpack.c.bf16 %v2728, %v2727
        %v2799 = vpack.c.bf16 %v2730, %v2729
        %v2800 = vpack.c.bf16 %v2732, %v2731
        %v2801 = vpack.c.bf16 %v2734, %v2733
        %v2802 = vpack.c.bf16 %v2736, %v2735
        %v2803 = vpack.c.bf16 %v2738, %v2737
        %v2804 = vpack.c.bf16 %v2740, %v2739
        %v2805 = vpack.c.bf16 %v2742, %v2741
        %v2806 = vpack.c.bf16 %v2744, %v2743
        %v2807 = vpack.c.bf16 %v2746, %v2745
        %v2808 = vpack.c.bf16 %v2748, %v2747
        %v2809 = vpack.c.bf16 %v2750, %v2749
        %v2810 = vpack.c.bf16 %v2752, %v2751
        %v2811 = vpack.c.bf16 %v2754, %v2753
        %v2812 = vpack.c.bf16 %v2756, %v2755
        %v2813 = vpack.c.bf16 %v2758, %v2757
        %s2814 = scalar_lea.vmem [#allocation2], 24
        %2815 = vst [vmem:[%s2814 + $0x8] sm:$0xff] %v2798
        %2816 = vst [vmem:[%s2814 + $0x20] sm:$0xff] %v2799
        %2817 = vst [vmem:[%s2814 + $0x38] sm:$0xff] %v2800
        %2818 = vst [vmem:[%s2814 + $0x50] sm:$0xff] %v2801
        %2819 = vst [vmem:[%s2814 + $0x68] sm:$0xff] %v2802
        %2820 = vst [vmem:[%s2814 + $0x80] sm:$0xff] %v2803
        %2821 = vst [vmem:[%s2814 + $0x98] sm:$0xff] %v2804
        %2822 = vst [vmem:[%s2814 + $0xb0] sm:$0xff] %v2805
        %2823 = vst [vmem:[%s2814 + $0xc8] sm:$0xff] %v2806
        %2824 = vst [vmem:[%s2814 + $0xe0] sm:$0xff] %v2807
        %2825 = vst [vmem:[%s2814 + $0xf8] sm:$0xff] %v2808
        %2826 = vst [vmem:[%s2814 + $0x110] sm:$0xff] %v2809
        %2827 = vst [vmem:[%s2814 + $0x128] sm:$0xff] %v2810
        %2828 = vst [vmem:[%s2814 + $0x140] sm:$0xff] %v2811
        %2829 = vst [vmem:[%s2814 + $0x158] sm:$0xff] %v2812
        %2830 = vst [vmem:[%s2814 + $0x170] sm:$0xff] %v2813
        %v2831 = vld [vmem:[#allocation2] sm:$0xff]
        %v2832 = vld [vmem:[#allocation2 + $0x8] sm:$0xff]
        %v2833 = vld [vmem:[#allocation2 + $0x10] sm:$0xff]
        %v2834 = vld [vmem:[#allocation2 + $0x18] sm:$0xff]
        %v2835 = vld [vmem:[#allocation2 + $0x20] sm:$0xff]
        %v2836 = vld [vmem:[#allocation2 + $0x28] sm:$0xff]
        %v2837 = vld [vmem:[#allocation2 + $0x30] sm:$0xff]
        %v2838 = vld [vmem:[#allocation2 + $0x38] sm:$0xff]
        %v2839 = vld [vmem:[#allocation2 + $0x40] sm:$0xff]
        %v2840 = vld [vmem:[#allocation2 + $0x48] sm:$0xff]
        %v2841 = vld [vmem:[#allocation2 + $0x50] sm:$0xff]
        %v2842 = vld [vmem:[#allocation2 + $0x58] sm:$0xff]
        %v2843 = vld [vmem:[#allocation2 + $0x60] sm:$0xff]
        %v2844 = vld [vmem:[#allocation2 + $0x68] sm:$0xff]
        %v2845 = vld [vmem:[#allocation2 + $0x70] sm:$0xff]
        %v2846 = vld [vmem:[#allocation2 + $0x78] sm:$0xff]
        %v2847 = vld [vmem:[#allocation2 + $0x80] sm:$0xff]
        %v2848 = vld [vmem:[#allocation2 + $0x88] sm:$0xff]
        %v2849 = vld [vmem:[#allocation2 + $0x90] sm:$0xff]
        %v2850 = vld [vmem:[#allocation2 + $0x98] sm:$0xff]
        %v2851 = vld [vmem:[#allocation2 + $0xa0] sm:$0xff]
        %v2852 = vld [vmem:[#allocation2 + $0xa8] sm:$0xff]
        %v2853 = vld [vmem:[#allocation2 + $0xb0] sm:$0xff]
        %v2854 = vld [vmem:[#allocation2 + $0xb8] sm:$0xff]
        %v2855 = vld [vmem:[#allocation2 + $0xc0] sm:$0xff]
        %v2856 = vld [vmem:[#allocation2 + $0xc8] sm:$0xff]
        %v2857 = vld [vmem:[#allocation2 + $0xd0] sm:$0xff]
        %v2858 = vld [vmem:[#allocation2 + $0xd8] sm:$0xff]
        %v2859 = vld [vmem:[#allocation2 + $0xe0] sm:$0xff]
        %v2860 = vld [vmem:[#allocation2 + $0xe8] sm:$0xff]
        %v2861 = vld [vmem:[#allocation2 + $0xf0] sm:$0xff]
        %v2862 = vld [vmem:[#allocation2 + $0xf8] sm:$0xff]
        %v2863 = vld [vmem:[#allocation2 + $0x100] sm:$0xff]
        %v2864 = vld [vmem:[#allocation2 + $0x108] sm:$0xff]
        %v2865 = vld [vmem:[#allocation2 + $0x110] sm:$0xff]
        %v2866 = vld [vmem:[#allocation2 + $0x118] sm:$0xff]
        %v2867 = vld [vmem:[#allocation2 + $0x120] sm:$0xff]
        %v2868 = vld [vmem:[#allocation2 + $0x128] sm:$0xff]
        %v2869 = vld [vmem:[#allocation2 + $0x130] sm:$0xff]
        %v2870 = vld [vmem:[#allocation2 + $0x138] sm:$0xff]
        %v2871 = vld [vmem:[#allocation2 + $0x140] sm:$0xff]
        %v2872 = vld [vmem:[#allocation2 + $0x148] sm:$0xff]
        %v2873 = vld [vmem:[#allocation2 + $0x150] sm:$0xff]
        %v2874 = vld [vmem:[#allocation2 + $0x158] sm:$0xff]
        %v2875 = vld [vmem:[#allocation2 + $0x160] sm:$0xff]
        %v2876 = vld [vmem:[#allocation2 + $0x168] sm:$0xff]
        %v2877 = vld [vmem:[#allocation2 + $0x170] sm:$0xff]
        %v2878 = vld [vmem:[#allocation2 + $0x178] sm:$0xff]
        %v2879 = vld [vmem:[#allocation2 + $0x180] sm:$0xff]
        %v2880 = vld [vmem:[#allocation2 + $0x188] sm:$0xff]
        %v2881 = vld [vmem:[#allocation2 + $0x190] sm:$0xff]
        %v2882 = vld [vmem:[#allocation2 + $0x198] sm:$0xff]
        %v2883 = vld [vmem:[#allocation2 + $0x1a0] sm:$0xff]
        %v2884 = vld [vmem:[#allocation2 + $0x1a8] sm:$0xff]
        %vm2885 = vsmask.f32 256
        %v2887 = vshrl.u32 %v2831, 16
        %v2889 = vrot.slane %v2887, 7
        %v2891 = vshrl.u32 %v2832, 16
        %v2893 = vrot.slane %v2891, 7
        %v2894 = vshll.u32 %v2832, 16
        %v2896 = vor.u32 %v2893, %v2894
        %v2897 = vsel %vm2885, %v2889, %v2896
        %v2899 = vshrl.u32 %v2834, 16
        %v2901 = vrot.slane %v2899, 7
        %v2903 = vshrl.u32 %v2835, 16
        %v2905 = vrot.slane %v2903, 7
        %v2906 = vshll.u32 %v2835, 16
        %v2908 = vor.u32 %v2905, %v2906
        %v2909 = vsel %vm2885, %v2901, %v2908
        %v2911 = vshrl.u32 %v2837, 16
        %v2913 = vrot.slane %v2911, 7
        %v2915 = vshrl.u32 %v2838, 16
        %v2917 = vrot.slane %v2915, 7
        %v2918 = vshll.u32 %v2838, 16
        %v2920 = vor.u32 %v2917, %v2918
        %v2921 = vsel %vm2885, %v2913, %v2920
        %v2923 = vshrl.u32 %v2840, 16
        %v2925 = vrot.slane %v2923, 7
        %v2927 = vshrl.u32 %v2841, 16
        %v2929 = vrot.slane %v2927, 7
        %v2930 = vshll.u32 %v2841, 16
        %v2932 = vor.u32 %v2929, %v2930
        %v2933 = vsel %vm2885, %v2925, %v2932
        %v2935 = vshrl.u32 %v2843, 16
        %v2937 = vrot.slane %v2935, 7
        %v2939 = vshrl.u32 %v2844, 16
        %v2941 = vrot.slane %v2939, 7
        %v2942 = vshll.u32 %v2844, 16
        %v2944 = vor.u32 %v2941, %v2942
        %v2945 = vsel %vm2885, %v2937, %v2944
        %v2947 = vshrl.u32 %v2846, 16
        %v2949 = vrot.slane %v2947, 7
        %v2951 = vshrl.u32 %v2847, 16
        %v2953 = vrot.slane %v2951, 7
        %v2954 = vshll.u32 %v2847, 16
        %v2956 = vor.u32 %v2953, %v2954
        %v2957 = vsel %vm2885, %v2949, %v2956
        %v2959 = vshrl.u32 %v2849, 16
        %v2961 = vrot.slane %v2959, 7
        %v2963 = vshrl.u32 %v2850, 16
        %v2965 = vrot.slane %v2963, 7
        %v2966 = vshll.u32 %v2850, 16
        %v2968 = vor.u32 %v2965, %v2966
        %v2969 = vsel %vm2885, %v2961, %v2968
        %v2971 = vshrl.u32 %v2852, 16
        %v2973 = vrot.slane %v2971, 7
        %v2975 = vshrl.u32 %v2853, 16
        %v2977 = vrot.slane %v2975, 7
        %v2978 = vshll.u32 %v2853, 16
        %v2980 = vor.u32 %v2977, %v2978
        %v2981 = vsel %vm2885, %v2973, %v2980
        %v2983 = vshrl.u32 %v2855, 16
        %v2985 = vrot.slane %v2983, 7
        %v2987 = vshrl.u32 %v2856, 16
        %v2989 = vrot.slane %v2987, 7
        %v2990 = vshll.u32 %v2856, 16
        %v2992 = vor.u32 %v2989, %v2990
        %v2993 = vsel %vm2885, %v2985, %v2992
        %v2995 = vshrl.u32 %v2858, 16
        %v2997 = vrot.slane %v2995, 7
        %v2999 = vshrl.u32 %v2859, 16
        %v3001 = vrot.slane %v2999, 7
        %v3002 = vshll.u32 %v2859, 16
        %v3004 = vor.u32 %v3001, %v3002
        %v3005 = vsel %vm2885, %v2997, %v3004
        %v3007 = vshrl.u32 %v2861, 16
        %v3009 = vrot.slane %v3007, 7
        %v3011 = vshrl.u32 %v2862, 16
        %v3013 = vrot.slane %v3011, 7
        %v3014 = vshll.u32 %v2862, 16
        %v3016 = vor.u32 %v3013, %v3014
        %v3017 = vsel %vm2885, %v3009, %v3016
        %v3019 = vshrl.u32 %v2864, 16
        %v3021 = vrot.slane %v3019, 7
        %v3023 = vshrl.u32 %v2865, 16
        %v3025 = vrot.slane %v3023, 7
        %v3026 = vshll.u32 %v2865, 16
        %v3028 = vor.u32 %v3025, %v3026
        %v3029 = vsel %vm2885, %v3021, %v3028
        %v3031 = vshrl.u32 %v2867, 16
        %v3033 = vrot.slane %v3031, 7
        %v3035 = vshrl.u32 %v2868, 16
        %v3037 = vrot.slane %v3035, 7
        %v3038 = vshll.u32 %v2868, 16
        %v3040 = vor.u32 %v3037, %v3038
        %v3041 = vsel %vm2885, %v3033, %v3040
        %v3043 = vshrl.u32 %v2870, 16
        %v3045 = vrot.slane %v3043, 7
        %v3047 = vshrl.u32 %v2871, 16
        %v3049 = vrot.slane %v3047, 7
        %v3050 = vshll.u32 %v2871, 16
        %v3052 = vor.u32 %v3049, %v3050
        %v3053 = vsel %vm2885, %v3045, %v3052
        %v3055 = vshrl.u32 %v2873, 16
        %v3057 = vrot.slane %v3055, 7
        %v3059 = vshrl.u32 %v2874, 16
        %v3061 = vrot.slane %v3059, 7
        %v3062 = vshll.u32 %v2874, 16
        %v3064 = vor.u32 %v3061, %v3062
        %v3065 = vsel %vm2885, %v3057, %v3064
        %v3067 = vshrl.u32 %v2876, 16
        %v3069 = vrot.slane %v3067, 7
        %v3071 = vshrl.u32 %v2877, 16
        %v3073 = vrot.slane %v3071, 7
        %v3074 = vshll.u32 %v2877, 16
        %v3076 = vor.u32 %v3073, %v3074
        %v3077 = vsel %vm2885, %v3069, %v3076
        %v3095 = vshrl.u32 %v2879, 16
        %v3097 = vrot.slane %v3095, 7
        %v3099 = vshrl.u32 %v2880, 16
        %v3101 = vrot.slane %v3099, 7
        %v3102 = vshll.u32 %v2880, 16
        %v3104 = vor.u32 %v3101, %v3102
        %v3105 = vsel %vm2885, %v3097, %v3104
        %v3108 = vshrl.u32 %v2882, 16
        %v3110 = vrot.slane %v3108, 7
        %v3112 = vshrl.u32 %v2883, 16
        %v3114 = vrot.slane %v3112, 7
        %v3115 = vshll.u32 %v2883, 16
        %v3117 = vor.u32 %v3114, %v3115
        %v3118 = vsel %vm2885, %v3110, %v3117
        %v3120 = vld [vmem:[%s3] sm:$0xf]
        %v3121 = vld [vmem:[%s3 + $0x4] sm:$0xf]
        %v3122 = vld [vmem:[%s3 + $0x8] sm:$0xf]
        %v3123 = vld [vmem:[%s3 + $0xc] sm:$0xf]
        %v3124 = vld [vmem:[%s3 + $0x10] sm:$0xf]
        %v3125 = vld [vmem:[%s3 + $0x14] sm:$0xf]
        %v3126 = vld [vmem:[%s3 + $0x18] sm:$0xf]
        %v3127 = vld [vmem:[%s3 + $0x1c] sm:$0xf]
        %v3128 = vld [vmem:[%s3 + $0x20] sm:$0xf]
        %v3129 = vld [vmem:[%s3 + $0x24] sm:$0xf]
        %v3130 = vld [vmem:[%s3 + $0x28] sm:$0xf]
        %v3131 = vld [vmem:[%s3 + $0x2c] sm:$0xf]
        %v3132 = vld [vmem:[%s3 + $0x30] sm:$0xf]
        %v3133 = vld [vmem:[%s3 + $0x34] sm:$0xf]
        %v3134 = vld [vmem:[%s3 + $0x38] sm:$0xf]
        %v3135 = vld [vmem:[%s3 + $0x3c] sm:$0xf]
        %v3136 = vld [vmem:[%s3 + $0x40] sm:$0xf]
        %v3137 = vld [vmem:[%s3 + $0x44] sm:$0xf]
        %v3138 = vld [vmem:[%s3 + $0x48] sm:$0xf]
        %v3139 = vld [vmem:[%s3 + $0x4c] sm:$0xf]
        %v3140 = vld [vmem:[%s3 + $0x50] sm:$0xf]
        %v3141 = vld [vmem:[%s3 + $0x54] sm:$0xf]
        %v3142 = vld [vmem:[%s3 + $0x58] sm:$0xf]
        %v3143 = vld [vmem:[%s3 + $0x5c] sm:$0xf]
        %v3144 = vld [vmem:[%s3 + $0x60] sm:$0xf]
        %v3145 = vld [vmem:[%s3 + $0x64] sm:$0xf]
        %v3146 = vld [vmem:[%s3 + $0x68] sm:$0xf]
        %v3147 = vld [vmem:[%s3 + $0x6c] sm:$0xf]
        %v3148 = vld [vmem:[%s3 + $0x70] sm:$0xf]
        %v3149 = vld [vmem:[%s3 + $0x74] sm:$0xf]
        %v3150 = vld [vmem:[%s3 + $0x78] sm:$0xf]
        %v3151 = vld [vmem:[%s3 + $0x7c] sm:$0xf]
        %v3152 = vld [vmem:[%s3 + $0x80] sm:$0xf]
        %v3153 = vld [vmem:[%s3 + $0x84] sm:$0xf]
        %v3154 = vld [vmem:[%s3 + $0x88] sm:$0xf]
        %v3155 = vld [vmem:[%s3 + $0x8c] sm:$0xf]
        %v3156 = vld [vmem:[%s3 + $0x90] sm:$0xf]
        %v3157 = vld [vmem:[%s3 + $0x94] sm:$0xf]
        %v3158 = vld [vmem:[%s3 + $0x98] sm:$0xf]
        %v3159 = vld [vmem:[%s3 + $0x9c] sm:$0xf]
        %v3160 = vld [vmem:[%s3 + $0xa0] sm:$0xf]
        %v3161 = vld [vmem:[%s3 + $0xa4] sm:$0xf]
        %v3162 = vld [vmem:[%s3 + $0xa8] sm:$0xf]
        %v3163 = vld [vmem:[%s3 + $0xac] sm:$0xf]
        %v3164 = vld [vmem:[%s3 + $0xb0] sm:$0xf]
        %v3165 = vld [vmem:[%s3 + $0xb4] sm:$0xf]
        %v3166 = vld [vmem:[%s3 + $0xb8] sm:$0xf]
        %v3167 = vld [vmem:[%s3 + $0xbc] sm:$0xf]
        %s3168 = scalar_lea.vmem %s3, 192
        %v3169 = vld [vmem:[%s3168] sm:$0xf]
        %v3170 = vld [vmem:[%s3168 + $0x4] sm:$0xf]
        %v3171 = vld [vmem:[%s3168 + $0x8] sm:$0xf]
        %v3172 = vld [vmem:[%s3168 + $0xc] sm:$0xf]
        %v3173 = vld [vmem:[%s3168 + $0x10] sm:$0xf]
        %v3174 = vld [vmem:[%s3168 + $0x14] sm:$0xf]
        %v3175 = vld [vmem:[%s3168 + $0x18] sm:$0xf]
        %v3176 = vld [vmem:[%s3168 + $0x1c] sm:$0xf]
        %v3177 = vld [vmem:[%s3168 + $0x20] sm:$0xf]
        %v3178 = vld [vmem:[%s3168 + $0x24] sm:$0xf]
        %v3179 = vld [vmem:[%s3168 + $0x28] sm:$0xf]
        %v3180 = vld [vmem:[%s3168 + $0x2c] sm:$0xf]
        %v3181 = vld [vmem:[%s3168 + $0x30] sm:$0xf]
        %v3182 = vld [vmem:[%s3168 + $0x34] sm:$0xf]
        %v3183 = vld [vmem:[%s3168 + $0x38] sm:$0xf]
        %v3184 = vld [vmem:[%s3168 + $0x3c] sm:$0xf]
        %v3185 = vld [vmem:[%s3168 + $0x40] sm:$0xf]
        %v3186 = vld [vmem:[%s3168 + $0x44] sm:$0xf]
        %v3187 = vld [vmem:[%s3168 + $0x48] sm:$0xf]
        %v3188 = vld [vmem:[%s3168 + $0x4c] sm:$0xf]
        %v3189 = vld [vmem:[%s3168 + $0x50] sm:$0xf]
        %v3190 = vld [vmem:[%s3168 + $0x54] sm:$0xf]
        %v3191 = vld [vmem:[%s3168 + $0x58] sm:$0xf]
        %v3192 = vld [vmem:[%s3168 + $0x5c] sm:$0xf]
        %v3193 = vld [vmem:[%s3168 + $0x60] sm:$0xf]
        %v3194 = vld [vmem:[%s3168 + $0x64] sm:$0xf]
        %v3195 = vld [vmem:[%s3168 + $0x68] sm:$0xf]
        %v3196 = vld [vmem:[%s3168 + $0x6c] sm:$0xf]
        %v3197 = vld [vmem:[%s3168 + $0x70] sm:$0xf]
        %v3198 = vld [vmem:[%s3168 + $0x74] sm:$0xf]
        %v3199 = vld [vmem:[%s3168 + $0x78] sm:$0xf]
        %v3200 = vld [vmem:[%s3168 + $0x7c] sm:$0xf]
        %v3201 = vld [vmem:[%s3168 + $0x80] sm:$0xf]
        %v3202 = vld [vmem:[%s3168 + $0x84] sm:$0xf]
        %v3203 = vld [vmem:[%s3168 + $0x88] sm:$0xf]
        %v3204 = vld [vmem:[%s3168 + $0x8c] sm:$0xf]
        %v3205 = vld [vmem:[%s3168 + $0x90] sm:$0xf]
        %v3206 = vld [vmem:[%s3168 + $0x94] sm:$0xf]
        %v3207 = vld [vmem:[%s3168 + $0x98] sm:$0xf]
        %v3208 = vld [vmem:[%s3168 + $0x9c] sm:$0xf]
        %v3209 = vld [vmem:[%s3168 + $0xa0] sm:$0xf]
        %v3210 = vld [vmem:[%s3168 + $0xa4] sm:$0xf]
        %v3211 = vld [vmem:[%s3168 + $0xa8] sm:$0xf]
        %v3212 = vld [vmem:[%s3168 + $0xac] sm:$0xf]
        %v3213 = vld [vmem:[%s3168 + $0xb0] sm:$0xf]
        %v3214 = vld [vmem:[%s3168 + $0xb4] sm:$0xf]
        %v3215 = vld [vmem:[%s3168 + $0xb8] sm:$0xf]
        %v3216 = vld [vmem:[%s3168 + $0xbc] sm:$0xf]
        %v3265 = vunpack.c.l.b16 %v3169
        %v3266 = vunpack.c.l.b16 %v3170
        %v3267 = vunpack.c.l.b16 %v3171
        %v3268 = vunpack.c.l.b16 %v3172
        %v3269 = vunpack.c.l.b16 %v3173
        %v3270 = vunpack.c.l.b16 %v3174
        %v3271 = vunpack.c.l.b16 %v3175
        %v3272 = vunpack.c.l.b16 %v3176
        %v3273 = vunpack.c.l.b16 %v3177
        %v3274 = vunpack.c.l.b16 %v3178
        %v3275 = vunpack.c.l.b16 %v3179
        %v3276 = vunpack.c.l.b16 %v3180
        %v3277 = vunpack.c.l.b16 %v3181
        %v3278 = vunpack.c.l.b16 %v3182
        %v3279 = vunpack.c.l.b16 %v3183
        %v3280 = vunpack.c.l.b16 %v3184
        %v3281 = vunpack.c.l.b16 %v3185
        %v3282 = vunpack.c.l.b16 %v3186
        %v3283 = vunpack.c.l.b16 %v3187
        %v3284 = vunpack.c.l.b16 %v3188
        %v3285 = vunpack.c.l.b16 %v3189
        %v3286 = vunpack.c.l.b16 %v3190
        %v3287 = vunpack.c.l.b16 %v3191
        %v3288 = vunpack.c.l.b16 %v3192
        %v3289 = vunpack.c.l.b16 %v3193
        %v3290 = vunpack.c.l.b16 %v3194
        %v3291 = vunpack.c.l.b16 %v3195
        %v3292 = vunpack.c.l.b16 %v3196
        %v3293 = vunpack.c.l.b16 %v3197
        %v3294 = vunpack.c.l.b16 %v3198
        %v3295 = vunpack.c.l.b16 %v3199
        %v3296 = vunpack.c.l.b16 %v3200
        %v3297 = vunpack.c.l.b16 %v3201
        %v3298 = vunpack.c.l.b16 %v3202
        %v3299 = vunpack.c.l.b16 %v3203
        %v3300 = vunpack.c.l.b16 %v3204
        %v3301 = vunpack.c.l.b16 %v3205
        %v3302 = vunpack.c.l.b16 %v3206
        %v3303 = vunpack.c.l.b16 %v3207
        %v3304 = vunpack.c.l.b16 %v3208
        %v3305 = vunpack.c.l.b16 %v3209
        %v3306 = vunpack.c.l.b16 %v3210
        %v3307 = vunpack.c.l.b16 %v3211
        %v3308 = vunpack.c.l.b16 %v3212
        %v3309 = vunpack.c.l.b16 %v3213
        %v3310 = vunpack.c.l.b16 %v3214
        %v3311 = vunpack.c.l.b16 %v3215
        %v3312 = vunpack.c.l.b16 %v3216
        %v3313 = vpack.c.b16 %v3266, %v3265
        %v3314 = vpack.c.b16 %v3268, %v3267
        %v3315 = vpack.c.b16 %v3270, %v3269
        %v3316 = vpack.c.b16 %v3272, %v3271
        %v3317 = vpack.c.b16 %v3274, %v3273
        %v3318 = vpack.c.b16 %v3276, %v3275
        %v3319 = vpack.c.b16 %v3278, %v3277
        %v3320 = vpack.c.b16 %v3280, %v3279
        %v3321 = vpack.c.b16 %v3282, %v3281
        %v3322 = vpack.c.b16 %v3284, %v3283
        %v3323 = vpack.c.b16 %v3286, %v3285
        %v3324 = vpack.c.b16 %v3288, %v3287
        %v3325 = vpack.c.b16 %v3290, %v3289
        %v3326 = vpack.c.b16 %v3292, %v3291
        %v3327 = vpack.c.b16 %v3294, %v3293
        %v3328 = vpack.c.b16 %v3296, %v3295
        %v3329 = vpack.c.b16 %v3298, %v3297
        %v3330 = vpack.c.b16 %v3300, %v3299
        %v3331 = vpack.c.b16 %v3302, %v3301
        %v3332 = vpack.c.b16 %v3304, %v3303
        %v3333 = vpack.c.b16 %v3306, %v3305
        %v3334 = vpack.c.b16 %v3308, %v3307
        %v3335 = vpack.c.b16 %v3310, %v3309
        %v3336 = vpack.c.b16 %v3312, %v3311
        %3361 = vmatprep.subr.bf16.mxu0 0
        %3362 = vmatpush1.bf16.msra.mxu0 %v3313
        %3363 = vmatprep.subr.bf16.mxu0 0
        %3364 = vmatpush1.bf16.msra.mxu0 %v3314
        %3365 = vmatprep.subr.bf16.mxu0 0
        %3366 = vmatpush1.bf16.msra.mxu0 %v3315
        %3367 = vmatprep.subr.bf16.mxu0 0
        %3368 = vmatpush1.bf16.msra.mxu0 %v3316
        %3369 = vmatprep.subr.bf16.mxu0 0
        %3370 = vmatpush1.bf16.msra.mxu0 %v3317
        %3371 = vmatprep.subr.bf16.mxu0 0
        %3372 = vmatpush1.bf16.msra.mxu0 %v3318
        %3373 = vmatprep.subr.bf16.mxu0 0
        %3374 = vmatpush1.bf16.msra.mxu0 %v3319
        %3375 = vmatprep.subr.bf16.mxu0 0
        %3376 = vmatpush1.bf16.msra.mxu0 %v3320
        %3377 = vmatprep.subr.bf16.mxu0 0
        %3378 = vmatpush1.bf16.msra.mxu0 %v3321
        %3379 = vmatprep.subr.bf16.mxu0 0
        %3380 = vmatpush1.bf16.msra.mxu0 %v3322
        %3381 = vmatprep.subr.bf16.mxu0 0
        %3382 = vmatpush1.bf16.msra.mxu0 %v3323
        %3383 = vmatprep.subr.bf16.mxu0 0
        %3384 = vmatpush1.bf16.msra.mxu0 %v3324
        %3385 = vmatprep.subr.bf16.mxu0 0
        %3386 = vmatpush1.bf16.msra.mxu0 %v3325
        %3387 = vmatprep.subr.bf16.mxu0 0
        %3388 = vmatpush1.bf16.msra.mxu0 %v3326
        %3389 = vmatprep.subr.bf16.mxu0 0
        %3390 = vmatpush1.bf16.msra.mxu0 %v3327
        %3391 = vmatprep.subr.bf16.mxu0 0
        %3392 = vmatpush1.bf16.msra.mxu0 %v3328
        %3393 = vmatprep.mubr.bf16.mxu0 %v2835
        %3394 = vmatmul.mubr.bf16.gmra.mrb[0].mxu0 %v2832
        %v3395 = vpop.f32.mrb[0].mxu0
        %v3396 = vadd.f32 0.0, %v3395
        %v3397 = vpop.f32.mrb[0].mxu0
        %v3398 = vpop.f32.mrb[0].mxu0
        %v3399 = vadd.f32 0.0, %v3398
        %v3400 = vpop.f32.mrb[0].mxu0
        %3401 = vmatprep.mubr.bf16.mxu0 %v2838
        %3402 = vmatmul.mubr.bf16.gmra.mrb[0].mxu0 %v2835
        %v3403 = vpop.f32.mrb[0].mxu0
        %v3404 = vadd.f32 0.0, %v3403
        %v3405 = vpop.f32.mrb[0].mxu0
        %v3406 = vpop.f32.mrb[0].mxu0
        %v3407 = vadd.f32 0.0, %v3406
        %v3408 = vpop.f32.mrb[0].mxu0
        %3409 = vmatprep.mubr.bf16.mxu0 %v2841
        %3410 = vmatmul.mubr.bf16.gmra.mrb[0].mxu0 %v2838
        %v3411 = vpop.f32.mrb[0].mxu0
        %v3412 = vadd.f32 0.0, %v3411
        %v3413 = vpop.f32.mrb[0].mxu0
        %v3414 = vpop.f32.mrb[0].mxu0
        %v3415 = vadd.f32 0.0, %v3414
        %v3416 = vpop.f32.mrb[0].mxu0
        %3417 = vmatprep.mubr.bf16.mxu0 %v2844
        %3418 = vmatmul.mubr.bf16.gmra.mrb[0].mxu0 %v2841
        %v3419 = vpop.f32.mrb[0].mxu0
        %v3420 = vadd.f32 0.0, %v3419
        %v3421 = vpop.f32.mrb[0].mxu0
        %v3422 = vpop.f32.mrb[0].mxu0
        %v3423 = vadd.f32 0.0, %v3422
        %v3424 = vpop.f32.mrb[0].mxu0
        %3425 = vmatprep.mubr.bf16.mxu0 %v2847
        %3426 = vmatmul.mubr.bf16.gmra.mrb[0].mxu0 %v2844
        %v3427 = vpop.f32.mrb[0].mxu0
        %v3428 = vadd.f32 0.0, %v3427
        %v3429 = vpop.f32.mrb[0].mxu0
        %v3430 = vpop.f32.mrb[0].mxu0
        %v3431 = vadd.f32 0.0, %v3430
        %v3432 = vpop.f32.mrb[0].mxu0
        %3433 = vmatprep.mubr.bf16.mxu0 %v2850
        %3434 = vmatmul.mubr.bf16.gmra.mrb[0].mxu0 %v2847
        %v3435 = vpop.f32.mrb[0].mxu0
        %v3436 = vadd.f32 0.0, %v3435
        %v3437 = vpop.f32.mrb[0].mxu0
        %v3438 = vpop.f32.mrb[0].mxu0
        %v3439 = vadd.f32 0.0, %v3438
        %v3440 = vpop.f32.mrb[0].mxu0
        %3441 = vmatprep.mubr.bf16.mxu0 %v2853
        %3442 = vmatmul.mubr.bf16.gmra.mrb[0].mxu0 %v2850
        %v3443 = vpop.f32.mrb[0].mxu0
        %v3444 = vadd.f32 0.0, %v3443
        %v3445 = vpop.f32.mrb[0].mxu0
        %v3446 = vpop.f32.mrb[0].mxu0
        %v3447 = vadd.f32 0.0, %v3446
        %v3448 = vpop.f32.mrb[0].mxu0
        %3449 = vmatprep.mubr.bf16.mxu0 %v2856
        %3450 = vmatmul.mubr.bf16.gmra.mrb[0].mxu0 %v2853
        %v3451 = vpop.f32.mrb[0].mxu0
        %v3452 = vadd.f32 0.0, %v3451
        %v3453 = vpop.f32.mrb[0].mxu0
        %v3454 = vpop.f32.mrb[0].mxu0
        %v3455 = vadd.f32 0.0, %v3454
        %v3456 = vpop.f32.mrb[0].mxu0
        %3457 = vmatprep.mubr.bf16.mxu0 %v2859
        %3458 = vmatmul.mubr.bf16.gmra.mrb[0].mxu0 %v2856
        %v3459 = vpop.f32.mrb[0].mxu0
        %v3460 = vadd.f32 0.0, %v3459
        %v3461 = vpop.f32.mrb[0].mxu0
        %v3462 = vpop.f32.mrb[0].mxu0
        %v3463 = vadd.f32 0.0, %v3462
        %v3464 = vpop.f32.mrb[0].mxu0
        %3465 = vmatprep.mubr.bf16.mxu0 %v2862
        %3466 = vmatmul.mubr.bf16.gmra.mrb[0].mxu0 %v2859
        %v3467 = vpop.f32.mrb[0].mxu0
        %v3468 = vadd.f32 0.0, %v3467
        %v3469 = vpop.f32.mrb[0].mxu0
        %v3470 = vpop.f32.mrb[0].mxu0
        %v3471 = vadd.f32 0.0, %v3470
        %v3472 = vpop.f32.mrb[0].mxu0
        %3473 = vmatprep.mubr.bf16.mxu0 %v2865
        %3474 = vmatmul.mubr.bf16.gmra.mrb[0].mxu0 %v2862
        %v3475 = vpop.f32.mrb[0].mxu0
        %v3476 = vadd.f32 0.0, %v3475
        %v3477 = vpop.f32.mrb[0].mxu0
        %v3478 = vpop.f32.mrb[0].mxu0
        %v3479 = vadd.f32 0.0, %v3478
        %v3480 = vpop.f32.mrb[0].mxu0
        %3481 = vmatprep.mubr.bf16.mxu0 %v2868
        %3482 = vmatmul.mubr.bf16.gmra.mrb[0].mxu0 %v2865
        %v3483 = vpop.f32.mrb[0].mxu0
        %v3484 = vadd.f32 0.0, %v3483
        %v3485 = vpop.f32.mrb[0].mxu0
        %v3486 = vpop.f32.mrb[0].mxu0
        %v3487 = vadd.f32 0.0, %v3486
        %v3488 = vpop.f32.mrb[0].mxu0
        %3489 = vmatprep.mubr.bf16.mxu0 %v2871
        %3490 = vmatmul.mubr.bf16.gmra.mrb[0].mxu0 %v2868
        %v3491 = vpop.f32.mrb[0].mxu0
        %v3492 = vadd.f32 0.0, %v3491
        %v3493 = vpop.f32.mrb[0].mxu0
        %v3494 = vpop.f32.mrb[0].mxu0
        %v3495 = vadd.f32 0.0, %v3494
        %v3496 = vpop.f32.mrb[0].mxu0
        %3497 = vmatprep.mubr.bf16.mxu0 %v2874
        %3498 = vmatmul.mubr.bf16.gmra.mrb[0].mxu0 %v2871
        %v3499 = vpop.f32.mrb[0].mxu0
        %v3500 = vadd.f32 0.0, %v3499
        %v3501 = vpop.f32.mrb[0].mxu0
        %v3502 = vpop.f32.mrb[0].mxu0
        %v3503 = vadd.f32 0.0, %v3502
        %v3504 = vpop.f32.mrb[0].mxu0
        %3505 = vmatprep.mubr.bf16.mxu0 %v2877
        %3506 = vmatmul.mubr.bf16.gmra.mrb[0].mxu0 %v2874
        %v3507 = vpop.f32.mrb[0].mxu0
        %v3508 = vadd.f32 0.0, %v3507
        %v3509 = vpop.f32.mrb[0].mxu0
        %v3510 = vpop.f32.mrb[0].mxu0
        %v3511 = vadd.f32 0.0, %v3510
        %v3512 = vpop.f32.mrb[0].mxu0
        %3513 = vmatprep.mubr.bf16.mxu0 %v2880
        %3514 = vmatmul.mubr.bf16.gmra.mrb[0].mxu0 %v2877
        %v3515 = vpop.f32.mrb[0].mxu0
        %v3516 = vadd.f32 0.0, %v3515
        %v3517 = vpop.f32.mrb[0].mxu0
        %v3518 = vpop.f32.mrb[0].mxu0
        %v3519 = vadd.f32 0.0, %v3518
        %v3520 = vpop.f32.mrb[0].mxu0
        %3521 = vdwg.mxu0
        %3522 = vmatprep.subr.bf16.mxu0 0
        %3523 = vmatpush1.bf16.msra.mxu0 %v3329
        %3524 = vmatprep.subr.bf16.mxu0 0
        %3525 = vmatpush1.bf16.msra.mxu0 %v3330
        %3526 = vmatprep.subr.bf16.mxu0 0
        %3527 = vmatpush1.bf16.msra.mxu0 %v3331
        %3528 = vmatprep.subr.bf16.mxu0 0
        %3529 = vmatpush1.bf16.msra.mxu0 %v3332
        %3530 = vmatprep.subr.bf16.mxu0 0
        %3531 = vmatpush1.bf16.msra.mxu0 %v3333
        %3532 = vmatprep.subr.bf16.mxu0 0
        %3533 = vmatpush1.bf16.msra.mxu0 %v3334
        %3534 = vmatprep.subr.bf16.mxu0 0
        %3535 = vmatpush1.bf16.msra.mxu0 %v3335
        %3536 = vmatprep.subr.bf16.mxu0 0
        %3537 = vmatpush1.bf16.msra.mxu0 %v3336
        %3538 = vmatprep.subr.bf16.mxu0 0
        %3539 = vmatpush1.bf16.msra.mxu0 0
        %3540 = vmatprep.subr.bf16.mxu0 0
        %3541 = vmatpush1.bf16.msra.mxu0 0
        %3542 = vmatprep.subr.bf16.mxu0 0
        %3543 = vmatpush1.bf16.msra.mxu0 0
        %3544 = vmatprep.subr.bf16.mxu0 0
        %3545 = vmatpush1.bf16.msra.mxu0 0
        %3546 = vmatprep.subr.bf16.mxu0 0
        %3547 = vmatpush1.bf16.msra.mxu0 0
        %3548 = vmatprep.subr.bf16.mxu0 0
        %3549 = vmatpush1.bf16.msra.mxu0 0
        %3550 = vmatprep.subr.bf16.mxu0 0
        %3551 = vmatpush1.bf16.msra.mxu0 0
        %3552 = vmatprep.subr.bf16.mxu0 0
        %3553 = vmatpush1.bf16.msra.mxu0 0
        %3554 = vmatprep.mubr.bf16.mxu0 0
        %3555 = vmatmul.mubr.bf16.gmra.mrb[0].mxu0 %v2838
        %v3556 = vpop.f32.mrb[0].mxu0
        %v3557 = vadd.f32 %v3396, %v3556
        %v3558 = vpop.f32.mrb[0].mxu0
        %v3559 = vpop.f32.mrb[0].mxu0
        %v3560 = vadd.f32 %v3399, %v3559
        %v3561 = vpop.f32.mrb[0].mxu0
        %3562 = vmatprep.mubr.bf16.mxu0 0
        %3563 = vmatmul.mubr.bf16.gmra.mrb[0].mxu0 %v2841
        %v3564 = vpop.f32.mrb[0].mxu0
        %v3565 = vadd.f32 %v3404, %v3564
        %v3566 = vpop.f32.mrb[0].mxu0
        %v3567 = vpop.f32.mrb[0].mxu0
        %v3568 = vadd.f32 %v3407, %v3567
        %v3569 = vpop.f32.mrb[0].mxu0
        %3570 = vmatprep.mubr.bf16.mxu0 0
        %3571 = vmatmul.mubr.bf16.gmra.mrb[0].mxu0 %v2844
        %v3572 = vpop.f32.mrb[0].mxu0
        %v3573 = vadd.f32 %v3412, %v3572
        %v3574 = vpop.f32.mrb[0].mxu0
        %v3575 = vpop.f32.mrb[0].mxu0
        %v3576 = vadd.f32 %v3415, %v3575
        %v3577 = vpop.f32.mrb[0].mxu0
        %3578 = vmatprep.mubr.bf16.mxu0 0
        %3579 = vmatmul.mubr.bf16.gmra.mrb[0].mxu0 %v2847
        %v3580 = vpop.f32.mrb[0].mxu0
        %v3581 = vadd.f32 %v3420, %v3580
        %v3582 = vpop.f32.mrb[0].mxu0
        %v3583 = vpop.f32.mrb[0].mxu0
        %v3584 = vadd.f32 %v3423, %v3583
        %v3585 = vpop.f32.mrb[0].mxu0
        %3586 = vmatprep.mubr.bf16.mxu0 0
        %3587 = vmatmul.mubr.bf16.gmra.mrb[0].mxu0 %v2850
        %v3588 = vpop.f32.mrb[0].mxu0
        %v3589 = vadd.f32 %v3428, %v3588
        %v3590 = vpop.f32.mrb[0].mxu0
        %v3591 = vpop.f32.mrb[0].mxu0
        %v3592 = vadd.f32 %v3431, %v3591
        %v3593 = vpop.f32.mrb[0].mxu0
        %3594 = vmatprep.mubr.bf16.mxu0 0
        %3595 = vmatmul.mubr.bf16.gmra.mrb[0].mxu0 %v2853
        %v3596 = vpop.f32.mrb[0].mxu0
        %v3597 = vadd.f32 %v3436, %v3596
        %v3598 = vpop.f32.mrb[0].mxu0
        %v3599 = vpop.f32.mrb[0].mxu0
        %v3600 = vadd.f32 %v3439, %v3599
        %v3601 = vpop.f32.mrb[0].mxu0
        %3602 = vmatprep.mubr.bf16.mxu0 0
        %3603 = vmatmul.mubr.bf16.gmra.mrb[0].mxu0 %v2856
        %v3604 = vpop.f32.mrb[0].mxu0
        %v3605 = vadd.f32 %v3444, %v3604
        %v3606 = vpop.f32.mrb[0].mxu0
        %v3607 = vpop.f32.mrb[0].mxu0
        %v3608 = vadd.f32 %v3447, %v3607
        %v3609 = vpop.f32.mrb[0].mxu0
        %3610 = vmatprep.mubr.bf16.mxu0 0
        %3611 = vmatmul.mubr.bf16.gmra.mrb[0].mxu0 %v2859
        %v3612 = vpop.f32.mrb[0].mxu0
        %v3613 = vadd.f32 %v3452, %v3612
        %v3614 = vpop.f32.mrb[0].mxu0
        %v3615 = vpop.f32.mrb[0].mxu0
        %v3616 = vadd.f32 %v3455, %v3615
        %v3617 = vpop.f32.mrb[0].mxu0
        %3618 = vmatprep.mubr.bf16.mxu0 0
        %3619 = vmatmul.mubr.bf16.gmra.mrb[0].mxu0 %v2862
        %v3620 = vpop.f32.mrb[0].mxu0
        %v3621 = vadd.f32 %v3460, %v3620
        %v3622 = vpop.f32.mrb[0].mxu0
        %v3623 = vpop.f32.mrb[0].mxu0
        %v3624 = vadd.f32 %v3463, %v3623
        %v3625 = vpop.f32.mrb[0].mxu0
        %3626 = vmatprep.mubr.bf16.mxu0 0
        %3627 = vmatmul.mubr.bf16.gmra.mrb[0].mxu0 %v2865
        %v3628 = vpop.f32.mrb[0].mxu0
        %v3629 = vadd.f32 %v3468, %v3628
        %v3630 = vpop.f32.mrb[0].mxu0
        %v3631 = vpop.f32.mrb[0].mxu0
        %v3632 = vadd.f32 %v3471, %v3631
        %v3633 = vpop.f32.mrb[0].mxu0
        %3634 = vmatprep.mubr.bf16.mxu0 0
        %3635 = vmatmul.mubr.bf16.gmra.mrb[0].mxu0 %v2868
        %v3636 = vpop.f32.mrb[0].mxu0
        %v3637 = vadd.f32 %v3476, %v3636
        %v3638 = vpop.f32.mrb[0].mxu0
        %v3639 = vpop.f32.mrb[0].mxu0
        %v3640 = vadd.f32 %v3479, %v3639
        %v3641 = vpop.f32.mrb[0].mxu0
        %3642 = vmatprep.mubr.bf16.mxu0 0
        %3643 = vmatmul.mubr.bf16.gmra.mrb[0].mxu0 %v2871
        %v3644 = vpop.f32.mrb[0].mxu0
        %v3645 = vadd.f32 %v3484, %v3644
        %v3646 = vpop.f32.mrb[0].mxu0
        %v3647 = vpop.f32.mrb[0].mxu0
        %v3648 = vadd.f32 %v3487, %v3647
        %v3649 = vpop.f32.mrb[0].mxu0
        %3650 = vmatprep.mubr.bf16.mxu0 0
        %3651 = vmatmul.mubr.bf16.gmra.mrb[0].mxu0 %v2874
        %v3652 = vpop.f32.mrb[0].mxu0
        %v3653 = vadd.f32 %v3492, %v3652
        %v3654 = vpop.f32.mrb[0].mxu0
        %v3655 = vpop.f32.mrb[0].mxu0
        %v3656 = vadd.f32 %v3495, %v3655
        %v3657 = vpop.f32.mrb[0].mxu0
        %3658 = vmatprep.mubr.bf16.mxu0 0
        %3659 = vmatmul.mubr.bf16.gmra.mrb[0].mxu0 %v2877
        %v3660 = vpop.f32.mrb[0].mxu0
        %v3661 = vadd.f32 %v3500, %v3660
        %v3662 = vpop.f32.mrb[0].mxu0
        %v3663 = vpop.f32.mrb[0].mxu0
        %v3664 = vadd.f32 %v3503, %v3663
        %v3665 = vpop.f32.mrb[0].mxu0
        %3666 = vmatprep.mubr.bf16.mxu0 0
        %3667 = vmatmul.mubr.bf16.gmra.mrb[0].mxu0 %v2880
        %v3668 = vpop.f32.mrb[0].mxu0
        %v3669 = vadd.f32 %v3508, %v3668
        %v3670 = vpop.f32.mrb[0].mxu0
        %v3671 = vpop.f32.mrb[0].mxu0
        %v3672 = vadd.f32 %v3511, %v3671
        %v3673 = vpop.f32.mrb[0].mxu0
        %3674 = vmatprep.mubr.bf16.mxu0 0
        %3675 = vmatmul.mubr.bf16.gmra.mrb[0].mxu0 %v2883
        %v3676 = vpop.f32.mrb[0].mxu0
        %v3677 = vadd.f32 %v3516, %v3676
        %v3678 = vpop.f32.mrb[0].mxu0
        %v3679 = vpop.f32.mrb[0].mxu0
        %v3680 = vadd.f32 %v3519, %v3679
        %v3681 = vpop.f32.mrb[0].mxu0
        %3682 = vdwg.mxu0
        %v3731 = vunpack.c.l.b16 %v3120
        %v3732 = vunpack.c.l.b16 %v3121
        %v3733 = vunpack.c.l.b16 %v3122
        %v3734 = vunpack.c.l.b16 %v3123
        %v3735 = vunpack.c.l.b16 %v3124
        %v3736 = vunpack.c.l.b16 %v3125
        %v3737 = vunpack.c.l.b16 %v3126
        %v3738 = vunpack.c.l.b16 %v3127
        %v3739 = vunpack.c.l.b16 %v3128
        %v3740 = vunpack.c.l.b16 %v3129
        %v3741 = vunpack.c.l.b16 %v3130
        %v3742 = vunpack.c.l.b16 %v3131
        %v3743 = vunpack.c.l.b16 %v3132
        %v3744 = vunpack.c.l.b16 %v3133
        %v3745 = vunpack.c.l.b16 %v3134
        %v3746 = vunpack.c.l.b16 %v3135
        %v3747 = vunpack.c.l.b16 %v3136
        %v3748 = vunpack.c.l.b16 %v3137
        %v3749 = vunpack.c.l.b16 %v3138
        %v3750 = vunpack.c.l.b16 %v3139
        %v3751 = vunpack.c.l.b16 %v3140
        %v3752 = vunpack.c.l.b16 %v3141
        %v3753 = vunpack.c.l.b16 %v3142
        %v3754 = vunpack.c.l.b16 %v3143
        %v3755 = vunpack.c.l.b16 %v3144
        %v3756 = vunpack.c.l.b16 %v3145
        %v3757 = vunpack.c.l.b16 %v3146
        %v3758 = vunpack.c.l.b16 %v3147
        %v3759 = vunpack.c.l.b16 %v3148
        %v3760 = vunpack.c.l.b16 %v3149
        %v3761 = vunpack.c.l.b16 %v3150
        %v3762 = vunpack.c.l.b16 %v3151
        %v3763 = vunpack.c.l.b16 %v3152
        %v3764 = vunpack.c.l.b16 %v3153
        %v3765 = vunpack.c.l.b16 %v3154
        %v3766 = vunpack.c.l.b16 %v3155
        %v3767 = vunpack.c.l.b16 %v3156
        %v3768 = vunpack.c.l.b16 %v3157
        %v3769 = vunpack.c.l.b16 %v3158
        %v3770 = vunpack.c.l.b16 %v3159
        %v3771 = vunpack.c.l.b16 %v3160
        %v3772 = vunpack.c.l.b16 %v3161
        %v3773 = vunpack.c.l.b16 %v3162
        %v3774 = vunpack.c.l.b16 %v3163
        %v3775 = vunpack.c.l.b16 %v3164
        %v3776 = vunpack.c.l.b16 %v3165
        %v3777 = vunpack.c.l.b16 %v3166
        %v3778 = vunpack.c.l.b16 %v3167
        %v3779 = vpack.c.b16 %v3732, %v3731
        %v3780 = vpack.c.b16 %v3734, %v3733
        %v3781 = vpack.c.b16 %v3736, %v3735
        %v3782 = vpack.c.b16 %v3738, %v3737
        %v3783 = vpack.c.b16 %v3740, %v3739
        %v3784 = vpack.c.b16 %v3742, %v3741
        %v3785 = vpack.c.b16 %v3744, %v3743
        %v3786 = vpack.c.b16 %v3746, %v3745
        %v3787 = vpack.c.b16 %v3748, %v3747
        %v3788 = vpack.c.b16 %v3750, %v3749
        %v3789 = vpack.c.b16 %v3752, %v3751
        %v3790 = vpack.c.b16 %v3754, %v3753
        %v3791 = vpack.c.b16 %v3756, %v3755
        %v3792 = vpack.c.b16 %v3758, %v3757
        %v3793 = vpack.c.b16 %v3760, %v3759
        %v3794 = vpack.c.b16 %v3762, %v3761
        %v3795 = vpack.c.b16 %v3764, %v3763
        %v3796 = vpack.c.b16 %v3766, %v3765
        %v3797 = vpack.c.b16 %v3768, %v3767
        %v3798 = vpack.c.b16 %v3770, %v3769
        %v3799 = vpack.c.b16 %v3772, %v3771
        %v3800 = vpack.c.b16 %v3774, %v3773
        %v3801 = vpack.c.b16 %v3776, %v3775
        %v3802 = vpack.c.b16 %v3778, %v3777
        %3827 = vmatprep.subr.bf16.mxu0 0
        %3828 = vmatpush1.bf16.msra.mxu0 %v3779
        %3829 = vmatprep.subr.bf16.mxu0 0
        %3830 = vmatpush1.bf16.msra.mxu0 %v3780
        %3831 = vmatprep.subr.bf16.mxu0 0
        %3832 = vmatpush1.bf16.msra.mxu0 %v3781
        %3833 = vmatprep.subr.bf16.mxu0 0
        %3834 = vmatpush1.bf16.msra.mxu0 %v3782
        %3835 = vmatprep.subr.bf16.mxu0 0
        %3836 = vmatpush1.bf16.msra.mxu0 %v3783
        %3837 = vmatprep.subr.bf16.mxu0 0
        %3838 = vmatpush1.bf16.msra.mxu0 %v3784
        %3839 = vmatprep.subr.bf16.mxu0 0
        %3840 = vmatpush1.bf16.msra.mxu0 %v3785
        %3841 = vmatprep.subr.bf16.mxu0 0
        %3842 = vmatpush1.bf16.msra.mxu0 %v3786
        %3843 = vmatprep.subr.bf16.mxu0 0
        %3844 = vmatpush1.bf16.msra.mxu0 %v3787
        %3845 = vmatprep.subr.bf16.mxu0 0
        %3846 = vmatpush1.bf16.msra.mxu0 %v3788
        %3847 = vmatprep.subr.bf16.mxu0 0
        %3848 = vmatpush1.bf16.msra.mxu0 %v3789
        %3849 = vmatprep.subr.bf16.mxu0 0
        %3850 = vmatpush1.bf16.msra.mxu0 %v3790
        %3851 = vmatprep.subr.bf16.mxu0 0
        %3852 = vmatpush1.bf16.msra.mxu0 %v3791
        %3853 = vmatprep.subr.bf16.mxu0 0
        %3854 = vmatpush1.bf16.msra.mxu0 %v3792
        %3855 = vmatprep.subr.bf16.mxu0 0
        %3856 = vmatpush1.bf16.msra.mxu0 %v3793
        %3857 = vmatprep.subr.bf16.mxu0 0
        %3858 = vmatpush1.bf16.msra.mxu0 %v3794
        %3859 = vmatprep.mubr.bf16.mxu0 %v2909
        %3860 = vmatmul.mubr.bf16.gmra.mrb[0].mxu0 %v2897
        %v3861 = vpop.f32.mrb[0].mxu0
        %v3862 = vadd.f32 %v3557, %v3861
        %v3863 = vpop.f32.mrb[0].mxu0
        %v3864 = vpop.f32.mrb[0].mxu0
        %v3865 = vadd.f32 %v3560, %v3864
        %v3866 = vpop.f32.mrb[0].mxu0
        %3867 = vmatprep.mubr.bf16.mxu0 %v2921
        %3868 = vmatmul.mubr.bf16.gmra.mrb[0].mxu0 %v2909
        %v3869 = vpop.f32.mrb[0].mxu0
        %v3870 = vadd.f32 %v3565, %v3869
        %v3871 = vpop.f32.mrb[0].mxu0
        %v3872 = vpop.f32.mrb[0].mxu0
        %v3873 = vadd.f32 %v3568, %v3872
        %v3874 = vpop.f32.mrb[0].mxu0
        %3875 = vmatprep.mubr.bf16.mxu0 %v2933
        %3876 = vmatmul.mubr.bf16.gmra.mrb[0].mxu0 %v2921
        %v3877 = vpop.f32.mrb[0].mxu0
        %v3878 = vadd.f32 %v3573, %v3877
        %v3879 = vpop.f32.mrb[0].mxu0
        %v3880 = vpop.f32.mrb[0].mxu0
        %v3881 = vadd.f32 %v3576, %v3880
        %v3882 = vpop.f32.mrb[0].mxu0
        %3883 = vmatprep.mubr.bf16.mxu0 %v2945
        %3884 = vmatmul.mubr.bf16.gmra.mrb[0].mxu0 %v2933
        %v3885 = vpop.f32.mrb[0].mxu0
        %v3886 = vadd.f32 %v3581, %v3885
        %v3887 = vpop.f32.mrb[0].mxu0
        %v3888 = vpop.f32.mrb[0].mxu0
        %v3889 = vadd.f32 %v3584, %v3888
        %v3890 = vpop.f32.mrb[0].mxu0
        %3891 = vmatprep.mubr.bf16.mxu0 %v2957
        %3892 = vmatmul.mubr.bf16.gmra.mrb[0].mxu0 %v2945
        %v3893 = vpop.f32.mrb[0].mxu0
        %v3894 = vadd.f32 %v3589, %v3893
        %v3895 = vpop.f32.mrb[0].mxu0
        %v3896 = vpop.f32.mrb[0].mxu0
        %v3897 = vadd.f32 %v3592, %v3896
        %v3898 = vpop.f32.mrb[0].mxu0
        %3899 = vmatprep.mubr.bf16.mxu0 %v2969
        %3900 = vmatmul.mubr.bf16.gmra.mrb[0].mxu0 %v2957
        %v3901 = vpop.f32.mrb[0].mxu0
        %v3902 = vadd.f32 %v3597, %v3901
        %v3903 = vpop.f32.mrb[0].mxu0
        %v3904 = vpop.f32.mrb[0].mxu0
        %v3905 = vadd.f32 %v3600, %v3904
        %v3906 = vpop.f32.mrb[0].mxu0
        %3907 = vmatprep.mubr.bf16.mxu0 %v2981
        %3908 = vmatmul.mubr.bf16.gmra.mrb[0].mxu0 %v2969
        %v3909 = vpop.f32.mrb[0].mxu0
        %v3910 = vadd.f32 %v3605, %v3909
        %v3911 = vpop.f32.mrb[0].mxu0
        %v3912 = vpop.f32.mrb[0].mxu0
        %v3913 = vadd.f32 %v3608, %v3912
        %v3914 = vpop.f32.mrb[0].mxu0
        %3915 = vmatprep.mubr.bf16.mxu0 %v2993
        %3916 = vmatmul.mubr.bf16.gmra.mrb[0].mxu0 %v2981
        %v3917 = vpop.f32.mrb[0].mxu0
        %v3918 = vadd.f32 %v3613, %v3917
        %v3919 = vpop.f32.mrb[0].mxu0
        %v3920 = vpop.f32.mrb[0].mxu0
        %v3921 = vadd.f32 %v3616, %v3920
        %v3922 = vpop.f32.mrb[0].mxu0
        %3923 = vmatprep.mubr.bf16.mxu0 %v3005
        %3924 = vmatmul.mubr.bf16.gmra.mrb[0].mxu0 %v2993
        %v3925 = vpop.f32.mrb[0].mxu0
        %v3926 = vadd.f32 %v3621, %v3925
        %v3927 = vpop.f32.mrb[0].mxu0
        %v3928 = vpop.f32.mrb[0].mxu0
        %v3929 = vadd.f32 %v3624, %v3928
        %v3930 = vpop.f32.mrb[0].mxu0
        %3931 = vmatprep.mubr.bf16.mxu0 %v3017
        %3932 = vmatmul.mubr.bf16.gmra.mrb[0].mxu0 %v3005
        %v3933 = vpop.f32.mrb[0].mxu0
        %v3934 = vadd.f32 %v3629, %v3933
        %v3935 = vpop.f32.mrb[0].mxu0
        %v3936 = vpop.f32.mrb[0].mxu0
        %v3937 = vadd.f32 %v3632, %v3936
        %v3938 = vpop.f32.mrb[0].mxu0
        %3939 = vmatprep.mubr.bf16.mxu0 %v3029
        %3940 = vmatmul.mubr.bf16.gmra.mrb[0].mxu0 %v3017
        %v3941 = vpop.f32.mrb[0].mxu0
        %v3942 = vadd.f32 %v3637, %v3941
        %v3943 = vpop.f32.mrb[0].mxu0
        %v3944 = vpop.f32.mrb[0].mxu0
        %v3945 = vadd.f32 %v3640, %v3944
        %v3946 = vpop.f32.mrb[0].mxu0
        %3947 = vmatprep.mubr.bf16.mxu0 %v3041
        %3948 = vmatmul.mubr.bf16.gmra.mrb[0].mxu0 %v3029
        %v3949 = vpop.f32.mrb[0].mxu0
        %v3950 = vadd.f32 %v3645, %v3949
        %v3951 = vpop.f32.mrb[0].mxu0
        %v3952 = vpop.f32.mrb[0].mxu0
        %v3953 = vadd.f32 %v3648, %v3952
        %v3954 = vpop.f32.mrb[0].mxu0
        %3955 = vmatprep.mubr.bf16.mxu0 %v3053
        %3956 = vmatmul.mubr.bf16.gmra.mrb[0].mxu0 %v3041
        %v3957 = vpop.f32.mrb[0].mxu0
        %v3958 = vadd.f32 %v3653, %v3957
        %v3959 = vpop.f32.mrb[0].mxu0
        %v3960 = vpop.f32.mrb[0].mxu0
        %v3961 = vadd.f32 %v3656, %v3960
        %v3962 = vpop.f32.mrb[0].mxu0
        %3963 = vmatprep.mubr.bf16.mxu0 %v3065
        %3964 = vmatmul.mubr.bf16.gmra.mrb[0].mxu0 %v3053
        %v3965 = vpop.f32.mrb[0].mxu0
        %v3966 = vadd.f32 %v3661, %v3965
        %v3967 = vpop.f32.mrb[0].mxu0
        %v3968 = vpop.f32.mrb[0].mxu0
        %v3969 = vadd.f32 %v3664, %v3968
        %v3970 = vpop.f32.mrb[0].mxu0
        %3971 = vmatprep.mubr.bf16.mxu0 %v3077
        %3972 = vmatmul.mubr.bf16.gmra.mrb[0].mxu0 %v3065
        %v3973 = vpop.f32.mrb[0].mxu0
        %v3974 = vadd.f32 %v3669, %v3973
        %v3975 = vpop.f32.mrb[0].mxu0
        %v3976 = vpop.f32.mrb[0].mxu0
        %v3977 = vadd.f32 %v3672, %v3976
        %v3978 = vpop.f32.mrb[0].mxu0
        %3979 = vmatprep.mubr.bf16.mxu0 %v3105
        %3980 = vmatmul.mubr.bf16.gmra.mrb[0].mxu0 %v3077
        %v3981 = vpop.f32.mrb[0].mxu0
        %v3982 = vadd.f32 %v3677, %v3981
        %v3983 = vpop.f32.mrb[0].mxu0
        %v3984 = vpop.f32.mrb[0].mxu0
        %v3985 = vadd.f32 %v3680, %v3984
        %v3986 = vpop.f32.mrb[0].mxu0
        %3987 = vdwg.mxu0
        %3988 = vmatprep.subr.bf16.mxu0 0
        %3989 = vmatpush1.bf16.msra.mxu0 %v3795
        %3990 = vmatprep.subr.bf16.mxu0 0
        %3991 = vmatpush1.bf16.msra.mxu0 %v3796
        %3992 = vmatprep.subr.bf16.mxu0 0
        %3993 = vmatpush1.bf16.msra.mxu0 %v3797
        %3994 = vmatprep.subr.bf16.mxu0 0
        %3995 = vmatpush1.bf16.msra.mxu0 %v3798
        %3996 = vmatprep.subr.bf16.mxu0 0
        %3997 = vmatpush1.bf16.msra.mxu0 %v3799
        %3998 = vmatprep.subr.bf16.mxu0 0
        %3999 = vmatpush1.bf16.msra.mxu0 %v3800
        %4000 = vmatprep.subr.bf16.mxu0 0
        %4001 = vmatpush1.bf16.msra.mxu0 %v3801
        %4002 = vmatprep.subr.bf16.mxu0 0
        %4003 = vmatpush1.bf16.msra.mxu0 %v3802
        %4004 = vmatprep.subr.bf16.mxu0 0
        %4005 = vmatpush1.bf16.msra.mxu0 0
        %4006 = vmatprep.subr.bf16.mxu0 0
        %4007 = vmatpush1.bf16.msra.mxu0 0
        %4008 = vmatprep.subr.bf16.mxu0 0
        %4009 = vmatpush1.bf16.msra.mxu0 0
        %4010 = vmatprep.subr.bf16.mxu0 0
        %4011 = vmatpush1.bf16.msra.mxu0 0
        %4012 = vmatprep.subr.bf16.mxu0 0
        %4013 = vmatpush1.bf16.msra.mxu0 0
        %4014 = vmatprep.subr.bf16.mxu0 0
        %4015 = vmatpush1.bf16.msra.mxu0 0
        %4016 = vmatprep.subr.bf16.mxu0 0
        %4017 = vmatpush1.bf16.msra.mxu0 0
        %4018 = vmatprep.subr.bf16.mxu0 0
        %4019 = vmatpush1.bf16.msra.mxu0 0
        %4020 = vmatprep.mubr.bf16.mxu0 0
        %4021 = vmatmul.mubr.bf16.gmra.mrb[0].mxu0 %v2921
        %v4022 = vpop.f32.mrb[0].mxu0
        %v4023 = vadd.f32 %v3862, %v4022
        %v4024 = vpop.f32.mrb[0].mxu0
        %v4025 = vpop.f32.mrb[0].mxu0
        %v4026 = vadd.f32 %v3865, %v4025
        %v4027 = vpop.f32.mrb[0].mxu0
        %4028 = vmatprep.mubr.bf16.mxu0 0
        %4029 = vmatmul.mubr.bf16.gmra.mrb[0].mxu0 %v2933
        %v4030 = vpop.f32.mrb[0].mxu0
        %v4031 = vadd.f32 %v3870, %v4030
        %v4032 = vpop.f32.mrb[0].mxu0
        %v4033 = vpop.f32.mrb[0].mxu0
        %v4034 = vadd.f32 %v3873, %v4033
        %v4035 = vpop.f32.mrb[0].mxu0
        %4036 = vmatprep.mubr.bf16.mxu0 0
        %4037 = vmatmul.mubr.bf16.gmra.mrb[0].mxu0 %v2945
        %v4038 = vpop.f32.mrb[0].mxu0
        %v4039 = vadd.f32 %v3878, %v4038
        %v4040 = vpop.f32.mrb[0].mxu0
        %v4041 = vpop.f32.mrb[0].mxu0
        %v4042 = vadd.f32 %v3881, %v4041
        %v4043 = vpop.f32.mrb[0].mxu0
        %4044 = vmatprep.mubr.bf16.mxu0 0
        %4045 = vmatmul.mubr.bf16.gmra.mrb[0].mxu0 %v2957
        %v4046 = vpop.f32.mrb[0].mxu0
        %v4047 = vadd.f32 %v3886, %v4046
        %v4048 = vpop.f32.mrb[0].mxu0
        %v4049 = vpop.f32.mrb[0].mxu0
        %v4050 = vadd.f32 %v3889, %v4049
        %v4051 = vpop.f32.mrb[0].mxu0
        %4052 = vmatprep.mubr.bf16.mxu0 0
        %4053 = vmatmul.mubr.bf16.gmra.mrb[0].mxu0 %v2969
        %v4054 = vpop.f32.mrb[0].mxu0
        %v4055 = vadd.f32 %v3894, %v4054
        %v4056 = vpop.f32.mrb[0].mxu0
        %v4057 = vpop.f32.mrb[0].mxu0
        %v4058 = vadd.f32 %v3897, %v4057
        %v4059 = vpop.f32.mrb[0].mxu0
        %4060 = vmatprep.mubr.bf16.mxu0 0
        %4061 = vmatmul.mubr.bf16.gmra.mrb[0].mxu0 %v2981
        %v4062 = vpop.f32.mrb[0].mxu0
        %v4063 = vadd.f32 %v3902, %v4062
        %v4064 = vpop.f32.mrb[0].mxu0
        %v4065 = vpop.f32.mrb[0].mxu0
        %v4066 = vadd.f32 %v3905, %v4065
        %v4067 = vpop.f32.mrb[0].mxu0
        %4068 = vmatprep.mubr.bf16.mxu0 0
        %4069 = vmatmul.mubr.bf16.gmra.mrb[0].mxu0 %v2993
        %v4070 = vpop.f32.mrb[0].mxu0
        %v4071 = vadd.f32 %v3910, %v4070
        %v4072 = vpop.f32.mrb[0].mxu0
        %v4073 = vpop.f32.mrb[0].mxu0
        %v4074 = vadd.f32 %v3913, %v4073
        %v4075 = vpop.f32.mrb[0].mxu0
        %4076 = vmatprep.mubr.bf16.mxu0 0
        %4077 = vmatmul.mubr.bf16.gmra.mrb[0].mxu0 %v3005
        %v4078 = vpop.f32.mrb[0].mxu0
        %v4079 = vadd.f32 %v3918, %v4078
        %v4080 = vpop.f32.mrb[0].mxu0
        %v4081 = vpop.f32.mrb[0].mxu0
        %v4082 = vadd.f32 %v3921, %v4081
        %v4083 = vpop.f32.mrb[0].mxu0
        %4084 = vmatprep.mubr.bf16.mxu0 0
        %4085 = vmatmul.mubr.bf16.gmra.mrb[0].mxu0 %v3017
        %v4086 = vpop.f32.mrb[0].mxu0
        %v4087 = vadd.f32 %v3926, %v4086
        %v4088 = vpop.f32.mrb[0].mxu0
        %v4089 = vpop.f32.mrb[0].mxu0
        %v4090 = vadd.f32 %v3929, %v4089
        %v4091 = vpop.f32.mrb[0].mxu0
        %4092 = vmatprep.mubr.bf16.mxu0 0
        %4093 = vmatmul.mubr.bf16.gmra.mrb[0].mxu0 %v3029
        %v4094 = vpop.f32.mrb[0].mxu0
        %v4095 = vadd.f32 %v3934, %v4094
        %v4096 = vpop.f32.mrb[0].mxu0
        %v4097 = vpop.f32.mrb[0].mxu0
        %v4098 = vadd.f32 %v3937, %v4097
        %v4099 = vpop.f32.mrb[0].mxu0
        %4100 = vmatprep.mubr.bf16.mxu0 0
        %4101 = vmatmul.mubr.bf16.gmra.mrb[0].mxu0 %v3041
        %v4102 = vpop.f32.mrb[0].mxu0
        %v4103 = vadd.f32 %v3942, %v4102
        %v4104 = vpop.f32.mrb[0].mxu0
        %v4105 = vpop.f32.mrb[0].mxu0
        %v4106 = vadd.f32 %v3945, %v4105
        %v4107 = vpop.f32.mrb[0].mxu0
        %4108 = vmatprep.mubr.bf16.mxu0 0
        %4109 = vmatmul.mubr.bf16.gmra.mrb[0].mxu0 %v3053
        %v4110 = vpop.f32.mrb[0].mxu0
        %v4111 = vadd.f32 %v3950, %v4110
        %v4112 = vpop.f32.mrb[0].mxu0
        %v4113 = vpop.f32.mrb[0].mxu0
        %v4114 = vadd.f32 %v3953, %v4113
        %v4115 = vpop.f32.mrb[0].mxu0
        %4116 = vmatprep.mubr.bf16.mxu0 0
        %4117 = vmatmul.mubr.bf16.gmra.mrb[0].mxu0 %v3065
        %v4118 = vpop.f32.mrb[0].mxu0
        %v4119 = vadd.f32 %v3958, %v4118
        %v4120 = vpop.f32.mrb[0].mxu0
        %v4121 = vpop.f32.mrb[0].mxu0
        %v4122 = vadd.f32 %v3961, %v4121
        %v4123 = vpop.f32.mrb[0].mxu0
        %4124 = vmatprep.mubr.bf16.mxu0 0
        %4125 = vmatmul.mubr.bf16.gmra.mrb[0].mxu0 %v3077
        %v4126 = vpop.f32.mrb[0].mxu0
        %v4127 = vadd.f32 %v3966, %v4126
        %v4128 = vpop.f32.mrb[0].mxu0
        %v4129 = vpop.f32.mrb[0].mxu0
        %v4130 = vadd.f32 %v3969, %v4129
        %v4131 = vpop.f32.mrb[0].mxu0
        %4132 = vmatprep.mubr.bf16.mxu0 0
        %4133 = vmatmul.mubr.bf16.gmra.mrb[0].mxu0 %v3105
        %v4134 = vpop.f32.mrb[0].mxu0
        %v4135 = vadd.f32 %v3974, %v4134
        %v4136 = vpop.f32.mrb[0].mxu0
        %v4137 = vpop.f32.mrb[0].mxu0
        %v4138 = vadd.f32 %v3977, %v4137
        %v4139 = vpop.f32.mrb[0].mxu0
        %4140 = vmatprep.mubr.bf16.mxu0 0
        %4141 = vmatmul.mubr.bf16.gmra.mrb[0].mxu0 %v3118
        %v4142 = vpop.f32.mrb[0].mxu0
        %v4143 = vadd.f32 %v3982, %v4142
        %v4144 = vpop.f32.mrb[0].mxu0
        %v4145 = vpop.f32.mrb[0].mxu0
        %v4146 = vadd.f32 %v3985, %v4145
        %v4147 = vpop.f32.mrb[0].mxu0
        %4148 = vdwg.mxu0
        %vm4149 = vsmask.f32 7424
        %v4150 = vrot.slane %v2894, 1
        %v4151 = vor.u32 %v2891, %v4150
        %v4153 = vshll.u32 %v2833, 16
        %v4155 = vrot.slane %v4153, 1
        %v4156 = vsel %vm4149, %v4151, %v4155
        %v4157 = vrot.slane %v2906, 1
        %v4158 = vor.u32 %v2903, %v4157
        %v4160 = vshll.u32 %v2836, 16
        %v4162 = vrot.slane %v4160, 1
        %v4163 = vsel %vm4149, %v4158, %v4162
        %v4164 = vrot.slane %v2918, 1
        %v4165 = vor.u32 %v2915, %v4164
        %v4167 = vshll.u32 %v2839, 16
        %v4169 = vrot.slane %v4167, 1
        %v4170 = vsel %vm4149, %v4165, %v4169
        %v4171 = vrot.slane %v2930, 1
        %v4172 = vor.u32 %v2927, %v4171
        %v4174 = vshll.u32 %v2842, 16
        %v4176 = vrot.slane %v4174, 1
        %v4177 = vsel %vm4149, %v4172, %v4176
        %v4178 = vrot.slane %v2942, 1
        %v4179 = vor.u32 %v2939, %v4178
        %v4181 = vshll.u32 %v2845, 16
        %v4183 = vrot.slane %v4181, 1
        %v4184 = vsel %vm4149, %v4179, %v4183
        %v4185 = vrot.slane %v2954, 1
        %v4186 = vor.u32 %v2951, %v4185
        %v4188 = vshll.u32 %v2848, 16
        %v4190 = vrot.slane %v4188, 1
        %v4191 = vsel %vm4149, %v4186, %v4190
        %v4192 = vrot.slane %v2966, 1
        %v4193 = vor.u32 %v2963, %v4192
        %v4195 = vshll.u32 %v2851, 16
        %v4197 = vrot.slane %v4195, 1
        %v4198 = vsel %vm4149, %v4193, %v4197
        %v4199 = vrot.slane %v2978, 1
        %v4200 = vor.u32 %v2975, %v4199
        %v4202 = vshll.u32 %v2854, 16
        %v4204 = vrot.slane %v4202, 1
        %v4205 = vsel %vm4149, %v4200, %v4204
        %v4206 = vrot.slane %v2990, 1
        %v4207 = vor.u32 %v2987, %v4206
        %v4209 = vshll.u32 %v2857, 16
        %v4211 = vrot.slane %v4209, 1
        %v4212 = vsel %vm4149, %v4207, %v4211
        %v4213 = vrot.slane %v3002, 1
        %v4214 = vor.u32 %v2999, %v4213
        %v4216 = vshll.u32 %v2860, 16
        %v4218 = vrot.slane %v4216, 1
        %v4219 = vsel %vm4149, %v4214, %v4218
        %v4220 = vrot.slane %v3014, 1
        %v4221 = vor.u32 %v3011, %v4220
        %v4223 = vshll.u32 %v2863, 16
        %v4225 = vrot.slane %v4223, 1
        %v4226 = vsel %vm4149, %v4221, %v4225
        %v4227 = vrot.slane %v3026, 1
        %v4228 = vor.u32 %v3023, %v4227
        %v4230 = vshll.u32 %v2866, 16
        %v4232 = vrot.slane %v4230, 1
        %v4233 = vsel %vm4149, %v4228, %v4232
        %v4234 = vrot.slane %v3038, 1
        %v4235 = vor.u32 %v3035, %v4234
        %v4237 = vshll.u32 %v2869, 16
        %v4239 = vrot.slane %v4237, 1
        %v4240 = vsel %vm4149, %v4235, %v4239
        %v4241 = vrot.slane %v3050, 1
        %v4242 = vor.u32 %v3047, %v4241
        %v4244 = vshll.u32 %v2872, 16
        %v4246 = vrot.slane %v4244, 1
        %v4247 = vsel %vm4149, %v4242, %v4246
        %v4248 = vrot.slane %v3062, 1
        %v4249 = vor.u32 %v3059, %v4248
        %v4251 = vshll.u32 %v2875, 16
        %v4253 = vrot.slane %v4251, 1
        %v4254 = vsel %vm4149, %v4249, %v4253
        %v4255 = vrot.slane %v3074, 1
        %v4256 = vor.u32 %v3071, %v4255
        %v4258 = vshll.u32 %v2878, 16
        %v4260 = vrot.slane %v4258, 1
        %v4261 = vsel %vm4149, %v4256, %v4260
        %v4278 = vrot.slane %v3102, 1
        %v4279 = vor.u32 %v3099, %v4278
        %v4281 = vshll.u32 %v2881, 16
        %v4283 = vrot.slane %v4281, 1
        %v4284 = vsel %vm4149, %v4279, %v4283
        %v4286 = vrot.slane %v3115, 1
        %v4287 = vor.u32 %v3112, %v4286
        %v4289 = vshll.u32 %v2884, 16
        %v4291 = vrot.slane %v4289, 1
        %v4292 = vsel %vm4149, %v4287, %v4291
        %s4294 = scalar_lea.vmem %s3, 384
        %v4295 = vld [vmem:[%s4294] sm:$0xf]
        %v4296 = vld [vmem:[%s4294 + $0x4] sm:$0xf]
        %v4297 = vld [vmem:[%s4294 + $0x8] sm:$0xf]
        %v4298 = vld [vmem:[%s4294 + $0xc] sm:$0xf]
        %v4299 = vld [vmem:[%s4294 + $0x10] sm:$0xf]
        %v4300 = vld [vmem:[%s4294 + $0x14] sm:$0xf]
        %v4301 = vld [vmem:[%s4294 + $0x18] sm:$0xf]
        %v4302 = vld [vmem:[%s4294 + $0x1c] sm:$0xf]
        %v4303 = vld [vmem:[%s4294 + $0x20] sm:$0xf]
        %v4304 = vld [vmem:[%s4294 + $0x24] sm:$0xf]
        %v4305 = vld [vmem:[%s4294 + $0x28] sm:$0xf]
        %v4306 = vld [vmem:[%s4294 + $0x2c] sm:$0xf]
        %v4307 = vld [vmem:[%s4294 + $0x30] sm:$0xf]
        %v4308 = vld [vmem:[%s4294 + $0x34] sm:$0xf]
        %v4309 = vld [vmem:[%s4294 + $0x38] sm:$0xf]
        %v4310 = vld [vmem:[%s4294 + $0x3c] sm:$0xf]
        %v4311 = vld [vmem:[%s4294 + $0x40] sm:$0xf]
        %v4312 = vld [vmem:[%s4294 + $0x44] sm:$0xf]
        %v4313 = vld [vmem:[%s4294 + $0x48] sm:$0xf]
        %v4314 = vld [vmem:[%s4294 + $0x4c] sm:$0xf]
        %v4315 = vld [vmem:[%s4294 + $0x50] sm:$0xf]
        %v4316 = vld [vmem:[%s4294 + $0x54] sm:$0xf]
        %v4317 = vld [vmem:[%s4294 + $0x58] sm:$0xf]
        %v4318 = vld [vmem:[%s4294 + $0x5c] sm:$0xf]
        %v4319 = vld [vmem:[%s4294 + $0x60] sm:$0xf]
        %v4320 = vld [vmem:[%s4294 + $0x64] sm:$0xf]
        %v4321 = vld [vmem:[%s4294 + $0x68] sm:$0xf]
        %v4322 = vld [vmem:[%s4294 + $0x6c] sm:$0xf]
        %v4323 = vld [vmem:[%s4294 + $0x70] sm:$0xf]
        %v4324 = vld [vmem:[%s4294 + $0x74] sm:$0xf]
        %v4325 = vld [vmem:[%s4294 + $0x78] sm:$0xf]
        %v4326 = vld [vmem:[%s4294 + $0x7c] sm:$0xf]
        %v4327 = vld [vmem:[%s4294 + $0x80] sm:$0xf]
        %v4328 = vld [vmem:[%s4294 + $0x84] sm:$0xf]
        %v4329 = vld [vmem:[%s4294 + $0x88] sm:$0xf]
        %v4330 = vld [vmem:[%s4294 + $0x8c] sm:$0xf]
        %v4331 = vld [vmem:[%s4294 + $0x90] sm:$0xf]
        %v4332 = vld [vmem:[%s4294 + $0x94] sm:$0xf]
        %v4333 = vld [vmem:[%s4294 + $0x98] sm:$0xf]
        %v4334 = vld [vmem:[%s4294 + $0x9c] sm:$0xf]
        %v4335 = vld [vmem:[%s4294 + $0xa0] sm:$0xf]
        %v4336 = vld [vmem:[%s4294 + $0xa4] sm:$0xf]
        %v4337 = vld [vmem:[%s4294 + $0xa8] sm:$0xf]
        %v4338 = vld [vmem:[%s4294 + $0xac] sm:$0xf]
        %v4339 = vld [vmem:[%s4294 + $0xb0] sm:$0xf]
        %v4340 = vld [vmem:[%s4294 + $0xb4] sm:$0xf]
        %v4341 = vld [vmem:[%s4294 + $0xb8] sm:$0xf]
        %v4342 = vld [vmem:[%s4294 + $0xbc] sm:$0xf]
        %v4391 = vunpack.c.l.b16 %v4295
        %v4392 = vunpack.c.l.b16 %v4296
        %v4393 = vunpack.c.l.b16 %v4297
        %v4394 = vunpack.c.l.b16 %v4298
        %v4395 = vunpack.c.l.b16 %v4299
        %v4396 = vunpack.c.l.b16 %v4300
        %v4397 = vunpack.c.l.b16 %v4301
        %v4398 = vunpack.c.l.b16 %v4302
        %v4399 = vunpack.c.l.b16 %v4303
        %v4400 = vunpack.c.l.b16 %v4304
        %v4401 = vunpack.c.l.b16 %v4305
        %v4402 = vunpack.c.l.b16 %v4306
        %v4403 = vunpack.c.l.b16 %v4307
        %v4404 = vunpack.c.l.b16 %v4308
        %v4405 = vunpack.c.l.b16 %v4309
        %v4406 = vunpack.c.l.b16 %v4310
        %v4407 = vunpack.c.l.b16 %v4311
        %v4408 = vunpack.c.l.b16 %v4312
        %v4409 = vunpack.c.l.b16 %v4313
        %v4410 = vunpack.c.l.b16 %v4314
        %v4411 = vunpack.c.l.b16 %v4315
        %v4412 = vunpack.c.l.b16 %v4316
        %v4413 = vunpack.c.l.b16 %v4317
        %v4414 = vunpack.c.l.b16 %v4318
        %v4415 = vunpack.c.l.b16 %v4319
        %v4416 = vunpack.c.l.b16 %v4320
        %v4417 = vunpack.c.l.b16 %v4321
        %v4418 = vunpack.c.l.b16 %v4322
        %v4419 = vunpack.c.l.b16 %v4323
        %v4420 = vunpack.c.l.b16 %v4324
        %v4421 = vunpack.c.l.b16 %v4325
        %v4422 = vunpack.c.l.b16 %v4326
        %v4423 = vunpack.c.l.b16 %v4327
        %v4424 = vunpack.c.l.b16 %v4328
        %v4425 = vunpack.c.l.b16 %v4329
        %v4426 = vunpack.c.l.b16 %v4330
        %v4427 = vunpack.c.l.b16 %v4331
        %v4428 = vunpack.c.l.b16 %v4332
        %v4429 = vunpack.c.l.b16 %v4333
        %v4430 = vunpack.c.l.b16 %v4334
        %v4431 = vunpack.c.l.b16 %v4335
        %v4432 = vunpack.c.l.b16 %v4336
        %v4433 = vunpack.c.l.b16 %v4337
        %v4434 = vunpack.c.l.b16 %v4338
        %v4435 = vunpack.c.l.b16 %v4339
        %v4436 = vunpack.c.l.b16 %v4340
        %v4437 = vunpack.c.l.b16 %v4341
        %v4438 = vunpack.c.l.b16 %v4342
        %v4439 = vpack.c.b16 %v4392, %v4391
        %v4440 = vpack.c.b16 %v4394, %v4393
        %v4441 = vpack.c.b16 %v4396, %v4395
        %v4442 = vpack.c.b16 %v4398, %v4397
        %v4443 = vpack.c.b16 %v4400, %v4399
        %v4444 = vpack.c.b16 %v4402, %v4401
        %v4445 = vpack.c.b16 %v4404, %v4403
        %v4446 = vpack.c.b16 %v4406, %v4405
        %v4447 = vpack.c.b16 %v4408, %v4407
        %v4448 = vpack.c.b16 %v4410, %v4409
        %v4449 = vpack.c.b16 %v4412, %v4411
        %v4450 = vpack.c.b16 %v4414, %v4413
        %v4451 = vpack.c.b16 %v4416, %v4415
        %v4452 = vpack.c.b16 %v4418, %v4417
        %v4453 = vpack.c.b16 %v4420, %v4419
        %v4454 = vpack.c.b16 %v4422, %v4421
        %v4455 = vpack.c.b16 %v4424, %v4423
        %v4456 = vpack.c.b16 %v4426, %v4425
        %v4457 = vpack.c.b16 %v4428, %v4427
        %v4458 = vpack.c.b16 %v4430, %v4429
        %v4459 = vpack.c.b16 %v4432, %v4431
        %v4460 = vpack.c.b16 %v4434, %v4433
        %v4461 = vpack.c.b16 %v4436, %v4435
        %v4462 = vpack.c.b16 %v4438, %v4437
        %4487 = vmatprep.subr.bf16.mxu0 0
        %4488 = vmatpush1.bf16.msra.mxu0 %v4439
        %4489 = vmatprep.subr.bf16.mxu0 0
        %4490 = vmatpush1.bf16.msra.mxu0 %v4440
        %4491 = vmatprep.subr.bf16.mxu0 0
        %4492 = vmatpush1.bf16.msra.mxu0 %v4441
        %4493 = vmatprep.subr.bf16.mxu0 0
        %4494 = vmatpush1.bf16.msra.mxu0 %v4442
        %4495 = vmatprep.subr.bf16.mxu0 0
        %4496 = vmatpush1.bf16.msra.mxu0 %v4443
        %4497 = vmatprep.subr.bf16.mxu0 0
        %4498 = vmatpush1.bf16.msra.mxu0 %v4444
        %4499 = vmatprep.subr.bf16.mxu0 0
        %4500 = vmatpush1.bf16.msra.mxu0 %v4445
        %4501 = vmatprep.subr.bf16.mxu0 0
        %4502 = vmatpush1.bf16.msra.mxu0 %v4446
        %4503 = vmatprep.subr.bf16.mxu0 0
        %4504 = vmatpush1.bf16.msra.mxu0 %v4447
        %4505 = vmatprep.subr.bf16.mxu0 0
        %4506 = vmatpush1.bf16.msra.mxu0 %v4448
        %4507 = vmatprep.subr.bf16.mxu0 0
        %4508 = vmatpush1.bf16.msra.mxu0 %v4449
        %4509 = vmatprep.subr.bf16.mxu0 0
        %4510 = vmatpush1.bf16.msra.mxu0 %v4450
        %4511 = vmatprep.subr.bf16.mxu0 0
        %4512 = vmatpush1.bf16.msra.mxu0 %v4451
        %4513 = vmatprep.subr.bf16.mxu0 0
        %4514 = vmatpush1.bf16.msra.mxu0 %v4452
        %4515 = vmatprep.subr.bf16.mxu0 0
        %4516 = vmatpush1.bf16.msra.mxu0 %v4453
        %4517 = vmatprep.subr.bf16.mxu0 0
        %4518 = vmatpush1.bf16.msra.mxu0 %v4454
        %4519 = vmatprep.mubr.bf16.mxu0 %v4163
        %4520 = vmatmul.mubr.bf16.gmra.mrb[0].mxu0 %v4156
        %v4521 = vpop.f32.mrb[0].mxu0
        %v4522 = vadd.f32 0.0, %v4521
        %v4523 = vpop.f32.mrb[0].mxu0
        %v4524 = vpop.f32.mrb[0].mxu0
        %v4525 = vadd.f32 0.0, %v4524
        %v4526 = vpop.f32.mrb[0].mxu0
        %4527 = vmatprep.mubr.bf16.mxu0 %v4170
        %4528 = vmatmul.mubr.bf16.gmra.mrb[0].mxu0 %v4163
        %v4529 = vpop.f32.mrb[0].mxu0
        %v4530 = vadd.f32 0.0, %v4529
        %v4531 = vpop.f32.mrb[0].mxu0
        %v4532 = vpop.f32.mrb[0].mxu0
        %v4533 = vadd.f32 0.0, %v4532
        %v4534 = vpop.f32.mrb[0].mxu0
        %4535 = vmatprep.mubr.bf16.mxu0 %v4177
        %4536 = vmatmul.mubr.bf16.gmra.mrb[0].mxu0 %v4170
        %v4537 = vpop.f32.mrb[0].mxu0
        %v4538 = vadd.f32 0.0, %v4537
        %v4539 = vpop.f32.mrb[0].mxu0
        %v4540 = vpop.f32.mrb[0].mxu0
        %v4541 = vadd.f32 0.0, %v4540
        %v4542 = vpop.f32.mrb[0].mxu0
        %4543 = vmatprep.mubr.bf16.mxu0 %v4184
        %4544 = vmatmul.mubr.bf16.gmra.mrb[0].mxu0 %v4177
        %v4545 = vpop.f32.mrb[0].mxu0
        %v4546 = vadd.f32 0.0, %v4545
        %v4547 = vpop.f32.mrb[0].mxu0
        %v4548 = vpop.f32.mrb[0].mxu0
        %v4549 = vadd.f32 0.0, %v4548
        %v4550 = vpop.f32.mrb[0].mxu0
        %4551 = vmatprep.mubr.bf16.mxu0 %v4191
        %4552 = vmatmul.mubr.bf16.gmra.mrb[0].mxu0 %v4184
        %v4553 = vpop.f32.mrb[0].mxu0
        %v4554 = vadd.f32 0.0, %v4553
        %v4555 = vpop.f32.mrb[0].mxu0
        %v4556 = vpop.f32.mrb[0].mxu0
        %v4557 = vadd.f32 0.0, %v4556
        %v4558 = vpop.f32.mrb[0].mxu0
        %4559 = vmatprep.mubr.bf16.mxu0 %v4198
        %4560 = vmatmul.mubr.bf16.gmra.mrb[0].mxu0 %v4191
        %v4561 = vpop.f32.mrb[0].mxu0
        %v4562 = vadd.f32 0.0, %v4561
        %v4563 = vpop.f32.mrb[0].mxu0
        %v4564 = vpop.f32.mrb[0].mxu0
        %v4565 = vadd.f32 0.0, %v4564
        %v4566 = vpop.f32.mrb[0].mxu0
        %4567 = vmatprep.mubr.bf16.mxu0 %v4205
        %4568 = vmatmul.mubr.bf16.gmra.mrb[0].mxu0 %v4198
        %v4569 = vpop.f32.mrb[0].mxu0
        %v4570 = vadd.f32 0.0, %v4569
        %v4571 = vpop.f32.mrb[0].mxu0
        %v4572 = vpop.f32.mrb[0].mxu0
        %v4573 = vadd.f32 0.0, %v4572
        %v4574 = vpop.f32.mrb[0].mxu0
        %4575 = vmatprep.mubr.bf16.mxu0 %v4212
        %4576 = vmatmul.mubr.bf16.gmra.mrb[0].mxu0 %v4205
        %v4577 = vpop.f32.mrb[0].mxu0
        %v4578 = vadd.f32 0.0, %v4577
        %v4579 = vpop.f32.mrb[0].mxu0
        %v4580 = vpop.f32.mrb[0].mxu0
        %v4581 = vadd.f32 0.0, %v4580
        %v4582 = vpop.f32.mrb[0].mxu0
        %4583 = vmatprep.mubr.bf16.mxu0 %v4219
        %4584 = vmatmul.mubr.bf16.gmra.mrb[0].mxu0 %v4212
        %v4585 = vpop.f32.mrb[0].mxu0
        %v4586 = vadd.f32 0.0, %v4585
        %v4587 = vpop.f32.mrb[0].mxu0
        %v4588 = vpop.f32.mrb[0].mxu0
        %v4589 = vadd.f32 0.0, %v4588
        %v4590 = vpop.f32.mrb[0].mxu0
        %4591 = vmatprep.mubr.bf16.mxu0 %v4226
        %4592 = vmatmul.mubr.bf16.gmra.mrb[0].mxu0 %v4219
        %v4593 = vpop.f32.mrb[0].mxu0
        %v4594 = vadd.f32 0.0, %v4593
        %v4595 = vpop.f32.mrb[0].mxu0
        %v4596 = vpop.f32.mrb[0].mxu0
        %v4597 = vadd.f32 0.0, %v4596
        %v4598 = vpop.f32.mrb[0].mxu0
        %4599 = vmatprep.mubr.bf16.mxu0 %v4233
        %4600 = vmatmul.mubr.bf16.gmra.mrb[0].mxu0 %v4226
        %v4601 = vpop.f32.mrb[0].mxu0
        %v4602 = vadd.f32 0.0, %v4601
        %v4603 = vpop.f32.mrb[0].mxu0
        %v4604 = vpop.f32.mrb[0].mxu0
        %v4605 = vadd.f32 0.0, %v4604
        %v4606 = vpop.f32.mrb[0].mxu0
        %4607 = vmatprep.mubr.bf16.mxu0 %v4240
        %4608 = vmatmul.mubr.bf16.gmra.mrb[0].mxu0 %v4233
        %v4609 = vpop.f32.mrb[0].mxu0
        %v4610 = vadd.f32 0.0, %v4609
        %v4611 = vpop.f32.mrb[0].mxu0
        %v4612 = vpop.f32.mrb[0].mxu0
        %v4613 = vadd.f32 0.0, %v4612
        %v4614 = vpop.f32.mrb[0].mxu0
        %4615 = vmatprep.mubr.bf16.mxu0 %v4247
        %4616 = vmatmul.mubr.bf16.gmra.mrb[0].mxu0 %v4240
        %v4617 = vpop.f32.mrb[0].mxu0
        %v4618 = vadd.f32 0.0, %v4617
        %v4619 = vpop.f32.mrb[0].mxu0
        %v4620 = vpop.f32.mrb[0].mxu0
        %v4621 = vadd.f32 0.0, %v4620
        %v4622 = vpop.f32.mrb[0].mxu0
        %4623 = vmatprep.mubr.bf16.mxu0 %v4254
        %4624 = vmatmul.mubr.bf16.gmra.mrb[0].mxu0 %v4247
        %v4625 = vpop.f32.mrb[0].mxu0
        %v4626 = vadd.f32 0.0, %v4625
        %v4627 = vpop.f32.mrb[0].mxu0
        %v4628 = vpop.f32.mrb[0].mxu0
        %v4629 = vadd.f32 0.0, %v4628
        %v4630 = vpop.f32.mrb[0].mxu0
        %4631 = vmatprep.mubr.bf16.mxu0 %v4261
        %4632 = vmatmul.mubr.bf16.gmra.mrb[0].mxu0 %v4254
        %v4633 = vpop.f32.mrb[0].mxu0
        %v4634 = vadd.f32 0.0, %v4633
        %v4635 = vpop.f32.mrb[0].mxu0
        %v4636 = vpop.f32.mrb[0].mxu0
        %v4637 = vadd.f32 0.0, %v4636
        %v4638 = vpop.f32.mrb[0].mxu0
        %4639 = vmatprep.mubr.bf16.mxu0 %v4284
        %4640 = vmatmul.mubr.bf16.gmra.mrb[0].mxu0 %v4261
        %v4641 = vpop.f32.mrb[0].mxu0
        %v4642 = vadd.f32 0.0, %v4641
        %v4643 = vpop.f32.mrb[0].mxu0
        %v4644 = vpop.f32.mrb[0].mxu0
        %v4645 = vadd.f32 0.0, %v4644
        %v4646 = vpop.f32.mrb[0].mxu0
        %4647 = vdwg.mxu0
        %4648 = vmatprep.subr.bf16.mxu0 0
        %4649 = vmatpush1.bf16.msra.mxu0 %v4455
        %4650 = vmatprep.subr.bf16.mxu0 0
        %4651 = vmatpush1.bf16.msra.mxu0 %v4456
        %4652 = vmatprep.subr.bf16.mxu0 0
        %4653 = vmatpush1.bf16.msra.mxu0 %v4457
        %4654 = vmatprep.subr.bf16.mxu0 0
        %4655 = vmatpush1.bf16.msra.mxu0 %v4458
        %4656 = vmatprep.subr.bf16.mxu0 0
        %4657 = vmatpush1.bf16.msra.mxu0 %v4459
        %4658 = vmatprep.subr.bf16.mxu0 0
        %4659 = vmatpush1.bf16.msra.mxu0 %v4460
        %4660 = vmatprep.subr.bf16.mxu0 0
        %4661 = vmatpush1.bf16.msra.mxu0 %v4461
        %4662 = vmatprep.subr.bf16.mxu0 0
        %4663 = vmatpush1.bf16.msra.mxu0 %v4462
        %4664 = vmatprep.subr.bf16.mxu0 0
        %4665 = vmatpush1.bf16.msra.mxu0 0
        %4666 = vmatprep.subr.bf16.mxu0 0
        %4667 = vmatpush1.bf16.msra.mxu0 0
        %4668 = vmatprep.subr.bf16.mxu0 0
        %4669 = vmatpush1.bf16.msra.mxu0 0
        %4670 = vmatprep.subr.bf16.mxu0 0
        %4671 = vmatpush1.bf16.msra.mxu0 0
        %4672 = vmatprep.subr.bf16.mxu0 0
        %4673 = vmatpush1.bf16.msra.mxu0 0
        %4674 = vmatprep.subr.bf16.mxu0 0
        %4675 = vmatpush1.bf16.msra.mxu0 0
        %4676 = vmatprep.subr.bf16.mxu0 0
        %4677 = vmatpush1.bf16.msra.mxu0 0
        %4678 = vmatprep.subr.bf16.mxu0 0
        %4679 = vmatpush1.bf16.msra.mxu0 0
        %4680 = vmatprep.mubr.bf16.mxu0 0
        %4681 = vmatmul.mubr.bf16.gmra.mrb[0].mxu0 %v4170
        %v4682 = vpop.f32.mrb[0].mxu0
        %v4683 = vadd.f32 %v4522, %v4682
        %v4684 = vpop.f32.mrb[0].mxu0
        %v4685 = vpop.f32.mrb[0].mxu0
        %v4686 = vadd.f32 %v4525, %v4685
        %v4687 = vpop.f32.mrb[0].mxu0
        %4688 = vmatprep.mubr.bf16.mxu0 0
        %4689 = vmatmul.mubr.bf16.gmra.mrb[0].mxu0 %v4177
        %v4690 = vpop.f32.mrb[0].mxu0
        %v4691 = vadd.f32 %v4530, %v4690
        %v4692 = vpop.f32.mrb[0].mxu0
        %v4693 = vpop.f32.mrb[0].mxu0
        %v4694 = vadd.f32 %v4533, %v4693
        %v4695 = vpop.f32.mrb[0].mxu0
        %4696 = vmatprep.mubr.bf16.mxu0 0
        %4697 = vmatmul.mubr.bf16.gmra.mrb[0].mxu0 %v4184
        %v4698 = vpop.f32.mrb[0].mxu0
        %v4699 = vadd.f32 %v4538, %v4698
        %v4700 = vpop.f32.mrb[0].mxu0
        %v4701 = vpop.f32.mrb[0].mxu0
        %v4702 = vadd.f32 %v4541, %v4701
        %v4703 = vpop.f32.mrb[0].mxu0
        %4704 = vmatprep.mubr.bf16.mxu0 0
        %4705 = vmatmul.mubr.bf16.gmra.mrb[0].mxu0 %v4191
        %v4706 = vpop.f32.mrb[0].mxu0
        %v4707 = vadd.f32 %v4546, %v4706
        %v4708 = vpop.f32.mrb[0].mxu0
        %v4709 = vpop.f32.mrb[0].mxu0
        %v4710 = vadd.f32 %v4549, %v4709
        %v4711 = vpop.f32.mrb[0].mxu0
        %4712 = vmatprep.mubr.bf16.mxu0 0
        %4713 = vmatmul.mubr.bf16.gmra.mrb[0].mxu0 %v4198
        %v4714 = vpop.f32.mrb[0].mxu0
        %v4715 = vadd.f32 %v4554, %v4714
        %v4716 = vpop.f32.mrb[0].mxu0
        %v4717 = vpop.f32.mrb[0].mxu0
        %v4718 = vadd.f32 %v4557, %v4717
        %v4719 = vpop.f32.mrb[0].mxu0
        %4720 = vmatprep.mubr.bf16.mxu0 0
        %4721 = vmatmul.mubr.bf16.gmra.mrb[0].mxu0 %v4205
        %v4722 = vpop.f32.mrb[0].mxu0
        %v4723 = vadd.f32 %v4562, %v4722
        %v4724 = vpop.f32.mrb[0].mxu0
        %v4725 = vpop.f32.mrb[0].mxu0
        %v4726 = vadd.f32 %v4565, %v4725
        %v4727 = vpop.f32.mrb[0].mxu0
        %4728 = vmatprep.mubr.bf16.mxu0 0
        %4729 = vmatmul.mubr.bf16.gmra.mrb[0].mxu0 %v4212
        %v4730 = vpop.f32.mrb[0].mxu0
        %v4731 = vadd.f32 %v4570, %v4730
        %v4732 = vpop.f32.mrb[0].mxu0
        %v4733 = vpop.f32.mrb[0].mxu0
        %v4734 = vadd.f32 %v4573, %v4733
        %v4735 = vpop.f32.mrb[0].mxu0
        %4736 = vmatprep.mubr.bf16.mxu0 0
        %4737 = vmatmul.mubr.bf16.gmra.mrb[0].mxu0 %v4219
        %v4738 = vpop.f32.mrb[0].mxu0
        %v4739 = vadd.f32 %v4578, %v4738
        %v4740 = vpop.f32.mrb[0].mxu0
        %v4741 = vpop.f32.mrb[0].mxu0
        %v4742 = vadd.f32 %v4581, %v4741
        %v4743 = vpop.f32.mrb[0].mxu0
        %4744 = vmatprep.mubr.bf16.mxu0 0
        %4745 = vmatmul.mubr.bf16.gmra.mrb[0].mxu0 %v4226
        %v4746 = vpop.f32.mrb[0].mxu0
        %v4747 = vadd.f32 %v4586, %v4746
        %v4748 = vpop.f32.mrb[0].mxu0
        %v4749 = vpop.f32.mrb[0].mxu0
        %v4750 = vadd.f32 %v4589, %v4749
        %v4751 = vpop.f32.mrb[0].mxu0
        %4752 = vmatprep.mubr.bf16.mxu0 0
        %4753 = vmatmul.mubr.bf16.gmra.mrb[0].mxu0 %v4233
        %v4754 = vpop.f32.mrb[0].mxu0
        %v4755 = vadd.f32 %v4594, %v4754
        %v4756 = vpop.f32.mrb[0].mxu0
        %v4757 = vpop.f32.mrb[0].mxu0
        %v4758 = vadd.f32 %v4597, %v4757
        %v4759 = vpop.f32.mrb[0].mxu0
        %4760 = vmatprep.mubr.bf16.mxu0 0
        %4761 = vmatmul.mubr.bf16.gmra.mrb[0].mxu0 %v4240
        %v4762 = vpop.f32.mrb[0].mxu0
        %v4763 = vadd.f32 %v4602, %v4762
        %v4764 = vpop.f32.mrb[0].mxu0
        %v4765 = vpop.f32.mrb[0].mxu0
        %v4766 = vadd.f32 %v4605, %v4765
        %v4767 = vpop.f32.mrb[0].mxu0
        %4768 = vmatprep.mubr.bf16.mxu0 0
        %4769 = vmatmul.mubr.bf16.gmra.mrb[0].mxu0 %v4247
        %v4770 = vpop.f32.mrb[0].mxu0
        %v4771 = vadd.f32 %v4610, %v4770
        %v4772 = vpop.f32.mrb[0].mxu0
        %v4773 = vpop.f32.mrb[0].mxu0
        %v4774 = vadd.f32 %v4613, %v4773
        %v4775 = vpop.f32.mrb[0].mxu0
        %4776 = vmatprep.mubr.bf16.mxu0 0
        %4777 = vmatmul.mubr.bf16.gmra.mrb[0].mxu0 %v4254
        %v4778 = vpop.f32.mrb[0].mxu0
        %v4779 = vadd.f32 %v4618, %v4778
        %v4780 = vpop.f32.mrb[0].mxu0
        %v4781 = vpop.f32.mrb[0].mxu0
        %v4782 = vadd.f32 %v4621, %v4781
        %v4783 = vpop.f32.mrb[0].mxu0
        %4784 = vmatprep.mubr.bf16.mxu0 0
        %4785 = vmatmul.mubr.bf16.gmra.mrb[0].mxu0 %v4261
        %v4786 = vpop.f32.mrb[0].mxu0
        %v4787 = vadd.f32 %v4626, %v4786
        %v4788 = vpop.f32.mrb[0].mxu0
        %v4789 = vpop.f32.mrb[0].mxu0
        %v4790 = vadd.f32 %v4629, %v4789
        %v4791 = vpop.f32.mrb[0].mxu0
        %4792 = vmatprep.mubr.bf16.mxu0 0
        %4793 = vmatmul.mubr.bf16.gmra.mrb[0].mxu0 %v4284
        %v4794 = vpop.f32.mrb[0].mxu0
        %v4795 = vadd.f32 %v4634, %v4794
        %v4796 = vpop.f32.mrb[0].mxu0
        %v4797 = vpop.f32.mrb[0].mxu0
        %v4798 = vadd.f32 %v4637, %v4797
        %v4799 = vpop.f32.mrb[0].mxu0
        %4800 = vmatprep.mubr.bf16.mxu0 0
        %4801 = vmatmul.mubr.bf16.gmra.mrb[0].mxu0 %v4292
        %v4802 = vpop.f32.mrb[0].mxu0
        %v4803 = vadd.f32 %v4642, %v4802
        %v4804 = vpop.f32.mrb[0].mxu0
        %v4805 = vpop.f32.mrb[0].mxu0
        %v4806 = vadd.f32 %v4645, %v4805
        %v4807 = vpop.f32.mrb[0].mxu0
        %4808 = vdwg.mxu0
        %v4809 = vadd.f32 %v4023, %v4683
        %v4810 = vadd.f32 %v4026, %v4686
        %v4811 = vadd.f32 %v4031, %v4691
        %v4812 = vadd.f32 %v4034, %v4694
        %v4813 = vadd.f32 %v4039, %v4699
        %v4814 = vadd.f32 %v4042, %v4702
        %v4815 = vadd.f32 %v4047, %v4707
        %v4816 = vadd.f32 %v4050, %v4710
        %v4817 = vadd.f32 %v4055, %v4715
        %v4818 = vadd.f32 %v4058, %v4718
        %v4819 = vadd.f32 %v4063, %v4723
        %v4820 = vadd.f32 %v4066, %v4726
        %v4821 = vadd.f32 %v4071, %v4731
        %v4822 = vadd.f32 %v4074, %v4734
        %v4823 = vadd.f32 %v4079, %v4739
        %v4824 = vadd.f32 %v4082, %v4742
        %v4825 = vadd.f32 %v4087, %v4747
        %v4826 = vadd.f32 %v4090, %v4750
        %v4827 = vadd.f32 %v4095, %v4755
        %v4828 = vadd.f32 %v4098, %v4758
        %v4829 = vadd.f32 %v4103, %v4763
        %v4830 = vadd.f32 %v4106, %v4766
        %v4831 = vadd.f32 %v4111, %v4771
        %v4832 = vadd.f32 %v4114, %v4774
        %v4833 = vadd.f32 %v4119, %v4779
        %v4834 = vadd.f32 %v4122, %v4782
        %v4835 = vadd.f32 %v4127, %v4787
        %v4836 = vadd.f32 %v4130, %v4790
        %v4837 = vadd.f32 %v4135, %v4795
        %v4838 = vadd.f32 %v4138, %v4798
        %v4839 = vadd.f32 %v4143, %v4803
        %v4840 = vadd.f32 %v4146, %v4806
        %v4841 = vld [vmem:[%s4] sm:$0x1]
        %v4843 = vlaneseq
        %v4844 = vshrl.u32 %v4843, 7
        %v4845 = vsub.s32 0, %v4844
        %v4846 = vrot.slane %v4841, %v4845
        %v4848 = vadd.f32 %v4809, %v4846
        %v4849 = vadd.f32 %v4810, %v4846
        %v4850 = vadd.f32 %v4811, %v4846
        %v4851 = vadd.f32 %v4812, %v4846
        %v4852 = vadd.f32 %v4813, %v4846
        %v4853 = vadd.f32 %v4814, %v4846
        %v4854 = vadd.f32 %v4815, %v4846
        %v4855 = vadd.f32 %v4816, %v4846
        %v4856 = vadd.f32 %v4817, %v4846
        %v4857 = vadd.f32 %v4818, %v4846
        %v4858 = vadd.f32 %v4819, %v4846
        %v4859 = vadd.f32 %v4820, %v4846
        %v4860 = vadd.f32 %v4821, %v4846
        %v4861 = vadd.f32 %v4822, %v4846
        %v4862 = vadd.f32 %v4823, %v4846
        %v4863 = vadd.f32 %v4824, %v4846
        %v4864 = vadd.f32 %v4825, %v4846
        %v4865 = vadd.f32 %v4826, %v4846
        %v4866 = vadd.f32 %v4827, %v4846
        %v4867 = vadd.f32 %v4828, %v4846
        %v4868 = vadd.f32 %v4829, %v4846
        %v4869 = vadd.f32 %v4830, %v4846
        %v4870 = vadd.f32 %v4831, %v4846
        %v4871 = vadd.f32 %v4832, %v4846
        %v4872 = vadd.f32 %v4833, %v4846
        %v4873 = vadd.f32 %v4834, %v4846
        %v4874 = vadd.f32 %v4835, %v4846
        %v4875 = vadd.f32 %v4836, %v4846
        %v4876 = vadd.f32 %v4837, %v4846
        %v4877 = vadd.f32 %v4838, %v4846
        %v4878 = vadd.f32 %v4839, %v4846
        %v4879 = vadd.f32 %v4840, %v4846
        %v4880 = vmax.f32 %v4848, 0.0
        %v4881 = vmax.f32 %v4849, 0.0
        %v4882 = vmax.f32 %v4850, 0.0
        %v4883 = vmax.f32 %v4851, 0.0
        %v4884 = vmax.f32 %v4852, 0.0
        %v4885 = vmax.f32 %v4853, 0.0
        %v4886 = vmax.f32 %v4854, 0.0
        %v4887 = vmax.f32 %v4855, 0.0
        %v4888 = vmax.f32 %v4856, 0.0
        %v4889 = vmax.f32 %v4857, 0.0
        %v4890 = vmax.f32 %v4858, 0.0
        %v4891 = vmax.f32 %v4859, 0.0
        %v4892 = vmax.f32 %v4860, 0.0
        %v4893 = vmax.f32 %v4861, 0.0
        %v4894 = vmax.f32 %v4862, 0.0
        %v4895 = vmax.f32 %v4863, 0.0
        %v4896 = vmax.f32 %v4864, 0.0
        %v4897 = vmax.f32 %v4865, 0.0
        %v4898 = vmax.f32 %v4866, 0.0
        %v4899 = vmax.f32 %v4867, 0.0
        %v4900 = vmax.f32 %v4868, 0.0
        %v4901 = vmax.f32 %v4869, 0.0
        %v4902 = vmax.f32 %v4870, 0.0
        %v4903 = vmax.f32 %v4871, 0.0
        %v4904 = vmax.f32 %v4872, 0.0
        %v4905 = vmax.f32 %v4873, 0.0
        %v4906 = vmax.f32 %v4874, 0.0
        %v4907 = vmax.f32 %v4875, 0.0
        %v4908 = vmax.f32 %v4876, 0.0
        %v4909 = vmax.f32 %v4877, 0.0
        %v4910 = vmax.f32 %v4878, 0.0
        %v4911 = vmax.f32 %v4879, 0.0
        %v4912 = vpack.c.bf16 %v4881, %v4880
        %v4913 = vpack.c.bf16 %v4883, %v4882
        %v4914 = vpack.c.bf16 %v4885, %v4884
        %v4915 = vpack.c.bf16 %v4887, %v4886
        %v4916 = vpack.c.bf16 %v4889, %v4888
        %v4917 = vpack.c.bf16 %v4891, %v4890
        %v4918 = vpack.c.bf16 %v4893, %v4892
        %v4919 = vpack.c.bf16 %v4895, %v4894
        %v4920 = vpack.c.bf16 %v4897, %v4896
        %v4921 = vpack.c.bf16 %v4899, %v4898
        %v4922 = vpack.c.bf16 %v4901, %v4900
        %v4923 = vpack.c.bf16 %v4903, %v4902
        %v4924 = vpack.c.bf16 %v4905, %v4904
        %v4925 = vpack.c.bf16 %v4907, %v4906
        %v4926 = vpack.c.bf16 %v4909, %v4908
        %v4927 = vpack.c.bf16 %v4911, %v4910
        %v4944 = vunpack.c.l.b16 %v4912
        %v4945 = vunpack.c.h.b16 %v4912
        %v4946 = vunpack.c.l.b16 %v4913
        %v4947 = vunpack.c.h.b16 %v4913
        %v4948 = vunpack.c.l.b16 %v4914
        %v4949 = vunpack.c.h.b16 %v4914
        %v4950 = vunpack.c.l.b16 %v4915
        %v4951 = vunpack.c.h.b16 %v4915
        %v4952 = vunpack.c.l.b16 %v4916
        %v4953 = vunpack.c.h.b16 %v4916
        %v4954 = vunpack.c.l.b16 %v4917
        %v4955 = vunpack.c.h.b16 %v4917
        %v4956 = vunpack.c.l.b16 %v4918
        %v4957 = vunpack.c.h.b16 %v4918
        %v4958 = vunpack.c.l.b16 %v4919
        %v4959 = vunpack.c.h.b16 %v4919
        %v4960 = vunpack.c.l.b16 %v4920
        %v4961 = vunpack.c.h.b16 %v4920
        %v4962 = vunpack.c.l.b16 %v4921
        %v4963 = vunpack.c.h.b16 %v4921
        %v4964 = vunpack.c.l.b16 %v4922
        %v4965 = vunpack.c.h.b16 %v4922
        %v4966 = vunpack.c.l.b16 %v4923
        %v4967 = vunpack.c.h.b16 %v4923
        %v4968 = vunpack.c.l.b16 %v4924
        %v4969 = vunpack.c.h.b16 %v4924
        %v4970 = vunpack.c.l.b16 %v4925
        %v4971 = vunpack.c.h.b16 %v4925
        %v4972 = vunpack.c.l.b16 %v4926
        %v4973 = vunpack.c.h.b16 %v4926
        %v4974 = vunpack.c.l.b16 %v4927
        %v4975 = vunpack.c.h.b16 %v4927
        %v4976 = vpack.c.b16 %v4944, %v4944
        %v4977 = vpack.c.b16 %v4945, %v4945
        %v4978 = vpack.c.b16 %v4946, %v4946
        %v4979 = vpack.c.b16 %v4947, %v4947
        %v4980 = vpack.c.b16 %v4948, %v4948
        %v4981 = vpack.c.b16 %v4949, %v4949
        %v4982 = vpack.c.b16 %v4950, %v4950
        %v4983 = vpack.c.b16 %v4951, %v4951
        %v4984 = vpack.c.b16 %v4952, %v4952
        %v4985 = vpack.c.b16 %v4953, %v4953
        %v4986 = vpack.c.b16 %v4954, %v4954
        %v4987 = vpack.c.b16 %v4955, %v4955
        %v4988 = vpack.c.b16 %v4956, %v4956
        %v4989 = vpack.c.b16 %v4957, %v4957
        %v4990 = vpack.c.b16 %v4958, %v4958
        %v4991 = vpack.c.b16 %v4959, %v4959
        %v4992 = vpack.c.b16 %v4960, %v4960
        %v4993 = vpack.c.b16 %v4961, %v4961
        %v4994 = vpack.c.b16 %v4962, %v4962
        %v4995 = vpack.c.b16 %v4963, %v4963
        %v4996 = vpack.c.b16 %v4964, %v4964
        %v4997 = vpack.c.b16 %v4965, %v4965
        %v4998 = vpack.c.b16 %v4966, %v4966
        %v4999 = vpack.c.b16 %v4967, %v4967
        %v5000 = vpack.c.b16 %v4968, %v4968
        %v5001 = vpack.c.b16 %v4969, %v4969
        %v5002 = vpack.c.b16 %v4970, %v4970
        %v5003 = vpack.c.b16 %v4971, %v4971
        %v5004 = vpack.c.b16 %v4972, %v4972
        %v5005 = vpack.c.b16 %v4973, %v4973
        %v5006 = vpack.c.b16 %v4974, %v4974
        %v5007 = vpack.c.b16 %v4975, %v4975
        %5040 = vst [vmem:[%s217] sm:$0xf] %v4976
        %5041 = vst [vmem:[%s217 + $0x4] sm:$0xf] %v4977
        %5042 = vst [vmem:[%s217 + $0x8] sm:$0xf] %v4978
        %5043 = vst [vmem:[%s217 + $0xc] sm:$0xf] %v4979
        %5044 = vst [vmem:[%s217 + $0x10] sm:$0xf] %v4980
        %5045 = vst [vmem:[%s217 + $0x14] sm:$0xf] %v4981
        %5046 = vst [vmem:[%s217 + $0x18] sm:$0xf] %v4982
        %5047 = vst [vmem:[%s217 + $0x1c] sm:$0xf] %v4983
        %5048 = vst [vmem:[%s217 + $0x20] sm:$0xf] %v4984
        %5049 = vst [vmem:[%s217 + $0x24] sm:$0xf] %v4985
        %5050 = vst [vmem:[%s217 + $0x28] sm:$0xf] %v4986
        %5051 = vst [vmem:[%s217 + $0x2c] sm:$0xf] %v4987
        %5052 = vst [vmem:[%s217 + $0x30] sm:$0xf] %v4988
        %5053 = vst [vmem:[%s217 + $0x34] sm:$0xf] %v4989
        %5054 = vst [vmem:[%s217 + $0x38] sm:$0xf] %v4990
        %5055 = vst [vmem:[%s217 + $0x3c] sm:$0xf] %v4991
        %5056 = vst [vmem:[%s217 + $0x40] sm:$0xf] %v4992
        %5057 = vst [vmem:[%s217 + $0x44] sm:$0xf] %v4993
        %5058 = vst [vmem:[%s217 + $0x48] sm:$0xf] %v4994
        %5059 = vst [vmem:[%s217 + $0x4c] sm:$0xf] %v4995
        %5060 = vst [vmem:[%s217 + $0x50] sm:$0xf] %v4996
        %5061 = vst [vmem:[%s217 + $0x54] sm:$0xf] %v4997
        %5062 = vst [vmem:[%s217 + $0x58] sm:$0xf] %v4998
        %5063 = vst [vmem:[%s217 + $0x5c] sm:$0xf] %v4999
        %5064 = vst [vmem:[%s217 + $0x60] sm:$0xf] %v5000
        %5065 = vst [vmem:[%s217 + $0x64] sm:$0xf] %v5001
        %5066 = vst [vmem:[%s217 + $0x68] sm:$0xf] %v5002
        %5067 = vst [vmem:[%s217 + $0x6c] sm:$0xf] %v5003
        %5068 = vst [vmem:[%s217 + $0x70] sm:$0xf] %v5004
        %5069 = vst [vmem:[%s217 + $0x74] sm:$0xf] %v5005
        %5070 = vst [vmem:[%s217 + $0x78] sm:$0xf] %v5006
        %5071 = vst [vmem:[%s217 + $0x7c] sm:$0xf] %v5007
        %s5072 = sand.u32 %s137, 1
        %s5073 = scalar_lea.sflag [#allocation4], %s5072
        %s5074 = sand.u32 %s137, 1
        %s5075 = smul.addr %s5074, 128
        %s5076 = scalar_lea.vmem [#allocation3], %s5075
        // Predicated region
        $region41: #{decoder_block_forward.1} parent=39 // pred_check
          %p5077 = pneg %p147
        $region42: #{decoder_block_forward.1} parent=39 // pred_check_branch
          %5079 = sbr.rel (%p5077) target = $region44
        $region43: #{decoder_block_forward.1} parent=39 // pred_region
          %s5081 = ssub.s32 2048, 2048
          %5082 = vsyncadd %s5073, %s5081
          %s5083 = smul.addr %s19, 32
          %s5084 = smul.addr %s5083, 64
          %s5085 = scalar_lea.hbm %s5, %s5084
          %s5086 = sshll.u32 %s5076, 4
          %s5087 = int_to_ptr.vmem [resolvable:$true] %s5086
          %5092 = dma.vmem_to_hbm [thread:$0]  %s5087, 2048, %s5085, %s5073, 64, 64, 4
        $region44: #{decoder_block_forward.1} parent=39 // pred_fallthru
          _
      $region40: #{decoder_block_forward.1} parent=5 // pred_fallthru
        _
      %p5093 = scmp.le.s32.totalorder 2, %s14
      // Predicated region
      $region45: #{decoder_block_forward.1} parent=5 // pred_check
        %p5094 = pneg %p5093
      $region46: #{decoder_block_forward.1} parent=5 // pred_check_branch
        %5096 = sbr.rel (%p5094) target = $region48
      $region47: #{decoder_block_forward.1} parent=5 // pred_region
        %s5097 = ssub.s32 %s14, 2
        // Predicated region
        $region49: #{decoder_block_forward.1} parent=47 // pred_check
          %p5098 = pneg %p153
        $region50: #{decoder_block_forward.1} parent=47 // pred_check_branch
          %5100 = sbr.rel (%p5098) target = $region52
        $region51: #{decoder_block_forward.1} parent=47 // pred_region
          %s5101 = sand.u32 %s138, 1
          %s5102 = scalar_lea.sflag [#allocation4], %s5101
          %s5103 = sand.u32 %s138, 1
          %s5104 = smul.addr %s5103, 128
          %s5105 = scalar_lea.vmem [#allocation3], %s5104
          %5106 = dma.done %s5102, 2048
        $region52: #{decoder_block_forward.1} parent=47 // pred_fallthru
          _
      $region48: #{decoder_block_forward.1} parent=5 // pred_fallthru
        _
    $region6: #{decoder_block_forward.1} parent=1 // loop_footer
      %s18 = sadd.s32 1, %s14
    $region7: #{decoder_block_forward.1} parent=1 // loop_footer_branch
      %13 = sbr.rel target = $region3
    $region8: #{decoder_block_forward.1} parent=1 // loop_exit
      _
    %5107 = vsyncpa [#allocation4], 1
    %s5108 = scalar_lea.sflag [#allocation4], 1
    %5109 = vsyncpa %s5108, 1

</llo_original>
